<compile_context>
chip_gen: v7x
topology: tpu7x:2x2x1
jax: 0.10.0
libtpu: 0.0.40
codegen_flags: <defaults>
</compile_context>

<pallas_src>
import functools

import jax
import jax.numpy as jnp
from jax import lax
from jax.experimental import pallas as pl
from jax.experimental.pallas import tpu as pltpu

_EPS = 1e-5
_TARGET_BLOCK_BYTES = 4 * 1024 * 1024       # byte-budgeted column tiles
_VMEM_LIMIT = 48 * 1024 * 1024              # <= 48 MiB -> safe on v5e/v6e/v7x


def _elu(z):
    # exp only sees the non-positive side -> no spurious inf in the unselected branch
    return jnp.where(z > 0, z, jnp.exp(jnp.minimum(z, 0.0)) - 1.0)


# ----------------------------- Pallas kernels ------------------------------

def _fc_bn_elu_kernel(x_ref, w_ref, g_ref, b_ref, o_ref):
    """Fused Linear (bias dropped, cancels in BN) + BatchNorm1d (batch stats) + ELU.

    x: (N, Din) bf16, w: (Din, TD) bf16, g/b: (1, TD) f32, o: (N, TD) bf16.
    The full batch is inside the block, so per-column batch statistics are exact.
    """
    y = jnp.dot(x_ref[...], w_ref[...], preferred_element_type=jnp.float32)
    mu = jnp.mean(y, axis=0, keepdims=True)
    var = jnp.mean((y - mu) * (y - mu), axis=0, keepdims=True)
    scale = g_ref[...] * lax.rsqrt(var + _EPS)
    z = (y - mu) * scale + b_ref[...]
    o_ref[...] = _elu(z).astype(o_ref.dtype)


def _deconv_stats_kernel(x4_ref, w4_ref, o_ref, ssum_ref, ssq_ref):
    """Polyphase transposed conv (single matmul) + fused per-(phase,channel) BN statistics.

    x4: (4*Cin, TR) bf16, w4: (4*Cout, 4*Cin) bf16, o: (4*Cout, TR) bf16,
    ssum/ssq: (4*Cout, 1) f32 resident accumulators across the column grid.
    Stats are accumulated from the f32 MXU result before the bf16 down-cast.
    """
    y = jnp.dot(w4_ref[...], x4_ref[...], preferred_element_type=jnp.float32)
    o_ref[...] = y.astype(o_ref.dtype)

    @pl.when(pl.program_id(0) == 0)
    def _():
        ssum_ref[...] = jnp.zeros_like(ssum_ref)
        ssq_ref[...] = jnp.zeros_like(ssq_ref)

    ssum_ref[...] += jnp.sum(y, axis=1, keepdims=True)
    ssq_ref[...] += jnp.sum(y * y, axis=1, keepdims=True)


def _deconv_sigmoid_kernel(x4_ref, w4_ref, b_ref, o_ref):
    """Polyphase transposed conv + bias + fused Sigmoid epilogue (last block)."""
    y = jnp.dot(w4_ref[...], x4_ref[...], preferred_element_type=jnp.float32) + b_ref[...]
    e = jnp.exp(jnp.clip(-y, -30.0, 30.0))            # EUP
    sig = pl.reciprocal(1.0 + e, approx=True)         # EUP, keeps the divide off the VALU
    o_ref[...] = jnp.clip(sig, 0.0, 1.0)


def _bn_elu_kernel(x_ref, s_ref, t_ref, o_ref):
    """Per-channel affine (BN scale/shift on the sublane axis) + ELU, lane-dense layout.

    x: (C4, TR) bf16, s/t: (C4, 1) f32, o: (C4, TR) bf16 (next layer's matmul dtype).
    """
    z = x_ref[...].astype(jnp.float32) * s_ref[...] + t_ref[...]
    o_ref[...] = _elu(z).astype(o_ref.dtype)


# ----------------------------- tiling helpers ------------------------------

def _col_tile(total, bytes_per_col):
    """Largest column tile (multiple of 128 that divides `total`) within the byte budget."""
    if total * bytes_per_col <= _TARGET_BLOCK_BYTES:
        return total
    t = (_TARGET_BLOCK_BYTES // bytes_per_col) // 128 * 128
    t = min(t, total)
    while t >= 128:
        if total % t == 0:
            return t
        t -= 128
    return total  # no aligned divisor -> single full block


# ----------------------------- Pallas wrappers ------------------------------

def fc_bn_elu(x, w, gamma, beta):
    n, din = x.shape
    dout = w.shape[1]
    td = dout if dout <= 4096 else 1024          # tile Dout so large fc2 weights never blow VMEM
    grid = (pl.cdiv(dout, td),)
    return pl.pallas_call(
        _fc_bn_elu_kernel,
        out_shape=jax.ShapeDtypeStruct((n, dout), jnp.bfloat16),
        grid=grid,
        in_specs=[
            pl.BlockSpec((n, din), lambda j: (0, 0)),
            pl.BlockSpec((din, td), lambda j: (0, j)),
            pl.BlockSpec((1, td), lambda j: (0, j)),
            pl.BlockSpec((1, td), lambda j: (0, j)),
        ],
        out_specs=pl.BlockSpec((n, td), lambda j: (0, j)),
        compiler_params=pltpu.CompilerParams(
            dimension_semantics=("parallel",), vmem_limit_bytes=_VMEM_LIMIT),
    )(x.astype(jnp.bfloat16), w.astype(jnp.bfloat16),
      gamma.reshape(1, dout), beta.reshape(1, dout))


def bn_elu(x4, scale4, shift4):
    c4, cols = x4.shape
    tc = _col_tile(cols, 2 * c4 + 2 * c4)        # bf16 in + bf16 out per column
    return pl.pallas_call(
        _bn_elu_kernel,
        out_shape=jax.ShapeDtypeStruct((c4, cols), jnp.bfloat16),
        grid=(cols // tc,),
        in_specs=[
            pl.BlockSpec((c4, tc), lambda i: (0, i)),
            pl.BlockSpec((c4, 1), lambda i: (0, 0)),
            pl.BlockSpec((c4, 1), lambda i: (0, 0)),
        ],
        out_specs=pl.BlockSpec((c4, tc), lambda i: (0, i)),
        compiler_params=pltpu.CompilerParams(
            dimension_semantics=("parallel",), vmem_limit_bytes=_VMEM_LIMIT),
    )(x4, scale4, shift4)


def _deconv_core(x_cnhw, w_t, *, with_stats, bias=None):
    """Shared polyphase-deconv driver.  Input/activations are channels-first (C, N, H, W)."""
    cin, n, h, w = x_cnhw.shape
    cout = w_t.shape[1]
    rows = n * h * w

    # 2x2 neighbourhood of every input pixel (zero-pad bottom/right) -> (4*Cin, N*H*W)
    xp = jnp.pad(x_cnhw, ((0, 0), (0, 0), (0, 1), (0, 1)))
    x4 = jnp.concatenate(
        [xp[:, :, a:a + h, b:b + w].reshape(cin, rows) for a in (0, 1) for b in (0, 1)],
        axis=0).astype(jnp.bfloat16)

    # combined polyphase weights: W4[(dy,dx,co), (a,b,ci)] = W_t[ci, co, dy+1-2a, dx+1-2b]
    wrows = []
    for dy in (0, 1):
        for dx in (0, 1):
            cols = []
            for a in (0, 1):
                for b in (0, 1):
                    ky, kx = dy + 1 - 2 * a, dx + 1 - 2 * b
                    if 0 <= ky < 3 and 0 <= kx < 3:
                        cols.append(jnp.transpose(w_t[:, :, ky, kx]))   # (Cout, Cin)
                    else:
                        cols.append(jnp.zeros((cout, cin), w_t.dtype))
            wrows.append(jnp.concatenate(cols, axis=1))
    w4 = jnp.concatenate(wrows, axis=0).astype(jnp.bfloat16)            # (4*Cout, 4*Cin)

    if with_stats:
        tr = _col_tile(rows, 4 * cin * 2 + 4 * cout * 2)   # bf16 x4 + bf16 out per column
        grid = (rows // tr,)
        out4, ssum, ssq = pl.pallas_call(
            _deconv_stats_kernel,
            out_shape=(jax.ShapeDtypeStruct((4 * cout, rows), jnp.bfloat16),
                       jax.ShapeDtypeStruct((4 * cout, 1), jnp.float32),
                       jax.ShapeDtypeStruct((4 * cout, 1), jnp.float32)),
            grid=grid,
            in_specs=[
                pl.BlockSpec((4 * cin, tr), lambda i: (0, i)),
                pl.BlockSpec((4 * cout, 4 * cin), lambda i: (0, 0)),
            ],
            out_specs=(pl.BlockSpec((4 * cout, tr), lambda i: (0, i)),
                       pl.BlockSpec((4 * cout, 1), lambda i: (0, 0)),
                       pl.BlockSpec((4 * cout, 1), lambda i: (0, 0))),
            compiler_params=pltpu.CompilerParams(
                dimension_semantics=("arbitrary",), vmem_limit_bytes=_VMEM_LIMIT),
        )(x4, w4)
        return out4, (ssum, ssq), (cout, n, h, w)

    tr = _col_tile(rows, 4 * cin * 2 + 4 * cout * 4)       # bf16 x4 + f32 sigmoid out
    grid = (rows // tr,)
    b4 = jnp.tile(bias, 4).reshape(4 * cout, 1).astype(jnp.float32)
    out4 = pl.pallas_call(
        _deconv_sigmoid_kernel,
        out_shape=jax.ShapeDtypeStruct((4 * cout, rows), jnp.float32),
        grid=grid,
        in_specs=[
            pl.BlockSpec((4 * cin, tr), lambda i: (0, i)),
            pl.BlockSpec((4 * cout, 4 * cin), lambda i: (0, 0)),
            pl.BlockSpec((4 * cout, 1), lambda i: (0, 0)),
        ],
        out_specs=pl.BlockSpec((4 * cout, tr), lambda i: (0, i)),
        compiler_params=pltpu.CompilerParams(
            dimension_semantics=("parallel",), vmem_limit_bytes=_VMEM_LIMIT),
    )(x4, w4, b4)
    return out4, None, (cout, n, h, w)


def _interleave_phases(out4, cout, n, h, w):
    # rows ordered (dy, dx, co); columns ordered (n, m, n')  ->  (Cout, N, 2H, 2W)
    o = out4.reshape(2, 2, cout, n, h, w)
    o = jnp.transpose(o, (2, 3, 4, 0, 5, 1))        # (Cout, N, H, 2, W, 2)
    return o.reshape(cout, n, 2 * h, 2 * w)


def deconv_bn_elu(x_cnhw, w_t, gamma, beta):
    """ConvTranspose2d(3, s=2, p=1, op=1) (bias cancels in train-mode BN) + BN2d + ELU."""
    out4, (ssum, ssq), (cout, n, h, w) = _deconv_core(x_cnhw, w_t, with_stats=True)
    cnt = 4.0 * n * h * w                           # = N * 2H * 2W output pixels
    s = jnp.sum(ssum.reshape(4, cout), axis=0)
    ss = jnp.sum(ssq.reshape(4, cout), axis=0)
    mu = s / cnt
    var = jnp.maximum(ss / cnt - mu * mu, 0.0)
    scale = gamma * lax.rsqrt(var + _EPS)
    shift = beta - mu * scale
    scale4 = jnp.tile(scale, 4).reshape(4 * cout, 1)
    shift4 = jnp.tile(shift, 4).reshape(4 * cout, 1)
    out4 = bn_elu(out4, scale4, shift4)
    return _interleave_phases(out4, cout, n, h, w)


def deconv_sigmoid(x_cnhw, w_t, bias):
    out4, _, (cout, n, h, w) = _deconv_core(x_cnhw, w_t, with_stats=False, bias=bias)
    return _interleave_phases(out4, cout, n, h, w)


# ------------------------------ full decoder --------------------------------

def decoder_forward(x, params, *, hidden_dims, initial_size):
    n = x.shape[0]

    h = fc_bn_elu(x, params["fc1_w"], params["bn1_g"], params["bn1_b"])
    h = fc_bn_elu(h, params["fc2_w"], params["bn2_g"], params["bn2_b"])

    # unflatten to (N, C, H, W) then go channels-first-flattened for the conv stack
    h = h.reshape(n, hidden_dims, initial_size, initial_size)
    h = jnp.transpose(h, (1, 0, 2, 3))              # (C, N, H, W)

    for i in range(4):
        h = deconv_bn_elu(h, params[f"ct{i}_w"], params[f"cbn{i}_g"], params[f"cbn{i}_b"])
    h = deconv_sigmoid(h, params["ct4_w"], params["ct4_b"])

    return jnp.transpose(h, (1, 0, 2, 3))           # NCHW, matching PyTorch


# ------------------------------- param init ---------------------------------

def init_params(key, input_dims, hidden_dims, output_channels, initial_size):
    fc_hidden = 1000                                # hard-coded in the reference module
    fc2_out = hidden_dims * initial_size * initial_size
    chans = [hidden_dims, hidden_dims // 2, hidden_dims // 4, hidden_dims // 8,
             hidden_dims // 16, output_channels]

    keys = jax.random.split(key, 16)
    ki = iter(keys)
    p = {}
    p["fc1_w"] = 0.05 * jax.random.normal(next(ki), (input_dims, fc_hidden), jnp.float32)
    p["bn1_g"] = jnp.ones((fc_hidden,), jnp.float32)
    p["bn1_b"] = jnp.zeros((fc_hidden,), jnp.float32)
    p["fc2_w"] = 0.05 * jax.random.normal(next(ki), (fc_hidden, fc2_out), jnp.float32)
    p["bn2_g"] = jnp.ones((fc2_out,), jnp.float32)
    p["bn2_b"] = jnp.zeros((fc2_out,), jnp.float32)
    # Linear / conv biases that feed a training-mode BatchNorm cancel exactly in the
    # normalization, so they are omitted (numerically identical forward).
    for i in range(5):
        cin, cout = chans[i], chans[i + 1]
        # PyTorch ConvTranspose2d weight layout: (Cin, Cout, kH, kW)
        p[f"ct{i}_w"] = 0.1 * jax.random.normal(next(ki), (cin, cout, 3, 3), jnp.float32)
        if i < 4:
            p[f"cbn{i}_g"] = jnp.ones((cout,), jnp.float32)
            p[f"cbn{i}_b"] = jnp.zeros((cout,), jnp.float32)
        else:
            p[f"ct{i}_b"] = 0.05 * jax.random.normal(next(ki), (cout,), jnp.float32)
    return p


# ---------------------------------- main -------------------------------------

if __name__ == "__main__":
    batch = 2
    input_dims = 16
    hidden_dims = 32          # must be divisible by 16
    output_channels = 3
    initial_size = 2          # spatial: 2 -> 4 -> 8 -> 16 -> 32 -> 64

    key = jax.random.PRNGKey(0)
    key_p, key_x = jax.random.split(key)
    params = init_params(key_p, input_dims, hidden_dims, output_channels, initial_size)
    x = jax.random.normal(key_x, (batch, input_dims), jnp.float32)

    fwd = jax.jit(functools.partial(decoder_forward,
                                    hidden_dims=hidden_dims, initial_size=initial_size))
    out = fwd(x, params)
    out = jax.block_until_ready(out)

    expected_hw = initial_size * (2 ** 5)
    assert out.shape == (batch, output_channels, expected_hw, expected_hw), out.shape
    assert bool(jnp.all(jnp.isfinite(out)))
    assert bool(jnp.all((out >= 0.0) & (out <= 1.0)))  # sigmoid output range
    print("KERNEL_OK")
</pallas_src>

<mosaic_0001>
module attributes {stable_mosaic.version = 11 : i64} {
  func.func @_fc_bn_elu_kernel(%arg0: i32, %arg1: memref<2x16xbf16, #tpu.memory_space<vmem>>, %arg2: memref<16x1000xbf16, #tpu.memory_space<vmem>>, %arg3: memref<1x1000xf32, #tpu.memory_space<vmem>>, %arg4: memref<1x1000xf32, #tpu.memory_space<vmem>>, %arg5: memref<2x1000xbf16, #tpu.memory_space<vmem>>) attributes {dimension_semantics = [#tpu.dimension_semantics<parallel>], iteration_bounds = array<i64: 1>, scalar_prefetch = 0 : i64, scratch_operands = 0 : i64, tpu.core_type = #tpu.core_type<tc>, window_params = [{pipeline_mode = #tpu.pipeline_mode<synchronous>, transform_indices = @transform_0, window_bounds = array<i64: 2, 16>}, {transform_indices = @transform_1, window_bounds = array<i64: 16, 1000>}, {transform_indices = @transform_2, window_bounds = array<i64: 1, 1000>}, {transform_indices = @transform_3, window_bounds = array<i64: 1, 1000>}, {transform_indices = @transform_4, window_bounds = array<i64: 2, 1000>}]} {
    %c0 = arith.constant 0 : index
    %c0_0 = arith.constant 0 : index
    %0 = vector.load %arg1[%c0, %c0_0] : memref<2x16xbf16, #tpu.memory_space<vmem>>, vector<2x16xbf16>
    %c0_1 = arith.constant 0 : index
    %c0_2 = arith.constant 0 : index
    %1 = vector.load %arg2[%c0_1, %c0_2] : memref<16x1000xbf16, #tpu.memory_space<vmem>>, vector<16x1000xbf16>
    %cst = arith.constant dense<0.000000e+00> : vector<2x1000xf32>
    %2 = tpu.matmul %0, %1, %cst {dimension_numbers = #tpu.dot_dimension_numbers<[1], [0], [0], [1], [0, 0, 1, 1], [], []>} : vector<2x16xbf16>, vector<16x1000xbf16>, vector<2x1000xf32> -> vector<2x1000xf32>
    %cst_3 = arith.constant dense<0.000000e+00> : vector<1000xf32>
    %3 = vector.multi_reduction <add>, %2, %cst_3 [0] : vector<2x1000xf32> to vector<1000xf32>
    %4 = vector.shape_cast %3 : vector<1000xf32> to vector<1x1000xf32>
    %cst_4 = arith.constant 2.000000e+00 : f32
    %5 = vector.broadcast %cst_4 : f32 to vector<1x1000xf32>
    %6 = arith.divf %4, %5 : vector<1x1000xf32>
    %7 = vector.broadcast %6 : vector<1x1000xf32> to vector<2x1000xf32>
    %8 = arith.subf %2, %7 : vector<2x1000xf32>
    %9 = vector.broadcast %6 : vector<1x1000xf32> to vector<2x1000xf32>
    %10 = arith.subf %2, %9 : vector<2x1000xf32>
    %11 = arith.mulf %8, %10 : vector<2x1000xf32>
    %cst_5 = arith.constant dense<0.000000e+00> : vector<1000xf32>
    %12 = vector.multi_reduction <add>, %11, %cst_5 [0] : vector<2x1000xf32> to vector<1000xf32>
    %13 = vector.shape_cast %12 : vector<1000xf32> to vector<1x1000xf32>
    %cst_6 = arith.constant 2.000000e+00 : f32
    %14 = vector.broadcast %cst_6 : f32 to vector<1x1000xf32>
    %15 = arith.divf %13, %14 : vector<1x1000xf32>
    %c0_7 = arith.constant 0 : index
    %c0_8 = arith.constant 0 : index
    %16 = vector.load %arg3[%c0_7, %c0_8] : memref<1x1000xf32, #tpu.memory_space<vmem>>, vector<1x1000xf32>
    %cst_9 = arith.constant 9.99999974E-6 : f32
    %17 = vector.broadcast %cst_9 : f32 to vector<1x1000xf32>
    %18 = arith.addf %15, %17 : vector<1x1000xf32>
    %19 = math.rsqrt %18 : vector<1x1000xf32>
    %20 = arith.mulf %16, %19 : vector<1x1000xf32>
    %21 = vector.broadcast %6 : vector<1x1000xf32> to vector<2x1000xf32>
    %22 = arith.subf %2, %21 : vector<2x1000xf32>
    %23 = vector.broadcast %20 : vector<1x1000xf32> to vector<2x1000xf32>
    %24 = arith.mulf %22, %23 : vector<2x1000xf32>
    %c0_10 = arith.constant 0 : index
    %c0_11 = arith.constant 0 : index
    %25 = vector.load %arg4[%c0_10, %c0_11] : memref<1x1000xf32, #tpu.memory_space<vmem>>, vector<1x1000xf32>
    %26 = vector.broadcast %25 : vector<1x1000xf32> to vector<2x1000xf32>
    %27 = arith.addf %24, %26 : vector<2x1000xf32>
    %cst_12 = arith.constant 0.000000e+00 : f32
    %28 = vector.broadcast %cst_12 : f32 to vector<2x1000xf32>
    %29 = arith.cmpf ogt, %27, %28 : vector<2x1000xf32>
    %cst_13 = arith.constant 0.000000e+00 : f32
    %30 = vector.broadcast %cst_13 : f32 to vector<2x1000xf32>
    %31 = arith.minimumf %27, %30 : vector<2x1000xf32>
    %32 = math.exp %31 : vector<2x1000xf32>
    %cst_14 = arith.constant 1.000000e+00 : f32
    %33 = vector.broadcast %cst_14 : f32 to vector<2x1000xf32>
    %34 = arith.subf %32, %33 : vector<2x1000xf32>
    %35 = arith.select %29, %27, %34 : vector<2x1000xi1>, vector<2x1000xf32>
    %36 = arith.truncf %35 : vector<2x1000xf32> to vector<2x1000xbf16>
    %c0_15 = arith.constant 0 : index
    %c0_16 = arith.constant 0 : index
    %37 = vector.load %arg5[%c0_15, %c0_16] : memref<2x1000xbf16, #tpu.memory_space<vmem>>, vector<2x1000xbf16>
    tpu.vector_store %arg5[%c0_15, %c0_16], %36 {strides = array<i32>} : memref<2x1000xbf16, #tpu.memory_space<vmem>>, vector<2x1000xbf16>,
    return
  }
  func.func @transform_0(%arg0: i32) -> (i32, i32) {
    %c0_i32 = arith.constant 0 : i32
    %c0_i32_0 = arith.constant 0 : i32
    %c0_i32_1 = arith.constant 0 : i32
    return %c0_i32, %c0_i32_0 : i32, i32
  }
  func.func @transform_1(%arg0: i32) -> (i32, i32) {
    %c0_i32 = arith.constant 0 : i32
    %c0_i32_0 = arith.constant 0 : i32
    return %c0_i32, %arg0 : i32, i32
  }
  func.func @transform_2(%arg0: i32) -> (i32, i32) {
    %c0_i32 = arith.constant 0 : i32
    %c0_i32_0 = arith.constant 0 : i32
    return %c0_i32, %arg0 : i32, i32
  }
  func.func @transform_3(%arg0: i32) -> (i32, i32) {
    %c0_i32 = arith.constant 0 : i32
    %c0_i32_0 = arith.constant 0 : i32
    return %c0_i32, %arg0 : i32, i32
  }
  func.func @transform_4(%arg0: i32) -> (i32, i32) {
    %c0_i32 = arith.constant 0 : i32
    %c0_i32_0 = arith.constant 0 : i32
    return %c0_i32, %arg0 : i32, i32
  }
}

module attributes {stable_mosaic.version = 11 : i64} {
  func.func @_fc_bn_elu_kernel(%arg0: i32, %arg1: memref<2x1000xbf16, #tpu.memory_space<vmem>>, %arg2: memref<1000x128xbf16, #tpu.memory_space<vmem>>, %arg3: memref<1x128xf32, #tpu.memory_space<vmem>>, %arg4: memref<1x128xf32, #tpu.memory_space<vmem>>, %arg5: memref<2x128xbf16, #tpu.memory_space<vmem>>) attributes {dimension_semantics = [#tpu.dimension_semantics<parallel>], iteration_bounds = array<i64: 1>, scalar_prefetch = 0 : i64, scratch_operands = 0 : i64, tpu.core_type = #tpu.core_type<tc>, window_params = [{pipeline_mode = #tpu.pipeline_mode<synchronous>, transform_indices = @transform_0, window_bounds = array<i64: 2, 1000>}, {transform_indices = @transform_1, window_bounds = array<i64: 1000, 128>}, {transform_indices = @transform_2, window_bounds = array<i64: 1, 128>}, {transform_indices = @transform_3, window_bounds = array<i64: 1, 128>}, {transform_indices = @transform_4, window_bounds = array<i64: 2, 128>}]} {
    %c0 = arith.constant 0 : index
    %c0_0 = arith.constant 0 : index
    %0 = vector.load %arg1[%c0, %c0_0] : memref<2x1000xbf16, #tpu.memory_space<vmem>>, vector<2x1000xbf16>
    %c0_1 = arith.constant 0 : index
    %c0_2 = arith.constant 0 : index
    %1 = vector.load %arg2[%c0_1, %c0_2] : memref<1000x128xbf16, #tpu.memory_space<vmem>>, vector<1000x128xbf16>
    %cst = arith.constant dense<0.000000e+00> : vector<2x128xf32>
    %2 = tpu.matmul %0, %1, %cst {dimension_numbers = #tpu.dot_dimension_numbers<[1], [0], [0], [1], [0, 0, 1, 1], [], []>} : vector<2x1000xbf16>, vector<1000x128xbf16>, vector<2x128xf32> -> vector<2x128xf32>
    %cst_3 = arith.constant dense<0.000000e+00> : vector<128xf32>
    %3 = vector.multi_reduction <add>, %2, %cst_3 [0] : vector<2x128xf32> to vector<128xf32>
    %4 = vector.shape_cast %3 : vector<128xf32> to vector<1x128xf32>
    %cst_4 = arith.constant 2.000000e+00 : f32
    %5 = vector.broadcast %cst_4 : f32 to vector<1x128xf32>
    %6 = arith.divf %4, %5 : vector<1x128xf32>
    %7 = vector.broadcast %6 : vector<1x128xf32> to vector<2x128xf32>
    %8 = arith.subf %2, %7 : vector<2x128xf32>
    %9 = vector.broadcast %6 : vector<1x128xf32> to vector<2x128xf32>
    %10 = arith.subf %2, %9 : vector<2x128xf32>
    %11 = arith.mulf %8, %10 : vector<2x128xf32>
    %cst_5 = arith.constant dense<0.000000e+00> : vector<128xf32>
    %12 = vector.multi_reduction <add>, %11, %cst_5 [0] : vector<2x128xf32> to vector<128xf32>
    %13 = vector.shape_cast %12 : vector<128xf32> to vector<1x128xf32>
    %cst_6 = arith.constant 2.000000e+00 : f32
    %14 = vector.broadcast %cst_6 : f32 to vector<1x128xf32>
    %15 = arith.divf %13, %14 : vector<1x128xf32>
    %c0_7 = arith.constant 0 : index
    %c0_8 = arith.constant 0 : index
    %16 = vector.load %arg3[%c0_7, %c0_8] : memref<1x128xf32, #tpu.memory_space<vmem>>, vector<1x128xf32>
    %cst_9 = arith.constant 9.99999974E-6 : f32
    %17 = vector.broadcast %cst_9 : f32 to vector<1x128xf32>
    %18 = arith.addf %15, %17 : vector<1x128xf32>
    %19 = math.rsqrt %18 : vector<1x128xf32>
    %20 = arith.mulf %16, %19 : vector<1x128xf32>
    %21 = vector.broadcast %6 : vector<1x128xf32> to vector<2x128xf32>
    %22 = arith.subf %2, %21 : vector<2x128xf32>
    %23 = vector.broadcast %20 : vector<1x128xf32> to vector<2x128xf32>
    %24 = arith.mulf %22, %23 : vector<2x128xf32>
    %c0_10 = arith.constant 0 : index
    %c0_11 = arith.constant 0 : index
    %25 = vector.load %arg4[%c0_10, %c0_11] : memref<1x128xf32, #tpu.memory_space<vmem>>, vector<1x128xf32>
    %26 = vector.broadcast %25 : vector<1x128xf32> to vector<2x128xf32>
    %27 = arith.addf %24, %26 : vector<2x128xf32>
    %cst_12 = arith.constant 0.000000e+00 : f32
    %28 = vector.broadcast %cst_12 : f32 to vector<2x128xf32>
    %29 = arith.cmpf ogt, %27, %28 : vector<2x128xf32>
    %cst_13 = arith.constant 0.000000e+00 : f32
    %30 = vector.broadcast %cst_13 : f32 to vector<2x128xf32>
    %31 = arith.minimumf %27, %30 : vector<2x128xf32>
    %32 = math.exp %31 : vector<2x128xf32>
    %cst_14 = arith.constant 1.000000e+00 : f32
    %33 = vector.broadcast %cst_14 : f32 to vector<2x128xf32>
    %34 = arith.subf %32, %33 : vector<2x128xf32>
    %35 = arith.select %29, %27, %34 : vector<2x128xi1>, vector<2x128xf32>
    %36 = arith.truncf %35 : vector<2x128xf32> to vector<2x128xbf16>
    %c0_15 = arith.constant 0 : index
    %c0_16 = arith.constant 0 : index
    %37 = vector.load %arg5[%c0_15, %c0_16] : memref<2x128xbf16, #tpu.memory_space<vmem>>, vector<2x128xbf16>
    tpu.vector_store %arg5[%c0_15, %c0_16], %36 {strides = array<i32>} : memref<2x128xbf16, #tpu.memory_space<vmem>>, vector<2x128xbf16>,
    return
  }
  func.func @transform_0(%arg0: i32) -> (i32, i32) {
    %c0_i32 = arith.constant 0 : i32
    %c0_i32_0 = arith.constant 0 : i32
    %c0_i32_1 = arith.constant 0 : i32
    return %c0_i32, %c0_i32_0 : i32, i32
  }
  func.func @transform_1(%arg0: i32) -> (i32, i32) {
    %c0_i32 = arith.constant 0 : i32
    %c0_i32_0 = arith.constant 0 : i32
    return %c0_i32, %arg0 : i32, i32
  }
  func.func @transform_2(%arg0: i32) -> (i32, i32) {
    %c0_i32 = arith.constant 0 : i32
    %c0_i32_0 = arith.constant 0 : i32
    return %c0_i32, %arg0 : i32, i32
  }
  func.func @transform_3(%arg0: i32) -> (i32, i32) {
    %c0_i32 = arith.constant 0 : i32
    %c0_i32_0 = arith.constant 0 : i32
    return %c0_i32, %arg0 : i32, i32
  }
  func.func @transform_4(%arg0: i32) -> (i32, i32) {
    %c0_i32 = arith.constant 0 : i32
    %c0_i32_0 = arith.constant 0 : i32
    return %c0_i32, %arg0 : i32, i32
  }
}

module attributes {stable_mosaic.version = 11 : i64} {
  func.func @_deconv_stats_kernel(%arg0: i32, %arg1: memref<128x8xbf16, #tpu.memory_space<vmem>>, %arg2: memref<64x128xbf16, #tpu.memory_space<vmem>>, %arg3: memref<64x8xbf16, #tpu.memory_space<vmem>>, %arg4: memref<64x1xf32, #tpu.memory_space<vmem>>, %arg5: memref<64x1xf32, #tpu.memory_space<vmem>>) attributes {dimension_semantics = [#tpu.dimension_semantics<arbitrary>], iteration_bounds = array<i64: 1>, scalar_prefetch = 0 : i64, scratch_operands = 0 : i64, tpu.core_type = #tpu.core_type<tc>, window_params = [{transform_indices = @transform_0, window_bounds = array<i64: 128, 8>}, {pipeline_mode = #tpu.pipeline_mode<synchronous>, transform_indices = @transform_1, window_bounds = array<i64: 64, 128>}, {transform_indices = @transform_2, window_bounds = array<i64: 64, 8>}, {pipeline_mode = #tpu.pipeline_mode<synchronous>, transform_indices = @transform_3, window_bounds = array<i64: 64, 1>}, {pipeline_mode = #tpu.pipeline_mode<synchronous>, transform_indices = @transform_4, window_bounds = array<i64: 64, 1>}]} {
    %c0 = arith.constant 0 : index
    %c0_0 = arith.constant 0 : index
    %0 = vector.load %arg2[%c0, %c0_0] : memref<64x128xbf16, #tpu.memory_space<vmem>>, vector<64x128xbf16>
    %c0_1 = arith.constant 0 : index
    %c0_2 = arith.constant 0 : index
    %1 = vector.load %arg1[%c0_1, %c0_2] : memref<128x8xbf16, #tpu.memory_space<vmem>>, vector<128x8xbf16>
    %cst = arith.constant dense<0.000000e+00> : vector<64x8xf32>
    %2 = tpu.matmul %0, %1, %cst {dimension_numbers = #tpu.dot_dimension_numbers<[1], [0], [0], [1], [0, 0, 1, 1], [], []>} : vector<64x128xbf16>, vector<128x8xbf16>, vector<64x8xf32> -> vector<64x8xf32>
    %3 = arith.truncf %2 : vector<64x8xf32> to vector<64x8xbf16>
    %c0_3 = arith.constant 0 : index
    %c0_4 = arith.constant 0 : index
    %4 = vector.load %arg3[%c0_3, %c0_4] : memref<64x8xbf16, #tpu.memory_space<vmem>>, vector<64x8xbf16>
    tpu.vector_store %arg3[%c0_3, %c0_4], %3 {strides = array<i32>} : memref<64x8xbf16, #tpu.memory_space<vmem>>, vector<64x8xbf16>,
    %c0_i32 = arith.constant 0 : i32
    %5 = arith.cmpi eq, %arg0, %c0_i32 : i32
    %6 = arith.extui %5 : i1 to i32
    %c0_i32_5 = arith.constant 0 : i32
    %7 = arith.cmpi ne, %6, %c0_i32_5 : i32
    scf.if %7 {
      %cst_16 = arith.constant 0.000000e+00 : f32
      %19 = vector.broadcast %cst_16 : f32 to vector<64x1xf32>
      %c0_17 = arith.constant 0 : index
      %c0_18 = arith.constant 0 : index
      %20 = vector.load %arg4[%c0_17, %c0_18] : memref<64x1xf32, #tpu.memory_space<vmem>>, vector<64x1xf32>
      tpu.vector_store %arg4[%c0_17, %c0_18], %19 {strides = array<i32>} : memref<64x1xf32, #tpu.memory_space<vmem>>, vector<64x1xf32>,
      %cst_19 = arith.constant 0.000000e+00 : f32
      %21 = vector.broadcast %cst_19 : f32 to vector<64x1xf32>
      %c0_20 = arith.constant 0 : index
      %c0_21 = arith.constant 0 : index
      %22 = vector.load %arg5[%c0_20, %c0_21] : memref<64x1xf32, #tpu.memory_space<vmem>>, vector<64x1xf32>
      tpu.vector_store %arg5[%c0_20, %c0_21], %21 {strides = array<i32>} : memref<64x1xf32, #tpu.memory_space<vmem>>, vector<64x1xf32>,
    } else {
    }
    %c0_6 = arith.constant 0 : index
    %c0_7 = arith.constant 0 : index
    %8 = vector.load %arg4[%c0_6, %c0_7] : memref<64x1xf32, #tpu.memory_space<vmem>>, vector<64x1xf32>
    %cst_8 = arith.constant dense<0.000000e+00> : vector<64xf32>
    %9 = vector.multi_reduction <add>, %2, %cst_8 [1] : vector<64x8xf32> to vector<64xf32>
    %10 = vector.shape_cast %9 : vector<64xf32> to vector<64x1xf32>
    %11 = arith.addf %8, %10 : vector<64x1xf32>
    %c0_9 = arith.constant 0 : index
    %c0_10 = arith.constant 0 : index
    %12 = vector.load %arg4[%c0_9, %c0_10] : memref<64x1xf32, #tpu.memory_space<vmem>>, vector<64x1xf32>
    tpu.vector_store %arg4[%c0_9, %c0_10], %11 {strides = array<i32>} : memref<64x1xf32, #tpu.memory_space<vmem>>, vector<64x1xf32>,
    %c0_11 = arith.constant 0 : index
    %c0_12 = arith.constant 0 : index
    %13 = vector.load %arg5[%c0_11, %c0_12] : memref<64x1xf32, #tpu.memory_space<vmem>>, vector<64x1xf32>
    %14 = arith.mulf %2, %2 : vector<64x8xf32>
    %cst_13 = arith.constant dense<0.000000e+00> : vector<64xf32>
    %15 = vector.multi_reduction <add>, %14, %cst_13 [1] : vector<64x8xf32> to vector<64xf32>
    %16 = vector.shape_cast %15 : vector<64xf32> to vector<64x1xf32>
    %17 = arith.addf %13, %16 : vector<64x1xf32>
    %c0_14 = arith.constant 0 : index
    %c0_15 = arith.constant 0 : index
    %18 = vector.load %arg5[%c0_14, %c0_15] : memref<64x1xf32, #tpu.memory_space<vmem>>, vector<64x1xf32>
    tpu.vector_store %arg5[%c0_14, %c0_15], %17 {strides = array<i32>} : memref<64x1xf32, #tpu.memory_space<vmem>>, vector<64x1xf32>,
    return
  }
  func.func @transform_0(%arg0: i32) -> (i32, i32) {
    %c0_i32 = arith.constant 0 : i32
    %c0_i32_0 = arith.constant 0 : i32
    return %c0_i32, %arg0 : i32, i32
  }
  func.func @transform_1(%arg0: i32) -> (i32, i32) {
    %c0_i32 = arith.constant 0 : i32
    %c0_i32_0 = arith.constant 0 : i32
    %c0_i32_1 = arith.constant 0 : i32
    return %c0_i32, %c0_i32_0 : i32, i32
  }
  func.func @transform_2(%arg0: i32) -> (i32, i32) {
    %c0_i32 = arith.constant 0 : i32
    %c0_i32_0 = arith.constant 0 : i32
    return %c0_i32, %arg0 : i32, i32
  }
  func.func @transform_3(%arg0: i32) -> (i32, i32) {
    %c0_i32 = arith.constant 0 : i32
    %c0_i32_0 = arith.constant 0 : i32
    %c0_i32_1 = arith.constant 0 : i32
    return %c0_i32, %c0_i32_0 : i32, i32
  }
  func.func @transform_4(%arg0: i32) -> (i32, i32) {
    %c0_i32 = arith.constant 0 : i32
    %c0_i32_0 = arith.constant 0 : i32
    %c0_i32_1 = arith.constant 0 : i32
    return %c0_i32, %c0_i32_0 : i32, i32
  }
}

module attributes {stable_mosaic.version = 11 : i64} {
  func.func @_deconv_stats_kernel(%arg0: i32, %arg1: memref<64x32xbf16, #tpu.memory_space<vmem>>, %arg2: memref<32x64xbf16, #tpu.memory_space<vmem>>, %arg3: memref<32x32xbf16, #tpu.memory_space<vmem>>, %arg4: memref<32x1xf32, #tpu.memory_space<vmem>>, %arg5: memref<32x1xf32, #tpu.memory_space<vmem>>) attributes {dimension_semantics = [#tpu.dimension_semantics<arbitrary>], iteration_bounds = array<i64: 1>, scalar_prefetch = 0 : i64, scratch_operands = 0 : i64, tpu.core_type = #tpu.core_type<tc>, window_params = [{transform_indices = @transform_0, window_bounds = array<i64: 64, 32>}, {pipeline_mode = #tpu.pipeline_mode<synchronous>, transform_indices = @transform_1, window_bounds = array<i64: 32, 64>}, {transform_indices = @transform_2, window_bounds = array<i64: 32, 32>}, {pipeline_mode = #tpu.pipeline_mode<synchronous>, transform_indices = @transform_3, window_bounds = array<i64: 32, 1>}, {pipeline_mode = #tpu.pipeline_mode<synchronous>, transform_indices = @transform_4, window_bounds = array<i64: 32, 1>}]} {
    %c0 = arith.constant 0 : index
    %c0_0 = arith.constant 0 : index
    %0 = vector.load %arg2[%c0, %c0_0] : memref<32x64xbf16, #tpu.memory_space<vmem>>, vector<32x64xbf16>
    %c0_1 = arith.constant 0 : index
    %c0_2 = arith.constant 0 : index
    %1 = vector.load %arg1[%c0_1, %c0_2] : memref<64x32xbf16, #tpu.memory_space<vmem>>, vector<64x32xbf16>
    %cst = arith.constant dense<0.000000e+00> : vector<32x32xf32>
    %2 = tpu.matmul %0, %1, %cst {dimension_numbers = #tpu.dot_dimension_numbers<[1], [0], [0], [1], [0, 0, 1, 1], [], []>} : vector<32x64xbf16>, vector<64x32xbf16>, vector<32x32xf32> -> vector<32x32xf32>
    %3 = arith.truncf %2 : vector<32x32xf32> to vector<32x32xbf16>
    %c0_3 = arith.constant 0 : index
    %c0_4 = arith.constant 0 : index
    %4 = vector.load %arg3[%c0_3, %c0_4] : memref<32x32xbf16, #tpu.memory_space<vmem>>, vector<32x32xbf16>
    tpu.vector_store %arg3[%c0_3, %c0_4], %3 {strides = array<i32>} : memref<32x32xbf16, #tpu.memory_space<vmem>>, vector<32x32xbf16>,
    %c0_i32 = arith.constant 0 : i32
    %5 = arith.cmpi eq, %arg0, %c0_i32 : i32
    %6 = arith.extui %5 : i1 to i32
    %c0_i32_5 = arith.constant 0 : i32
    %7 = arith.cmpi ne, %6, %c0_i32_5 : i32
    scf.if %7 {
      %cst_16 = arith.constant 0.000000e+00 : f32
      %19 = vector.broadcast %cst_16 : f32 to vector<32x1xf32>
      %c0_17 = arith.constant 0 : index
      %c0_18 = arith.constant 0 : index
      %20 = vector.load %arg4[%c0_17, %c0_18] : memref<32x1xf32, #tpu.memory_space<vmem>>, vector<32x1xf32>
      tpu.vector_store %arg4[%c0_17, %c0_18], %19 {strides = array<i32>} : memref<32x1xf32, #tpu.memory_space<vmem>>, vector<32x1xf32>,
      %cst_19 = arith.constant 0.000000e+00 : f32
      %21 = vector.broadcast %cst_19 : f32 to vector<32x1xf32>
      %c0_20 = arith.constant 0 : index
      %c0_21 = arith.constant 0 : index
      %22 = vector.load %arg5[%c0_20, %c0_21] : memref<32x1xf32, #tpu.memory_space<vmem>>, vector<32x1xf32>
      tpu.vector_store %arg5[%c0_20, %c0_21], %21 {strides = array<i32>} : memref<32x1xf32, #tpu.memory_space<vmem>>, vector<32x1xf32>,
    } else {
    }
    %c0_6 = arith.constant 0 : index
    %c0_7 = arith.constant 0 : index
    %8 = vector.load %arg4[%c0_6, %c0_7] : memref<32x1xf32, #tpu.memory_space<vmem>>, vector<32x1xf32>
    %cst_8 = arith.constant dense<0.000000e+00> : vector<32xf32>
    %9 = vector.multi_reduction <add>, %2, %cst_8 [1] : vector<32x32xf32> to vector<32xf32>
    %10 = vector.shape_cast %9 : vector<32xf32> to vector<32x1xf32>
    %11 = arith.addf %8, %10 : vector<32x1xf32>
    %c0_9 = arith.constant 0 : index
    %c0_10 = arith.constant 0 : index
    %12 = vector.load %arg4[%c0_9, %c0_10] : memref<32x1xf32, #tpu.memory_space<vmem>>, vector<32x1xf32>
    tpu.vector_store %arg4[%c0_9, %c0_10], %11 {strides = array<i32>} : memref<32x1xf32, #tpu.memory_space<vmem>>, vector<32x1xf32>,
    %c0_11 = arith.constant 0 : index
    %c0_12 = arith.constant 0 : index
    %13 = vector.load %arg5[%c0_11, %c0_12] : memref<32x1xf32, #tpu.memory_space<vmem>>, vector<32x1xf32>
    %14 = arith.mulf %2, %2 : vector<32x32xf32>
    %cst_13 = arith.constant dense<0.000000e+00> : vector<32xf32>
    %15 = vector.multi_reduction <add>, %14, %cst_13 [1] : vector<32x32xf32> to vector<32xf32>
    %16 = vector.shape_cast %15 : vector<32xf32> to vector<32x1xf32>
    %17 = arith.addf %13, %16 : vector<32x1xf32>
    %c0_14 = arith.constant 0 : index
    %c0_15 = arith.constant 0 : index
    %18 = vector.load %arg5[%c0_14, %c0_15] : memref<32x1xf32, #tpu.memory_space<vmem>>, vector<32x1xf32>
    tpu.vector_store %arg5[%c0_14, %c0_15], %17 {strides = array<i32>} : memref<32x1xf32, #tpu.memory_space<vmem>>, vector<32x1xf32>,
    return
  }
  func.func @transform_0(%arg0: i32) -> (i32, i32) {
    %c0_i32 = arith.constant 0 : i32
    %c0_i32_0 = arith.constant 0 : i32
    return %c0_i32, %arg0 : i32, i32
  }
  func.func @transform_1(%arg0: i32) -> (i32, i32) {
    %c0_i32 = arith.constant 0 : i32
    %c0_i32_0 = arith.constant 0 : i32
    %c0_i32_1 = arith.constant 0 : i32
    return %c0_i32, %c0_i32_0 : i32, i32
  }
  func.func @transform_2(%arg0: i32) -> (i32, i32) {
    %c0_i32 = arith.constant 0 : i32
    %c0_i32_0 = arith.constant 0 : i32
    return %c0_i32, %arg0 : i32, i32
  }
  func.func @transform_3(%arg0: i32) -> (i32, i32) {
    %c0_i32 = arith.constant 0 : i32
    %c0_i32_0 = arith.constant 0 : i32
    %c0_i32_1 = arith.constant 0 : i32
    return %c0_i32, %c0_i32_0 : i32, i32
  }
  func.func @transform_4(%arg0: i32) -> (i32, i32) {
    %c0_i32 = arith.constant 0 : i32
    %c0_i32_0 = arith.constant 0 : i32
    %c0_i32_1 = arith.constant 0 : i32
    return %c0_i32, %c0_i32_0 : i32, i32
  }
}

module attributes {stable_mosaic.version = 11 : i64} {
  func.func @_bn_elu_kernel(%arg0: i32, %arg1: memref<32x32xbf16, #tpu.memory_space<vmem>>, %arg2: memref<32x1xf32, #tpu.memory_space<vmem>>, %arg3: memref<32x1xf32, #tpu.memory_space<vmem>>, %arg4: memref<32x32xbf16, #tpu.memory_space<vmem>>) attributes {dimension_semantics = [#tpu.dimension_semantics<parallel>], iteration_bounds = array<i64: 1>, scalar_prefetch = 0 : i64, scratch_operands = 0 : i64, tpu.core_type = #tpu.core_type<tc>, window_params = [{transform_indices = @transform_0, window_bounds = array<i64: 32, 32>}, {pipeline_mode = #tpu.pipeline_mode<synchronous>, transform_indices = @transform_1, window_bounds = array<i64: 32, 1>}, {pipeline_mode = #tpu.pipeline_mode<synchronous>, transform_indices = @transform_2, window_bounds = array<i64: 32, 1>}, {transform_indices = @transform_3, window_bounds = array<i64: 32, 32>}]} {
    %c0 = arith.constant 0 : index
    %c0_0 = arith.constant 0 : index
    %0 = vector.load %arg1[%c0, %c0_0] : memref<32x32xbf16, #tpu.memory_space<vmem>>, vector<32x32xbf16>
    %1 = arith.extf %0 : vector<32x32xbf16> to vector<32x32xf32>
    %c0_1 = arith.constant 0 : index
    %c0_2 = arith.constant 0 : index
    %2 = vector.load %arg2[%c0_1, %c0_2] : memref<32x1xf32, #tpu.memory_space<vmem>>, vector<32x1xf32>
    %3 = vector.broadcast %2 : vector<32x1xf32> to vector<32x32xf32>
    %4 = arith.mulf %1, %3 : vector<32x32xf32>
    %c0_3 = arith.constant 0 : index
    %c0_4 = arith.constant 0 : index
    %5 = vector.load %arg3[%c0_3, %c0_4] : memref<32x1xf32, #tpu.memory_space<vmem>>, vector<32x1xf32>
    %6 = vector.broadcast %5 : vector<32x1xf32> to vector<32x32xf32>
    %7 = arith.addf %4, %6 : vector<32x32xf32>
    %cst = arith.constant 0.000000e+00 : f32
    %8 = vector.broadcast %cst : f32 to vector<32x32xf32>
    %9 = arith.cmpf ogt, %7, %8 : vector<32x32xf32>
    %cst_5 = arith.constant 0.000000e+00 : f32
    %10 = vector.broadcast %cst_5 : f32 to vector<32x32xf32>
    %11 = arith.minimumf %7, %10 : vector<32x32xf32>
    %12 = math.exp %11 : vector<32x32xf32>
    %cst_6 = arith.constant 1.000000e+00 : f32
    %13 = vector.broadcast %cst_6 : f32 to vector<32x32xf32>
    %14 = arith.subf %12, %13 : vector<32x32xf32>
    %15 = arith.select %9, %7, %14 : vector<32x32xi1>, vector<32x32xf32>
    %16 = arith.truncf %15 : vector<32x32xf32> to vector<32x32xbf16>
    %c0_7 = arith.constant 0 : index
    %c0_8 = arith.constant 0 : index
    %17 = vector.load %arg4[%c0_7, %c0_8] : memref<32x32xbf16, #tpu.memory_space<vmem>>, vector<32x32xbf16>
    tpu.vector_store %arg4[%c0_7, %c0_8], %16 {strides = array<i32>} : memref<32x32xbf16, #tpu.memory_space<vmem>>, vector<32x32xbf16>,
    return
  }
  func.func @transform_0(%arg0: i32) -> (i32, i32) {
    %c0_i32 = arith.constant 0 : i32
    %c0_i32_0 = arith.constant 0 : i32
    return %c0_i32, %arg0 : i32, i32
  }
  func.func @transform_1(%arg0: i32) -> (i32, i32) {
    %c0_i32 = arith.constant 0 : i32
    %c0_i32_0 = arith.constant 0 : i32
    %c0_i32_1 = arith.constant 0 : i32
    return %c0_i32, %c0_i32_0 : i32, i32
  }
  func.func @transform_2(%arg0: i32) -> (i32, i32) {
    %c0_i32 = arith.constant 0 : i32
    %c0_i32_0 = arith.constant 0 : i32
    %c0_i32_1 = arith.constant 0 : i32
    return %c0_i32, %c0_i32_0 : i32, i32
  }
  func.func @transform_3(%arg0: i32) -> (i32, i32) {
    %c0_i32 = arith.constant 0 : i32
    %c0_i32_0 = arith.constant 0 : i32
    return %c0_i32, %arg0 : i32, i32
  }
}

module attributes {stable_mosaic.version = 11 : i64} {
  func.func @_bn_elu_kernel(%arg0: i32, %arg1: memref<64x8xbf16, #tpu.memory_space<vmem>>, %arg2: memref<64x1xf32, #tpu.memory_space<vmem>>, %arg3: memref<64x1xf32, #tpu.memory_space<vmem>>, %arg4: memref<64x8xbf16, #tpu.memory_space<vmem>>) attributes {dimension_semantics = [#tpu.dimension_semantics<parallel>], iteration_bounds = array<i64: 1>, scalar_prefetch = 0 : i64, scratch_operands = 0 : i64, tpu.core_type = #tpu.core_type<tc>, window_params = [{transform_indices = @transform_0, window_bounds = array<i64: 64, 8>}, {pipeline_mode = #tpu.pipeline_mode<synchronous>, transform_indices = @transform_1, window_bounds = array<i64: 64, 1>}, {pipeline_mode = #tpu.pipeline_mode<synchronous>, transform_indices = @transform_2, window_bounds = array<i64: 64, 1>}, {transform_indices = @transform_3, window_bounds = array<i64: 64, 8>}]} {
    %c0 = arith.constant 0 : index
    %c0_0 = arith.constant 0 : index
    %0 = vector.load %arg1[%c0, %c0_0] : memref<64x8xbf16, #tpu.memory_space<vmem>>, vector<64x8xbf16>
    %1 = arith.extf %0 : vector<64x8xbf16> to vector<64x8xf32>
    %c0_1 = arith.constant 0 : index
    %c0_2 = arith.constant 0 : index
    %2 = vector.load %arg2[%c0_1, %c0_2] : memref<64x1xf32, #tpu.memory_space<vmem>>, vector<64x1xf32>
    %3 = vector.broadcast %2 : vector<64x1xf32> to vector<64x8xf32>
    %4 = arith.mulf %1, %3 : vector<64x8xf32>
    %c0_3 = arith.constant 0 : index
    %c0_4 = arith.constant 0 : index
    %5 = vector.load %arg3[%c0_3, %c0_4] : memref<64x1xf32, #tpu.memory_space<vmem>>, vector<64x1xf32>
    %6 = vector.broadcast %5 : vector<64x1xf32> to vector<64x8xf32>
    %7 = arith.addf %4, %6 : vector<64x8xf32>
    %cst = arith.constant 0.000000e+00 : f32
    %8 = vector.broadcast %cst : f32 to vector<64x8xf32>
    %9 = arith.cmpf ogt, %7, %8 : vector<64x8xf32>
    %cst_5 = arith.constant 0.000000e+00 : f32
    %10 = vector.broadcast %cst_5 : f32 to vector<64x8xf32>
    %11 = arith.minimumf %7, %10 : vector<64x8xf32>
    %12 = math.exp %11 : vector<64x8xf32>
    %cst_6 = arith.constant 1.000000e+00 : f32
    %13 = vector.broadcast %cst_6 : f32 to vector<64x8xf32>
    %14 = arith.subf %12, %13 : vector<64x8xf32>
    %15 = arith.select %9, %7, %14 : vector<64x8xi1>, vector<64x8xf32>
    %16 = arith.truncf %15 : vector<64x8xf32> to vector<64x8xbf16>
    %c0_7 = arith.constant 0 : index
    %c0_8 = arith.constant 0 : index
    %17 = vector.load %arg4[%c0_7, %c0_8] : memref<64x8xbf16, #tpu.memory_space<vmem>>, vector<64x8xbf16>
    tpu.vector_store %arg4[%c0_7, %c0_8], %16 {strides = array<i32>} : memref<64x8xbf16, #tpu.memory_space<vmem>>, vector<64x8xbf16>,
    return
  }
  func.func @transform_0(%arg0: i32) -> (i32, i32) {
    %c0_i32 = arith.constant 0 : i32
    %c0_i32_0 = arith.constant 0 : i32
    return %c0_i32, %arg0 : i32, i32
  }
  func.func @transform_1(%arg0: i32) -> (i32, i32) {
    %c0_i32 = arith.constant 0 : i32
    %c0_i32_0 = arith.constant 0 : i32
    %c0_i32_1 = arith.constant 0 : i32
    return %c0_i32, %c0_i32_0 : i32, i32
  }
  func.func @transform_2(%arg0: i32) -> (i32, i32) {
    %c0_i32 = arith.constant 0 : i32
    %c0_i32_0 = arith.constant 0 : i32
    %c0_i32_1 = arith.constant 0 : i32
    return %c0_i32, %c0_i32_0 : i32, i32
  }
  func.func @transform_3(%arg0: i32) -> (i32, i32) {
    %c0_i32 = arith.constant 0 : i32
    %c0_i32_0 = arith.constant 0 : i32
    return %c0_i32, %arg0 : i32, i32
  }
}

module attributes {stable_mosaic.version = 11 : i64} {
  func.func @_deconv_stats_kernel(%arg0: i32, %arg1: memref<32x128xbf16, #tpu.memory_space<vmem>>, %arg2: memref<16x32xbf16, #tpu.memory_space<vmem>>, %arg3: memref<16x128xbf16, #tpu.memory_space<vmem>>, %arg4: memref<16x1xf32, #tpu.memory_space<vmem>>, %arg5: memref<16x1xf32, #tpu.memory_space<vmem>>) attributes {dimension_semantics = [#tpu.dimension_semantics<arbitrary>], iteration_bounds = array<i64: 1>, scalar_prefetch = 0 : i64, scratch_operands = 0 : i64, tpu.core_type = #tpu.core_type<tc>, window_params = [{transform_indices = @transform_0, window_bounds = array<i64: 32, 128>}, {pipeline_mode = #tpu.pipeline_mode<synchronous>, transform_indices = @transform_1, window_bounds = array<i64: 16, 32>}, {transform_indices = @transform_2, window_bounds = array<i64: 16, 128>}, {pipeline_mode = #tpu.pipeline_mode<synchronous>, transform_indices = @transform_3, window_bounds = array<i64: 16, 1>}, {pipeline_mode = #tpu.pipeline_mode<synchronous>, transform_indices = @transform_4, window_bounds = array<i64: 16, 1>}]} {
    %c0 = arith.constant 0 : index
    %c0_0 = arith.constant 0 : index
    %0 = vector.load %arg2[%c0, %c0_0] : memref<16x32xbf16, #tpu.memory_space<vmem>>, vector<16x32xbf16>
    %c0_1 = arith.constant 0 : index
    %c0_2 = arith.constant 0 : index
    %1 = vector.load %arg1[%c0_1, %c0_2] : memref<32x128xbf16, #tpu.memory_space<vmem>>, vector<32x128xbf16>
    %cst = arith.constant dense<0.000000e+00> : vector<16x128xf32>
    %2 = tpu.matmul %0, %1, %cst {dimension_numbers = #tpu.dot_dimension_numbers<[1], [0], [0], [1], [0, 0, 1, 1], [], []>} : vector<16x32xbf16>, vector<32x128xbf16>, vector<16x128xf32> -> vector<16x128xf32>
    %3 = arith.truncf %2 : vector<16x128xf32> to vector<16x128xbf16>
    %c0_3 = arith.constant 0 : index
    %c0_4 = arith.constant 0 : index
    %4 = vector.load %arg3[%c0_3, %c0_4] : memref<16x128xbf16, #tpu.memory_space<vmem>>, vector<16x128xbf16>
    tpu.vector_store %arg3[%c0_3, %c0_4], %3 {strides = array<i32>} : memref<16x128xbf16, #tpu.memory_space<vmem>>, vector<16x128xbf16>,
    %c0_i32 = arith.constant 0 : i32
    %5 = arith.cmpi eq, %arg0, %c0_i32 : i32
    %6 = arith.extui %5 : i1 to i32
    %c0_i32_5 = arith.constant 0 : i32
    %7 = arith.cmpi ne, %6, %c0_i32_5 : i32
    scf.if %7 {
      %cst_16 = arith.constant 0.000000e+00 : f32
      %19 = vector.broadcast %cst_16 : f32 to vector<16x1xf32>
      %c0_17 = arith.constant 0 : index
      %c0_18 = arith.constant 0 : index
      %20 = vector.load %arg4[%c0_17, %c0_18] : memref<16x1xf32, #tpu.memory_space<vmem>>, vector<16x1xf32>
      tpu.vector_store %arg4[%c0_17, %c0_18], %19 {strides = array<i32>} : memref<16x1xf32, #tpu.memory_space<vmem>>, vector<16x1xf32>,
      %cst_19 = arith.constant 0.000000e+00 : f32
      %21 = vector.broadcast %cst_19 : f32 to vector<16x1xf32>
      %c0_20 = arith.constant 0 : index
      %c0_21 = arith.constant 0 : index
      %22 = vector.load %arg5[%c0_20, %c0_21] : memref<16x1xf32, #tpu.memory_space<vmem>>, vector<16x1xf32>
      tpu.vector_store %arg5[%c0_20, %c0_21], %21 {strides = array<i32>} : memref<16x1xf32, #tpu.memory_space<vmem>>, vector<16x1xf32>,
    } else {
    }
    %c0_6 = arith.constant 0 : index
    %c0_7 = arith.constant 0 : index
    %8 = vector.load %arg4[%c0_6, %c0_7] : memref<16x1xf32, #tpu.memory_space<vmem>>, vector<16x1xf32>
    %cst_8 = arith.constant dense<0.000000e+00> : vector<16xf32>
    %9 = vector.multi_reduction <add>, %2, %cst_8 [1] : vector<16x128xf32> to vector<16xf32>
    %10 = vector.shape_cast %9 : vector<16xf32> to vector<16x1xf32>
    %11 = arith.addf %8, %10 : vector<16x1xf32>
    %c0_9 = arith.constant 0 : index
    %c0_10 = arith.constant 0 : index
    %12 = vector.load %arg4[%c0_9, %c0_10] : memref<16x1xf32, #tpu.memory_space<vmem>>, vector<16x1xf32>
    tpu.vector_store %arg4[%c0_9, %c0_10], %11 {strides = array<i32>} : memref<16x1xf32, #tpu.memory_space<vmem>>, vector<16x1xf32>,
    %c0_11 = arith.constant 0 : index
    %c0_12 = arith.constant 0 : index
    %13 = vector.load %arg5[%c0_11, %c0_12] : memref<16x1xf32, #tpu.memory_space<vmem>>, vector<16x1xf32>
    %14 = arith.mulf %2, %2 : vector<16x128xf32>
    %cst_13 = arith.constant dense<0.000000e+00> : vector<16xf32>
    %15 = vector.multi_reduction <add>, %14, %cst_13 [1] : vector<16x128xf32> to vector<16xf32>
    %16 = vector.shape_cast %15 : vector<16xf32> to vector<16x1xf32>
    %17 = arith.addf %13, %16 : vector<16x1xf32>
    %c0_14 = arith.constant 0 : index
    %c0_15 = arith.constant 0 : index
    %18 = vector.load %arg5[%c0_14, %c0_15] : memref<16x1xf32, #tpu.memory_space<vmem>>, vector<16x1xf32>
    tpu.vector_store %arg5[%c0_14, %c0_15], %17 {strides = array<i32>} : memref<16x1xf32, #tpu.memory_space<vmem>>, vector<16x1xf32>,
    return
  }
  func.func @transform_0(%arg0: i32) -> (i32, i32) {
    %c0_i32 = arith.constant 0 : i32
    %c0_i32_0 = arith.constant 0 : i32
    return %c0_i32, %arg0 : i32, i32
  }
  func.func @transform_1(%arg0: i32) -> (i32, i32) {
    %c0_i32 = arith.constant 0 : i32
    %c0_i32_0 = arith.constant 0 : i32
    %c0_i32_1 = arith.constant 0 : i32
    return %c0_i32, %c0_i32_0 : i32, i32
  }
  func.func @transform_2(%arg0: i32) -> (i32, i32) {
    %c0_i32 = arith.constant 0 : i32
    %c0_i32_0 = arith.constant 0 : i32
    return %c0_i32, %arg0 : i32, i32
  }
  func.func @transform_3(%arg0: i32) -> (i32, i32) {
    %c0_i32 = arith.constant 0 : i32
    %c0_i32_0 = arith.constant 0 : i32
    %c0_i32_1 = arith.constant 0 : i32
    return %c0_i32, %c0_i32_0 : i32, i32
  }
  func.func @transform_4(%arg0: i32) -> (i32, i32) {
    %c0_i32 = arith.constant 0 : i32
    %c0_i32_0 = arith.constant 0 : i32
    %c0_i32_1 = arith.constant 0 : i32
    return %c0_i32, %c0_i32_0 : i32, i32
  }
}

module attributes {stable_mosaic.version = 11 : i64} {
  func.func @_bn_elu_kernel(%arg0: i32, %arg1: memref<16x128xbf16, #tpu.memory_space<vmem>>, %arg2: memref<16x1xf32, #tpu.memory_space<vmem>>, %arg3: memref<16x1xf32, #tpu.memory_space<vmem>>, %arg4: memref<16x128xbf16, #tpu.memory_space<vmem>>) attributes {dimension_semantics = [#tpu.dimension_semantics<parallel>], iteration_bounds = array<i64: 1>, scalar_prefetch = 0 : i64, scratch_operands = 0 : i64, tpu.core_type = #tpu.core_type<tc>, window_params = [{transform_indices = @transform_0, window_bounds = array<i64: 16, 128>}, {pipeline_mode = #tpu.pipeline_mode<synchronous>, transform_indices = @transform_1, window_bounds = array<i64: 16, 1>}, {pipeline_mode = #tpu.pipeline_mode<synchronous>, transform_indices = @transform_2, window_bounds = array<i64: 16, 1>}, {transform_indices = @transform_3, window_bounds = array<i64: 16, 128>}]} {
    %c0 = arith.constant 0 : index
    %c0_0 = arith.constant 0 : index
    %0 = vector.load %arg1[%c0, %c0_0] : memref<16x128xbf16, #tpu.memory_space<vmem>>, vector<16x128xbf16>
    %1 = arith.extf %0 : vector<16x128xbf16> to vector<16x128xf32>
    %c0_1 = arith.constant 0 : index
    %c0_2 = arith.constant 0 : index
    %2 = vector.load %arg2[%c0_1, %c0_2] : memref<16x1xf32, #tpu.memory_space<vmem>>, vector<16x1xf32>
    %3 = vector.broadcast %2 : vector<16x1xf32> to vector<16x128xf32>
    %4 = arith.mulf %1, %3 : vector<16x128xf32>
    %c0_3 = arith.constant 0 : index
    %c0_4 = arith.constant 0 : index
    %5 = vector.load %arg3[%c0_3, %c0_4] : memref<16x1xf32, #tpu.memory_space<vmem>>, vector<16x1xf32>
    %6 = vector.broadcast %5 : vector<16x1xf32> to vector<16x128xf32>
    %7 = arith.addf %4, %6 : vector<16x128xf32>
    %cst = arith.constant 0.000000e+00 : f32
    %8 = vector.broadcast %cst : f32 to vector<16x128xf32>
    %9 = arith.cmpf ogt, %7, %8 : vector<16x128xf32>
    %cst_5 = arith.constant 0.000000e+00 : f32
    %10 = vector.broadcast %cst_5 : f32 to vector<16x128xf32>
    %11 = arith.minimumf %7, %10 : vector<16x128xf32>
    %12 = math.exp %11 : vector<16x128xf32>
    %cst_6 = arith.constant 1.000000e+00 : f32
    %13 = vector.broadcast %cst_6 : f32 to vector<16x128xf32>
    %14 = arith.subf %12, %13 : vector<16x128xf32>
    %15 = arith.select %9, %7, %14 : vector<16x128xi1>, vector<16x128xf32>
    %16 = arith.truncf %15 : vector<16x128xf32> to vector<16x128xbf16>
    %c0_7 = arith.constant 0 : index
    %c0_8 = arith.constant 0 : index
    %17 = vector.load %arg4[%c0_7, %c0_8] : memref<16x128xbf16, #tpu.memory_space<vmem>>, vector<16x128xbf16>
    tpu.vector_store %arg4[%c0_7, %c0_8], %16 {strides = array<i32>} : memref<16x128xbf16, #tpu.memory_space<vmem>>, vector<16x128xbf16>,
    return
  }
  func.func @transform_0(%arg0: i32) -> (i32, i32) {
    %c0_i32 = arith.constant 0 : i32
    %c0_i32_0 = arith.constant 0 : i32
    return %c0_i32, %arg0 : i32, i32
  }
  func.func @transform_1(%arg0: i32) -> (i32, i32) {
    %c0_i32 = arith.constant 0 : i32
    %c0_i32_0 = arith.constant 0 : i32
    %c0_i32_1 = arith.constant 0 : i32
    return %c0_i32, %c0_i32_0 : i32, i32
  }
  func.func @transform_2(%arg0: i32) -> (i32, i32) {
    %c0_i32 = arith.constant 0 : i32
    %c0_i32_0 = arith.constant 0 : i32
    %c0_i32_1 = arith.constant 0 : i32
    return %c0_i32, %c0_i32_0 : i32, i32
  }
  func.func @transform_3(%arg0: i32) -> (i32, i32) {
    %c0_i32 = arith.constant 0 : i32
    %c0_i32_0 = arith.constant 0 : i32
    return %c0_i32, %arg0 : i32, i32
  }
}

module attributes {stable_mosaic.version = 11 : i64} {
  func.func @_deconv_stats_kernel(%arg0: i32, %arg1: memref<16x512xbf16, #tpu.memory_space<vmem>>, %arg2: memref<8x16xbf16, #tpu.memory_space<vmem>>, %arg3: memref<8x512xbf16, #tpu.memory_space<vmem>>, %arg4: memref<8x1xf32, #tpu.memory_space<vmem>>, %arg5: memref<8x1xf32, #tpu.memory_space<vmem>>) attributes {dimension_semantics = [#tpu.dimension_semantics<arbitrary>], iteration_bounds = array<i64: 1>, scalar_prefetch = 0 : i64, scratch_operands = 0 : i64, tpu.core_type = #tpu.core_type<tc>, window_params = [{transform_indices = @transform_0, window_bounds = array<i64: 16, 512>}, {pipeline_mode = #tpu.pipeline_mode<synchronous>, transform_indices = @transform_1, window_bounds = array<i64: 8, 16>}, {transform_indices = @transform_2, window_bounds = array<i64: 8, 512>}, {pipeline_mode = #tpu.pipeline_mode<synchronous>, transform_indices = @transform_3, window_bounds = array<i64: 8, 1>}, {pipeline_mode = #tpu.pipeline_mode<synchronous>, transform_indices = @transform_4, window_bounds = array<i64: 8, 1>}]} {
    %c0 = arith.constant 0 : index
    %c0_0 = arith.constant 0 : index
    %0 = vector.load %arg2[%c0, %c0_0] : memref<8x16xbf16, #tpu.memory_space<vmem>>, vector<8x16xbf16>
    %c0_1 = arith.constant 0 : index
    %c0_2 = arith.constant 0 : index
    %1 = vector.load %arg1[%c0_1, %c0_2] : memref<16x512xbf16, #tpu.memory_space<vmem>>, vector<16x512xbf16>
    %cst = arith.constant dense<0.000000e+00> : vector<8x512xf32>
    %2 = tpu.matmul %0, %1, %cst {dimension_numbers = #tpu.dot_dimension_numbers<[1], [0], [0], [1], [0, 0, 1, 1], [], []>} : vector<8x16xbf16>, vector<16x512xbf16>, vector<8x512xf32> -> vector<8x512xf32>
    %3 = arith.truncf %2 : vector<8x512xf32> to vector<8x512xbf16>
    %c0_3 = arith.constant 0 : index
    %c0_4 = arith.constant 0 : index
    %4 = vector.load %arg3[%c0_3, %c0_4] : memref<8x512xbf16, #tpu.memory_space<vmem>>, vector<8x512xbf16>
    tpu.vector_store %arg3[%c0_3, %c0_4], %3 {strides = array<i32>} : memref<8x512xbf16, #tpu.memory_space<vmem>>, vector<8x512xbf16>,
    %c0_i32 = arith.constant 0 : i32
    %5 = arith.cmpi eq, %arg0, %c0_i32 : i32
    %6 = arith.extui %5 : i1 to i32
    %c0_i32_5 = arith.constant 0 : i32
    %7 = arith.cmpi ne, %6, %c0_i32_5 : i32
    scf.if %7 {
      %cst_16 = arith.constant 0.000000e+00 : f32
      %19 = vector.broadcast %cst_16 : f32 to vector<8x1xf32>
      %c0_17 = arith.constant 0 : index
      %c0_18 = arith.constant 0 : index
      %20 = vector.load %arg4[%c0_17, %c0_18] : memref<8x1xf32, #tpu.memory_space<vmem>>, vector<8x1xf32>
      tpu.vector_store %arg4[%c0_17, %c0_18], %19 {strides = array<i32>} : memref<8x1xf32, #tpu.memory_space<vmem>>, vector<8x1xf32>,
      %cst_19 = arith.constant 0.000000e+00 : f32
      %21 = vector.broadcast %cst_19 : f32 to vector<8x1xf32>
      %c0_20 = arith.constant 0 : index
      %c0_21 = arith.constant 0 : index
      %22 = vector.load %arg5[%c0_20, %c0_21] : memref<8x1xf32, #tpu.memory_space<vmem>>, vector<8x1xf32>
      tpu.vector_store %arg5[%c0_20, %c0_21], %21 {strides = array<i32>} : memref<8x1xf32, #tpu.memory_space<vmem>>, vector<8x1xf32>,
    } else {
    }
    %c0_6 = arith.constant 0 : index
    %c0_7 = arith.constant 0 : index
    %8 = vector.load %arg4[%c0_6, %c0_7] : memref<8x1xf32, #tpu.memory_space<vmem>>, vector<8x1xf32>
    %cst_8 = arith.constant dense<0.000000e+00> : vector<8xf32>
    %9 = vector.multi_reduction <add>, %2, %cst_8 [1] : vector<8x512xf32> to vector<8xf32>
    %10 = vector.shape_cast %9 : vector<8xf32> to vector<8x1xf32>
    %11 = arith.addf %8, %10 : vector<8x1xf32>
    %c0_9 = arith.constant 0 : index
    %c0_10 = arith.constant 0 : index
    %12 = vector.load %arg4[%c0_9, %c0_10] : memref<8x1xf32, #tpu.memory_space<vmem>>, vector<8x1xf32>
    tpu.vector_store %arg4[%c0_9, %c0_10], %11 {strides = array<i32>} : memref<8x1xf32, #tpu.memory_space<vmem>>, vector<8x1xf32>,
    %c0_11 = arith.constant 0 : index
    %c0_12 = arith.constant 0 : index
    %13 = vector.load %arg5[%c0_11, %c0_12] : memref<8x1xf32, #tpu.memory_space<vmem>>, vector<8x1xf32>
    %14 = arith.mulf %2, %2 : vector<8x512xf32>
    %cst_13 = arith.constant dense<0.000000e+00> : vector<8xf32>
    %15 = vector.multi_reduction <add>, %14, %cst_13 [1] : vector<8x512xf32> to vector<8xf32>
    %16 = vector.shape_cast %15 : vector<8xf32> to vector<8x1xf32>
    %17 = arith.addf %13, %16 : vector<8x1xf32>
    %c0_14 = arith.constant 0 : index
    %c0_15 = arith.constant 0 : index
    %18 = vector.load %arg5[%c0_14, %c0_15] : memref<8x1xf32, #tpu.memory_space<vmem>>, vector<8x1xf32>
    tpu.vector_store %arg5[%c0_14, %c0_15], %17 {strides = array<i32>} : memref<8x1xf32, #tpu.memory_space<vmem>>, vector<8x1xf32>,
    return
  }
  func.func @transform_0(%arg0: i32) -> (i32, i32) {
    %c0_i32 = arith.constant 0 : i32
    %c0_i32_0 = arith.constant 0 : i32
    return %c0_i32, %arg0 : i32, i32
  }
  func.func @transform_1(%arg0: i32) -> (i32, i32) {
    %c0_i32 = arith.constant 0 : i32
    %c0_i32_0 = arith.constant 0 : i32
    %c0_i32_1 = arith.constant 0 : i32
    return %c0_i32, %c0_i32_0 : i32, i32
  }
  func.func @transform_2(%arg0: i32) -> (i32, i32) {
    %c0_i32 = arith.constant 0 : i32
    %c0_i32_0 = arith.constant 0 : i32
    return %c0_i32, %arg0 : i32, i32
  }
  func.func @transform_3(%arg0: i32) -> (i32, i32) {
    %c0_i32 = arith.constant 0 : i32
    %c0_i32_0 = arith.constant 0 : i32
    %c0_i32_1 = arith.constant 0 : i32
    return %c0_i32, %c0_i32_0 : i32, i32
  }
  func.func @transform_4(%arg0: i32) -> (i32, i32) {
    %c0_i32 = arith.constant 0 : i32
    %c0_i32_0 = arith.constant 0 : i32
    %c0_i32_1 = arith.constant 0 : i32
    return %c0_i32, %c0_i32_0 : i32, i32
  }
}

module attributes {stable_mosaic.version = 11 : i64} {
  func.func @_bn_elu_kernel(%arg0: i32, %arg1: memref<8x512xbf16, #tpu.memory_space<vmem>>, %arg2: memref<8x1xf32, #tpu.memory_space<vmem>>, %arg3: memref<8x1xf32, #tpu.memory_space<vmem>>, %arg4: memref<8x512xbf16, #tpu.memory_space<vmem>>) attributes {dimension_semantics = [#tpu.dimension_semantics<parallel>], iteration_bounds = array<i64: 1>, scalar_prefetch = 0 : i64, scratch_operands = 0 : i64, tpu.core_type = #tpu.core_type<tc>, window_params = [{transform_indices = @transform_0, window_bounds = array<i64: 8, 512>}, {pipeline_mode = #tpu.pipeline_mode<synchronous>, transform_indices = @transform_1, window_bounds = array<i64: 8, 1>}, {pipeline_mode = #tpu.pipeline_mode<synchronous>, transform_indices = @transform_2, window_bounds = array<i64: 8, 1>}, {transform_indices = @transform_3, window_bounds = array<i64: 8, 512>}]} {
    %c0 = arith.constant 0 : index
    %c0_0 = arith.constant 0 : index
    %0 = vector.load %arg1[%c0, %c0_0] : memref<8x512xbf16, #tpu.memory_space<vmem>>, vector<8x512xbf16>
    %1 = arith.extf %0 : vector<8x512xbf16> to vector<8x512xf32>
    %c0_1 = arith.constant 0 : index
    %c0_2 = arith.constant 0 : index
    %2 = vector.load %arg2[%c0_1, %c0_2] : memref<8x1xf32, #tpu.memory_space<vmem>>, vector<8x1xf32>
    %3 = vector.broadcast %2 : vector<8x1xf32> to vector<8x512xf32>
    %4 = arith.mulf %1, %3 : vector<8x512xf32>
    %c0_3 = arith.constant 0 : index
    %c0_4 = arith.constant 0 : index
    %5 = vector.load %arg3[%c0_3, %c0_4] : memref<8x1xf32, #tpu.memory_space<vmem>>, vector<8x1xf32>
    %6 = vector.broadcast %5 : vector<8x1xf32> to vector<8x512xf32>
    %7 = arith.addf %4, %6 : vector<8x512xf32>
    %cst = arith.constant 0.000000e+00 : f32
    %8 = vector.broadcast %cst : f32 to vector<8x512xf32>
    %9 = arith.cmpf ogt, %7, %8 : vector<8x512xf32>
    %cst_5 = arith.constant 0.000000e+00 : f32
    %10 = vector.broadcast %cst_5 : f32 to vector<8x512xf32>
    %11 = arith.minimumf %7, %10 : vector<8x512xf32>
    %12 = math.exp %11 : vector<8x512xf32>
    %cst_6 = arith.constant 1.000000e+00 : f32
    %13 = vector.broadcast %cst_6 : f32 to vector<8x512xf32>
    %14 = arith.subf %12, %13 : vector<8x512xf32>
    %15 = arith.select %9, %7, %14 : vector<8x512xi1>, vector<8x512xf32>
    %16 = arith.truncf %15 : vector<8x512xf32> to vector<8x512xbf16>
    %c0_7 = arith.constant 0 : index
    %c0_8 = arith.constant 0 : index
    %17 = vector.load %arg4[%c0_7, %c0_8] : memref<8x512xbf16, #tpu.memory_space<vmem>>, vector<8x512xbf16>
    tpu.vector_store %arg4[%c0_7, %c0_8], %16 {strides = array<i32>} : memref<8x512xbf16, #tpu.memory_space<vmem>>, vector<8x512xbf16>,
    return
  }
  func.func @transform_0(%arg0: i32) -> (i32, i32) {
    %c0_i32 = arith.constant 0 : i32
    %c0_i32_0 = arith.constant 0 : i32
    return %c0_i32, %arg0 : i32, i32
  }
  func.func @transform_1(%arg0: i32) -> (i32, i32) {
    %c0_i32 = arith.constant 0 : i32
    %c0_i32_0 = arith.constant 0 : i32
    %c0_i32_1 = arith.constant 0 : i32
    return %c0_i32, %c0_i32_0 : i32, i32
  }
  func.func @transform_2(%arg0: i32) -> (i32, i32) {
    %c0_i32 = arith.constant 0 : i32
    %c0_i32_0 = arith.constant 0 : i32
    %c0_i32_1 = arith.constant 0 : i32
    return %c0_i32, %c0_i32_0 : i32, i32
  }
  func.func @transform_3(%arg0: i32) -> (i32, i32) {
    %c0_i32 = arith.constant 0 : i32
    %c0_i32_0 = arith.constant 0 : i32
    return %c0_i32, %arg0 : i32, i32
  }
}

module attributes {stable_mosaic.version = 11 : i64} {
  func.func @_deconv_sigmoid_kernel(%arg0: i32, %arg1: memref<8x2048xbf16, #tpu.memory_space<vmem>>, %arg2: memref<12x8xbf16, #tpu.memory_space<vmem>>, %arg3: memref<12x1xf32, #tpu.memory_space<vmem>>, %arg4: memref<12x2048xf32, #tpu.memory_space<vmem>>) attributes {dimension_semantics = [#tpu.dimension_semantics<parallel>], iteration_bounds = array<i64: 1>, scalar_prefetch = 0 : i64, scratch_operands = 0 : i64, tpu.core_type = #tpu.core_type<tc>, window_params = [{transform_indices = @transform_0, window_bounds = array<i64: 8, 2048>}, {pipeline_mode = #tpu.pipeline_mode<synchronous>, transform_indices = @transform_1, window_bounds = array<i64: 12, 8>}, {pipeline_mode = #tpu.pipeline_mode<synchronous>, transform_indices = @transform_2, window_bounds = array<i64: 12, 1>}, {transform_indices = @transform_3, window_bounds = array<i64: 12, 2048>}]} {
    %c0 = arith.constant 0 : index
    %c0_0 = arith.constant 0 : index
    %0 = vector.load %arg2[%c0, %c0_0] : memref<12x8xbf16, #tpu.memory_space<vmem>>, vector<12x8xbf16>
    %c0_1 = arith.constant 0 : index
    %c0_2 = arith.constant 0 : index
    %1 = vector.load %arg1[%c0_1, %c0_2] : memref<8x2048xbf16, #tpu.memory_space<vmem>>, vector<8x2048xbf16>
    %cst = arith.constant dense<0.000000e+00> : vector<12x2048xf32>
    %2 = tpu.matmul %0, %1, %cst {dimension_numbers = #tpu.dot_dimension_numbers<[1], [0], [0], [1], [0, 0, 1, 1], [], []>} : vector<12x8xbf16>, vector<8x2048xbf16>, vector<12x2048xf32> -> vector<12x2048xf32>
    %c0_3 = arith.constant 0 : index
    %c0_4 = arith.constant 0 : index
    %3 = vector.load %arg3[%c0_3, %c0_4] : memref<12x1xf32, #tpu.memory_space<vmem>>, vector<12x1xf32>
    %4 = vector.broadcast %3 : vector<12x1xf32> to vector<12x2048xf32>
    %5 = arith.addf %2, %4 : vector<12x2048xf32>
    %cst_5 = arith.constant 0.000000e+00 : f32
    %6 = vector.broadcast %cst_5 : f32 to vector<12x2048xf32>
    %7 = arith.subf %6, %5 : vector<12x2048xf32>
    %cst_6 = arith.constant -3.000000e+01 : f32
    %cst_7 = arith.constant 3.000000e+01 : f32
    %8 = vector.broadcast %cst_6 : f32 to vector<12x2048xf32>
    %9 = arith.maximumf %8, %7 : vector<12x2048xf32>
    %10 = vector.broadcast %cst_7 : f32 to vector<12x2048xf32>
    %11 = arith.minimumf %10, %9 : vector<12x2048xf32>
    %12 = math.exp %11 : vector<12x2048xf32>
    %cst_8 = arith.constant 1.000000e+00 : f32
    %13 = vector.broadcast %cst_8 : f32 to vector<12x2048xf32>
    %14 = arith.addf %13, %12 : vector<12x2048xf32>
    %15 = tpu.reciprocal %14 {approx = true} : vector<12x2048xf32> -> vector<12x2048xf32>
    %cst_9 = arith.constant 0.000000e+00 : f32
    %cst_10 = arith.constant 1.000000e+00 : f32
    %16 = vector.broadcast %cst_9 : f32 to vector<12x2048xf32>
    %17 = arith.maximumf %16, %15 : vector<12x2048xf32>
    %18 = vector.broadcast %cst_10 : f32 to vector<12x2048xf32>
    %19 = arith.minimumf %18, %17 : vector<12x2048xf32>
    %c0_11 = arith.constant 0 : index
    %c0_12 = arith.constant 0 : index
    %20 = vector.load %arg4[%c0_11, %c0_12] : memref<12x2048xf32, #tpu.memory_space<vmem>>, vector<12x2048xf32>
    tpu.vector_store %arg4[%c0_11, %c0_12], %19 {strides = array<i32>} : memref<12x2048xf32, #tpu.memory_space<vmem>>, vector<12x2048xf32>,
    return
  }
  func.func @transform_0(%arg0: i32) -> (i32, i32) {
    %c0_i32 = arith.constant 0 : i32
    %c0_i32_0 = arith.constant 0 : i32
    return %c0_i32, %arg0 : i32, i32
  }
  func.func @transform_1(%arg0: i32) -> (i32, i32) {
    %c0_i32 = arith.constant 0 : i32
    %c0_i32_0 = arith.constant 0 : i32
    %c0_i32_1 = arith.constant 0 : i32
    return %c0_i32, %c0_i32_0 : i32, i32
  }
  func.func @transform_2(%arg0: i32) -> (i32, i32) {
    %c0_i32 = arith.constant 0 : i32
    %c0_i32_0 = arith.constant 0 : i32
    %c0_i32_1 = arith.constant 0 : i32
    return %c0_i32, %c0_i32_0 : i32, i32
  }
  func.func @transform_3(%arg0: i32) -> (i32, i32) {
    %c0_i32 = arith.constant 0 : i32
    %c0_i32_0 = arith.constant 0 : i32
    return %c0_i32, %arg0 : i32, i32
  }
}

</mosaic_0001>

<llo_original>
// kernel: tile.88
$region0: #{tile.88}
  #allocation2 [shape = 's32[1]{0}', space=sflag, size = 0x4, scoped, tag = 'scoped memory for tile.88']
  %s0 = inlined_call_operand.hbm [shape: f32[3], index: 0, kind: input, shape index: {}]
  %s1 = inlined_call_operand.vmem [shape: f32[4,3], index: 1, kind: output, shape index: {}]
  $region1: #{tile.88} parent=0
    #allocation0 [shape = 'u8[512]{0}', space=vmem, size = 0x400, scoped, tag = 'operand span for operand 0']
    #allocation1 [shape = 's32[1]{0}', space=sflag, size = 0x4, scoped, tag = 'scoped memory for tile.88']
    %2 = vsyncpa [#allocation1], 0
    // Predicated region
    $region2: #{tile.88} parent=1 // pred_check
      _
    $region3: #{tile.88} parent=1 // pred_check_branch
      %4 = sbr.rel (0) target = $region5
    $region4: #{tile.88} parent=1 // pred_region
      %s6 = ssub.s32 16, 16
      %7 = vsyncadd [#allocation1], %s6
      %s9 = sshll.u32 [#allocation0], 4
      %s10 = int_to_ptr.vmem [resolvable:$true] %s9
      %12 = dma.hbm_to_vmem [thread:$0]  %s0, 16, %s10, [#allocation1]
    $region5: #{tile.88} parent=1 // pred_fallthru
      _
    // Predicated region
    $region6: #{tile.88} parent=1 // pred_check
      _
    $region7: #{tile.88} parent=1 // pred_check_branch
      %14 = sbr.rel (0) target = $region9
    $region8: #{tile.88} parent=1 // pred_region
      %15 = dma.done [#allocation1], 16
    $region9: #{tile.88} parent=1 // pred_fallthru
      _
    %v16 = vld [vmem:[#allocation0] ss:$0 sm:$0xff]
    %17 = vst [vmem:[%s1] sm:$0xf] %v16
    %18 = vsyncpa [#allocation1], 1

// kernel: tile.8
$region0: #{tile.8}
  %s0 = inlined_call_operand.vmem [shape: f32[4,3], index: 0, kind: input, shape index: {}]
  %s1 = inlined_call_operand.vmem [shape: f32[12,1], index: 1, kind: output, shape index: {}]
  $region1: #{tile.8} parent=0
    #allocation0 [shape = 'u8[4096]{0}', space=vmem, size = 0x1000, scoped, tag = 'scoped mem for input reshape']
    %s3 = sshllo.u32 0, 4
    %v4 = vld [vmem:[%s0] sm:%s3]
    %5 = vst [vmem:[#allocation0] sm:%s3] %v4
    %v6 = vld [vmem:[#allocation0] sm:$0xf]
    %vm7 = vcmask 7168
    %8 = vst.msk [vmem:[%s1] ss:$3 sm:$0xf] %vm7, %v6
    %v9 = vld [vmem:[#allocation0] sm:$0xf]
    %10 = vrot.lane.b32.xlu0 %v9, 127
    %v11 = vpop.permute.xlu0 %10
    %vm12 = vcmask 7168
    %s13 = scalar_lea.vmem %s1, 1
    %14 = vst.msk [vmem:[%s13] ss:$3 sm:$0xf] %vm12, %v11
    %v15 = vld [vmem:[#allocation0] sm:$0xf]
    %16 = vrot.lane.b32.xlu0 %v15, 126
    %v17 = vpop.permute.xlu0 %16
    %vm18 = vcmask 7168
    %s19 = scalar_lea.vmem %s1, 2
    %20 = vst.msk [vmem:[%s19] ss:$3 sm:$0xf] %vm18, %v17

// kernel: decoder_forward.11
$region0: #{decoder_forward.11}
  #allocation0 [shape = 'u32[]', space=smem, size = 0x4, offset = 0x4, fixed_abs, tag = 'smem constant byte address 0x4 - core index']
  #allocation1 [shape = 'u32[144,128]{1,0:T(1,128)}', space=vmem, size = 0x12000, scoped, tag = 'internal scratch']
  %s0 = inlined_call_operand.vmem [shape: bf16[2,16], index: 0, kind: input, shape index: {}]
  %s1 = inlined_call_operand.vmem [shape: bf16[16,1000], index: 1, kind: input, shape index: {}]
  %s2 = inlined_call_operand.hbm [shape: f32[1,1000], index: 2, kind: input, shape index: {}]
  %s3 = inlined_call_operand.hbm [shape: f32[1,1000], index: 3, kind: input, shape index: {}]
  %s4 = inlined_call_operand.vmem [shape: bf16[2,1000], index: 4, kind: output, shape index: {}]
  %s5 = sld [smem:[#allocation0]]
  $region34: #{decoder_forward.11} parent=0
    _
  %s7 = ssub.s32 1, %s5
  %s8 = scalar_select 0, %s7, %s5
  $region1: #{decoder_forward.11} parent=0
    #allocation2 [shape = 'u8[4096]{0}', space=vmem, size = 0x1000, scoped, tag = 'input window, operand 2, single buffered']
    #allocation3 [shape = 's32[1]{0}', space=sflag, size = 0x4, scoped, tag = 'scoped memory for decoder_forward.11']
    #allocation4 [shape = 'u8[4096]{0}', space=vmem, size = 0x1000, scoped, tag = 'input window, operand 3, single buffered']
    #allocation5 [shape = 's32[1]{0}', space=sflag, size = 0x4, scoped, tag = 'scoped memory for decoder_forward.11']
    %9 = vsyncpa [#allocation3], 0
    %10 = vsyncpa [#allocation5], 0
    // Predicated region
    $region2: #{decoder_forward.11} parent=1 // pred_check
      _
    $region3: #{decoder_forward.11} parent=1 // pred_check_branch
      %12 = sbr.rel (0) target = $region5
    $region4: #{decoder_forward.11} parent=1 // pred_region
      _
    $region5: #{decoder_forward.11} parent=1 // pred_fallthru
      _
    // Predicated region
    $region6: #{decoder_forward.11} parent=1 // pred_check
      _
    $region7: #{decoder_forward.11} parent=1 // pred_check_branch
      %14 = sbr.rel (0) target = $region9
    $region8: #{decoder_forward.11} parent=1 // pred_region
      _
    $region9: #{decoder_forward.11} parent=1 // pred_fallthru
      _
    // Predicated region
    $region10: #{decoder_forward.11} parent=1 // pred_check
      _
    $region11: #{decoder_forward.11} parent=1 // pred_check_branch
      %16 = sbr.rel (0) target = $region13
    $region12: #{decoder_forward.11} parent=1 // pred_region
      %s18 = ssub.s32 128, 128
      %19 = vsyncadd [#allocation3], %s18
      %s21 = sshll.u32 [#allocation2], 4
      %s22 = int_to_ptr.vmem [resolvable:$true] %s21
      %24 = dma.hbm_to_vmem [thread:$0]  %s2, 128, %s22, [#allocation3]
    $region13: #{decoder_forward.11} parent=1 // pred_fallthru
      _
    // Predicated region
    $region14: #{decoder_forward.11} parent=1 // pred_check
      _
    $region15: #{decoder_forward.11} parent=1 // pred_check_branch
      %26 = sbr.rel (0) target = $region17
    $region16: #{decoder_forward.11} parent=1 // pred_region
      %s28 = ssub.s32 128, 128
      %29 = vsyncadd [#allocation5], %s28
      %s31 = sshll.u32 [#allocation4], 4
      %s32 = int_to_ptr.vmem [resolvable:$true] %s31
      %34 = dma.hbm_to_vmem [thread:$0]  %s3, 128, %s32, [#allocation5]
    $region17: #{decoder_forward.11} parent=1 // pred_fallthru
      _
    // Predicated region
    $region18: #{decoder_forward.11} parent=1 // pred_check
      _
    $region19: #{decoder_forward.11} parent=1 // pred_check_branch
      %36 = sbr.rel (0) target = $region21
    $region20: #{decoder_forward.11} parent=1 // pred_region
      %37 = dma.done [#allocation3], 128
    $region21: #{decoder_forward.11} parent=1 // pred_fallthru
      _
    // Predicated region
    $region22: #{decoder_forward.11} parent=1 // pred_check
      _
    $region23: #{decoder_forward.11} parent=1 // pred_check_branch
      %39 = sbr.rel (0) target = $region25
    $region24: #{decoder_forward.11} parent=1 // pred_region
      %40 = dma.done [#allocation5], 128
    $region25: #{decoder_forward.11} parent=1 // pred_fallthru
      _
    %v42 = vld [vmem:[%s0] sm:$0x1]
    %v43 = vld [vmem:[%s1] sm:$0xff]
    %v44 = vld [vmem:[%s1 + $0x8] sm:$0xff]
    %v45 = vld [vmem:[%s1 + $0x10] sm:$0xff]
    %v46 = vld [vmem:[%s1 + $0x18] sm:$0xff]
    %v47 = vld [vmem:[%s1 + $0x20] sm:$0xff]
    %v48 = vld [vmem:[%s1 + $0x28] sm:$0xff]
    %v49 = vld [vmem:[%s1 + $0x30] sm:$0xff]
    %v50 = vld [vmem:[%s1 + $0x38] sm:$0xff]
    %v59 = vunpack.c.l.b16 %v43
    %v60 = vunpack.c.h.b16 %v43
    %v61 = vunpack.c.l.b16 %v44
    %v62 = vunpack.c.h.b16 %v44
    %v63 = vunpack.c.l.b16 %v45
    %v64 = vunpack.c.h.b16 %v45
    %v65 = vunpack.c.l.b16 %v46
    %v66 = vunpack.c.h.b16 %v46
    %v67 = vunpack.c.l.b16 %v47
    %v68 = vunpack.c.h.b16 %v47
    %v69 = vunpack.c.l.b16 %v48
    %v70 = vunpack.c.h.b16 %v48
    %v71 = vunpack.c.l.b16 %v49
    %v72 = vunpack.c.h.b16 %v49
    %v73 = vunpack.c.l.b16 %v50
    %v74 = vunpack.c.h.b16 %v50
    %v75 = vpack.c.b16 %v67, %v59
    %v76 = vpack.c.b16 %v68, %v60
    %v77 = vpack.c.b16 %v69, %v61
    %v78 = vpack.c.b16 %v70, %v62
    %v79 = vpack.c.b16 %v71, %v63
    %v80 = vpack.c.b16 %v72, %v64
    %v81 = vpack.c.b16 %v73, %v65
    %v82 = vpack.c.b16 %v74, %v66
    %vm91 = vcmask 130048
    %v93 = vsel %vm91, %v42, 0
    %95 = vmatprep.subr.bf16.mxu0 %v76
    %96 = vmatpush1.bf16.msra.mxu0 %v75
    %97 = vmatprep.subr.bf16.mxu0 0
    %98 = vmatpush1.bf16.msra.mxu0 0
    %99 = vmatprep.subr.bf16.mxu0 0
    %100 = vmatpush1.bf16.msra.mxu0 0
    %101 = vmatprep.subr.bf16.mxu0 0
    %102 = vmatpush1.bf16.msra.mxu0 0
    %103 = vmatprep.subr.bf16.mxu0 0
    %104 = vmatpush1.bf16.msra.mxu0 0
    %105 = vmatprep.subr.bf16.mxu0 0
    %106 = vmatpush1.bf16.msra.mxu0 0
    %107 = vmatprep.subr.bf16.mxu0 0
    %108 = vmatpush1.bf16.msra.mxu0 0
    %109 = vmatprep.subr.bf16.mxu0 0
    %110 = vmatpush1.bf16.msra.mxu0 0
    %111 = vmatprep.subr.bf16.mxu0 0
    %112 = vmatpush1.bf16.msra.mxu0 0
    %113 = vmatprep.subr.bf16.mxu0 0
    %114 = vmatpush1.bf16.msra.mxu0 0
    %115 = vmatprep.subr.bf16.mxu0 0
    %116 = vmatpush1.bf16.msra.mxu0 0
    %117 = vmatprep.subr.bf16.mxu0 0
    %118 = vmatpush1.bf16.msra.mxu0 0
    %119 = vmatprep.subr.bf16.mxu0 0
    %120 = vmatpush1.bf16.msra.mxu0 0
    %121 = vmatprep.subr.bf16.mxu0 0
    %122 = vmatpush1.bf16.msra.mxu0 0
    %123 = vmatprep.subr.bf16.mxu0 0
    %124 = vmatpush1.bf16.msra.mxu0 0
    %125 = vmatprep.subr.bf16.mxu0 0
    %126 = vmatpush1.bf16.msra.mxu0 0
    %127 = vmatprep.mubr.bf16.mxu0 0
    %128 = vmatmul.mubr.bf16.gmra.mrb[0].mxu0 %v93
    %v129 = vpop.f32.mrb[0].mxu0
    %v130 = vadd.f32 0.0, %v129
    %v131 = vpop.f32.mrb[0].mxu0
    %v132 = vadd.f32 0.0, %v131
    %v133 = vpop.f32.mrb[0].mxu0
    %v134 = vpop.f32.mrb[0].mxu0
    %135 = vdwg.mxu0
    %136 = vmatprep.subr.bf16.mxu0 %v78
    %137 = vmatpush1.bf16.msra.mxu0 %v77
    %138 = vmatprep.subr.bf16.mxu0 0
    %139 = vmatpush1.bf16.msra.mxu0 0
    %140 = vmatprep.subr.bf16.mxu0 0
    %141 = vmatpush1.bf16.msra.mxu0 0
    %142 = vmatprep.subr.bf16.mxu0 0
    %143 = vmatpush1.bf16.msra.mxu0 0
    %144 = vmatprep.subr.bf16.mxu0 0
    %145 = vmatpush1.bf16.msra.mxu0 0
    %146 = vmatprep.subr.bf16.mxu0 0
    %147 = vmatpush1.bf16.msra.mxu0 0
    %148 = vmatprep.subr.bf16.mxu0 0
    %149 = vmatpush1.bf16.msra.mxu0 0
    %150 = vmatprep.subr.bf16.mxu0 0
    %151 = vmatpush1.bf16.msra.mxu0 0
    %152 = vmatprep.subr.bf16.mxu0 0
    %153 = vmatpush1.bf16.msra.mxu0 0
    %154 = vmatprep.subr.bf16.mxu0 0
    %155 = vmatpush1.bf16.msra.mxu0 0
    %156 = vmatprep.subr.bf16.mxu0 0
    %157 = vmatpush1.bf16.msra.mxu0 0
    %158 = vmatprep.subr.bf16.mxu0 0
    %159 = vmatpush1.bf16.msra.mxu0 0
    %160 = vmatprep.subr.bf16.mxu0 0
    %161 = vmatpush1.bf16.msra.mxu0 0
    %162 = vmatprep.subr.bf16.mxu0 0
    %163 = vmatpush1.bf16.msra.mxu0 0
    %164 = vmatprep.subr.bf16.mxu0 0
    %165 = vmatpush1.bf16.msra.mxu0 0
    %166 = vmatprep.subr.bf16.mxu0 0
    %167 = vmatpush1.bf16.msra.mxu0 0
    %168 = vmatprep.mubr.bf16.mxu0 0
    %169 = vmatmul.mubr.bf16.gmra.mrb[0].mxu0 %v93
    %v170 = vpop.f32.mrb[0].mxu0
    %v171 = vadd.f32 0.0, %v170
    %v172 = vpop.f32.mrb[0].mxu0
    %v173 = vadd.f32 0.0, %v172
    %v174 = vpop.f32.mrb[0].mxu0
    %v175 = vpop.f32.mrb[0].mxu0
    %176 = vdwg.mxu0
    %177 = vmatprep.subr.bf16.mxu0 %v80
    %178 = vmatpush1.bf16.msra.mxu0 %v79
    %179 = vmatprep.subr.bf16.mxu0 0
    %180 = vmatpush1.bf16.msra.mxu0 0
    %181 = vmatprep.subr.bf16.mxu0 0
    %182 = vmatpush1.bf16.msra.mxu0 0
    %183 = vmatprep.subr.bf16.mxu0 0
    %184 = vmatpush1.bf16.msra.mxu0 0
    %185 = vmatprep.subr.bf16.mxu0 0
    %186 = vmatpush1.bf16.msra.mxu0 0
    %187 = vmatprep.subr.bf16.mxu0 0
    %188 = vmatpush1.bf16.msra.mxu0 0
    %189 = vmatprep.subr.bf16.mxu0 0
    %190 = vmatpush1.bf16.msra.mxu0 0
    %191 = vmatprep.subr.bf16.mxu0 0
    %192 = vmatpush1.bf16.msra.mxu0 0
    %193 = vmatprep.subr.bf16.mxu0 0
    %194 = vmatpush1.bf16.msra.mxu0 0
    %195 = vmatprep.subr.bf16.mxu0 0
    %196 = vmatpush1.bf16.msra.mxu0 0
    %197 = vmatprep.subr.bf16.mxu0 0
    %198 = vmatpush1.bf16.msra.mxu0 0
    %199 = vmatprep.subr.bf16.mxu0 0
    %200 = vmatpush1.bf16.msra.mxu0 0
    %201 = vmatprep.subr.bf16.mxu0 0
    %202 = vmatpush1.bf16.msra.mxu0 0
    %203 = vmatprep.subr.bf16.mxu0 0
    %204 = vmatpush1.bf16.msra.mxu0 0
    %205 = vmatprep.subr.bf16.mxu0 0
    %206 = vmatpush1.bf16.msra.mxu0 0
    %207 = vmatprep.subr.bf16.mxu0 0
    %208 = vmatpush1.bf16.msra.mxu0 0
    %209 = vmatprep.mubr.bf16.mxu0 0
    %210 = vmatmul.mubr.bf16.gmra.mrb[0].mxu0 %v93
    %v211 = vpop.f32.mrb[0].mxu0
    %v212 = vadd.f32 0.0, %v211
    %v213 = vpop.f32.mrb[0].mxu0
    %v214 = vadd.f32 0.0, %v213
    %v215 = vpop.f32.mrb[0].mxu0
    %v216 = vpop.f32.mrb[0].mxu0
    %217 = vdwg.mxu0
    %218 = vmatprep.subr.bf16.mxu0 %v82
    %219 = vmatpush1.bf16.msra.mxu0 %v81
    %220 = vmatprep.subr.bf16.mxu0 0
    %221 = vmatpush1.bf16.msra.mxu0 0
    %222 = vmatprep.subr.bf16.mxu0 0
    %223 = vmatpush1.bf16.msra.mxu0 0
    %224 = vmatprep.subr.bf16.mxu0 0
    %225 = vmatpush1.bf16.msra.mxu0 0
    %226 = vmatprep.subr.bf16.mxu0 0
    %227 = vmatpush1.bf16.msra.mxu0 0
    %228 = vmatprep.subr.bf16.mxu0 0
    %229 = vmatpush1.bf16.msra.mxu0 0
    %230 = vmatprep.subr.bf16.mxu0 0
    %231 = vmatpush1.bf16.msra.mxu0 0
    %232 = vmatprep.subr.bf16.mxu0 0
    %233 = vmatpush1.bf16.msra.mxu0 0
    %234 = vmatprep.subr.bf16.mxu0 0
    %235 = vmatpush1.bf16.msra.mxu0 0
    %236 = vmatprep.subr.bf16.mxu0 0
    %237 = vmatpush1.bf16.msra.mxu0 0
    %238 = vmatprep.subr.bf16.mxu0 0
    %239 = vmatpush1.bf16.msra.mxu0 0
    %240 = vmatprep.subr.bf16.mxu0 0
    %241 = vmatpush1.bf16.msra.mxu0 0
    %242 = vmatprep.subr.bf16.mxu0 0
    %243 = vmatpush1.bf16.msra.mxu0 0
    %244 = vmatprep.subr.bf16.mxu0 0
    %245 = vmatpush1.bf16.msra.mxu0 0
    %246 = vmatprep.subr.bf16.mxu0 0
    %247 = vmatpush1.bf16.msra.mxu0 0
    %248 = vmatprep.subr.bf16.mxu0 0
    %249 = vmatpush1.bf16.msra.mxu0 0
    %250 = vmatprep.mubr.bf16.mxu0 0
    %251 = vmatmul.mubr.bf16.gmra.mrb[0].mxu0 %v93
    %v252 = vpop.f32.mrb[0].mxu0
    %v253 = vadd.f32 0.0, %v252
    %v254 = vpop.f32.mrb[0].mxu0
    %v255 = vadd.f32 0.0, %v254
    %v256 = vpop.f32.mrb[0].mxu0
    %v257 = vpop.f32.mrb[0].mxu0
    %258 = vdwg.mxu0
    %vm259 = vcmask 1041408
    %v260 = vsel %vm259, %v130, 0.0
    %v261 = vrot.slane %v260, 4
    %v262 = vadd.f32 %v260, %v261
    %v263 = vrot.slane %v262, 2
    %v264 = vadd.f32 %v262, %v263
    %v265 = vrot.slane %v264, 1
    %v266 = vadd.f32 %v264, %v265
    %v267 = vsel %vm259, %v132, 0.0
    %v268 = vrot.slane %v267, 4
    %v269 = vadd.f32 %v267, %v268
    %v270 = vrot.slane %v269, 2
    %v271 = vadd.f32 %v269, %v270
    %v272 = vrot.slane %v271, 1
    %v273 = vadd.f32 %v271, %v272
    %v274 = vsel %vm259, %v171, 0.0
    %v275 = vrot.slane %v274, 4
    %v276 = vadd.f32 %v274, %v275
    %v277 = vrot.slane %v276, 2
    %v278 = vadd.f32 %v276, %v277
    %v279 = vrot.slane %v278, 1
    %v280 = vadd.f32 %v278, %v279
    %v281 = vsel %vm259, %v173, 0.0
    %v282 = vrot.slane %v281, 4
    %v283 = vadd.f32 %v281, %v282
    %v284 = vrot.slane %v283, 2
    %v285 = vadd.f32 %v283, %v284
    %v286 = vrot.slane %v285, 1
    %v287 = vadd.f32 %v285, %v286
    %v288 = vsel %vm259, %v212, 0.0
    %v289 = vrot.slane %v288, 4
    %v290 = vadd.f32 %v288, %v289
    %v291 = vrot.slane %v290, 2
    %v292 = vadd.f32 %v290, %v291
    %v293 = vrot.slane %v292, 1
    %v294 = vadd.f32 %v292, %v293
    %v295 = vsel %vm259, %v214, 0.0
    %v296 = vrot.slane %v295, 4
    %v297 = vadd.f32 %v295, %v296
    %v298 = vrot.slane %v297, 2
    %v299 = vadd.f32 %v297, %v298
    %v300 = vrot.slane %v299, 1
    %v301 = vadd.f32 %v299, %v300
    %v302 = vsel %vm259, %v253, 0.0
    %v303 = vrot.slane %v302, 4
    %v304 = vadd.f32 %v302, %v303
    %v305 = vrot.slane %v304, 2
    %v306 = vadd.f32 %v304, %v305
    %v307 = vrot.slane %v306, 1
    %v308 = vadd.f32 %v306, %v307
    %vm309 = vcmask 844800
    %v310 = vsel %vm309, %v255, 0.0
    %v311 = vrot.slane %v310, 4
    %v312 = vadd.f32 %v310, %v311
    %v313 = vrot.slane %v312, 2
    %v314 = vadd.f32 %v312, %v313
    %v315 = vrot.slane %v314, 1
    %v316 = vadd.f32 %v314, %v315
    %v317 = vrcp.pop 2.0
    %v318 = vmul.f32 %v266, %v317
    %v319 = vmul.f32 %v273, %v317
    %v320 = vmul.f32 %v280, %v317
    %v321 = vmul.f32 %v287, %v317
    %v322 = vmul.f32 %v294, %v317
    %v323 = vmul.f32 %v301, %v317
    %v324 = vmul.f32 %v308, %v317
    %v325 = vmul.f32 %v316, %v317
    %v326 = vsub.f32 %v130, %v318
    %v327 = vsub.f32 %v132, %v319
    %v328 = vsub.f32 %v171, %v320
    %v329 = vsub.f32 %v173, %v321
    %v330 = vsub.f32 %v212, %v322
    %v331 = vsub.f32 %v214, %v323
    %v332 = vsub.f32 %v253, %v324
    %v333 = vsub.f32 %v255, %v325
    %v334 = vmul.f32 %v326, %v326
    %v335 = vmul.f32 %v327, %v327
    %v336 = vmul.f32 %v328, %v328
    %v337 = vmul.f32 %v329, %v329
    %v338 = vmul.f32 %v330, %v330
    %v339 = vmul.f32 %v331, %v331
    %v340 = vmul.f32 %v332, %v332
    %v341 = vmul.f32 %v333, %v333
    %v342 = vsel %vm259, %v334, 0.0
    %v343 = vrot.slane %v342, 4
    %v344 = vadd.f32 %v342, %v343
    %v345 = vrot.slane %v344, 2
    %v346 = vadd.f32 %v344, %v345
    %v347 = vrot.slane %v346, 1
    %v348 = vadd.f32 %v346, %v347
    %v349 = vsel %vm259, %v335, 0.0
    %v350 = vrot.slane %v349, 4
    %v351 = vadd.f32 %v349, %v350
    %v352 = vrot.slane %v351, 2
    %v353 = vadd.f32 %v351, %v352
    %v354 = vrot.slane %v353, 1
    %v355 = vadd.f32 %v353, %v354
    %v356 = vsel %vm259, %v336, 0.0
    %v357 = vrot.slane %v356, 4
    %v358 = vadd.f32 %v356, %v357
    %v359 = vrot.slane %v358, 2
    %v360 = vadd.f32 %v358, %v359
    %v361 = vrot.slane %v360, 1
    %v362 = vadd.f32 %v360, %v361
    %v363 = vsel %vm259, %v337, 0.0
    %v364 = vrot.slane %v363, 4
    %v365 = vadd.f32 %v363, %v364
    %v366 = vrot.slane %v365, 2
    %v367 = vadd.f32 %v365, %v366
    %v368 = vrot.slane %v367, 1
    %v369 = vadd.f32 %v367, %v368
    %v370 = vsel %vm259, %v338, 0.0
    %v371 = vrot.slane %v370, 4
    %v372 = vadd.f32 %v370, %v371
    %v373 = vrot.slane %v372, 2
    %v374 = vadd.f32 %v372, %v373
    %v375 = vrot.slane %v374, 1
    %v376 = vadd.f32 %v374, %v375
    %v377 = vsel %vm259, %v339, 0.0
    %v378 = vrot.slane %v377, 4
    %v379 = vadd.f32 %v377, %v378
    %v380 = vrot.slane %v379, 2
    %v381 = vadd.f32 %v379, %v380
    %v382 = vrot.slane %v381, 1
    %v383 = vadd.f32 %v381, %v382
    %v384 = vsel %vm259, %v340, 0.0
    %v385 = vrot.slane %v384, 4
    %v386 = vadd.f32 %v384, %v385
    %v387 = vrot.slane %v386, 2
    %v388 = vadd.f32 %v386, %v387
    %v389 = vrot.slane %v388, 1
    %v390 = vadd.f32 %v388, %v389
    %v391 = vsel %vm309, %v341, 0.0
    %v392 = vrot.slane %v391, 4
    %v393 = vadd.f32 %v391, %v392
    %v394 = vrot.slane %v393, 2
    %v395 = vadd.f32 %v393, %v394
    %v396 = vrot.slane %v395, 1
    %v397 = vadd.f32 %v395, %v396
    %v398 = vmul.f32 %v348, %v317
    %v399 = vmul.f32 %v355, %v317
    %v400 = vmul.f32 %v362, %v317
    %v401 = vmul.f32 %v369, %v317
    %v402 = vmul.f32 %v376, %v317
    %v403 = vmul.f32 %v383, %v317
    %v404 = vmul.f32 %v390, %v317
    %v405 = vmul.f32 %v397, %v317
    %v406 = vld [vmem:[#allocation2] sm:$0xff]
    %v407 = vadd.f32 %v398, 1e-05
    %v408 = vadd.f32 %v399, 1e-05
    %v409 = vadd.f32 %v400, 1e-05
    %v410 = vadd.f32 %v401, 1e-05
    %v411 = vadd.f32 %v402, 1e-05
    %v412 = vadd.f32 %v403, 1e-05
    %v413 = vadd.f32 %v404, 1e-05
    %v414 = vadd.f32 %v405, 1e-05
    %v415 = vrsqrt.pop %v407
    %v416 = vrsqrt.pop %v408
    %v417 = vrsqrt.pop %v409
    %v418 = vrsqrt.pop %v410
    %v419 = vrsqrt.pop %v411
    %v420 = vrsqrt.pop %v412
    %v421 = vrsqrt.pop %v413
    %v422 = vrsqrt.pop %v414
    %v431 = vcombine.low %v415, %v416
    %v432 = vcombine.low %v417, %v418
    %v433 = vcombine.low %v419, %v420
    %v434 = vcombine.low %v421, %v422
    %v436 = vunpack.c.l.s4 1966171168
    %v437 = vunpack.c.0.s8 %v436
    %v438 = vlaneseq
    %v439 = vshrl.u32 %v438, 7
    %v440 = vsub.s32 %v437, %v439
    %v441 = vrot.slane %v431, %v440
    %v443 = vunpack.c.l.s4 1966171168
    %v444 = vunpack.c.0.s8 %v443
    %v445 = vlaneseq
    %v446 = vshrl.u32 %v445, 7
    %v447 = vsub.s32 %v444, %v446
    %v448 = vrot.slane %v432, %v447
    %v450 = vunpack.c.l.s4 1966171168
    %v451 = vunpack.c.0.s8 %v450
    %v452 = vlaneseq
    %v453 = vshrl.u32 %v452, 7
    %v454 = vsub.s32 %v451, %v453
    %v455 = vrot.slane %v433, %v454
    %v457 = vunpack.c.l.s4 1966171168
    %v458 = vunpack.c.0.s8 %v457
    %v459 = vlaneseq
    %v460 = vshrl.u32 %v459, 7
    %v461 = vsub.s32 %v458, %v460
    %v462 = vrot.slane %v434, %v461
    %v463 = vcombine.low %v441, %v448
    %v464 = vcombine.low %v455, %v462
    %v466 = vunpack.c.l.s4 1966171168
    %v467 = vunpack.c.0.s8 %v466
    %v468 = vlaneseq
    %v469 = vshrl.u32 %v468, 7
    %v470 = vsub.s32 %v467, %v469
    %v471 = vrot.slane %v463, %v470
    %v473 = vunpack.c.l.s4 1966171168
    %v474 = vunpack.c.0.s8 %v473
    %v475 = vlaneseq
    %v476 = vshrl.u32 %v475, 7
    %v477 = vsub.s32 %v474, %v476
    %v478 = vrot.slane %v464, %v477
    %v479 = vcombine.low %v471, %v478
    %v481 = vmul.f32 %v406, %v479
    %v483 = vlaneseq
    %v484 = vshrl.u32 %v483, 7
    %v485 = vsub.s32 0, %v484
    %v486 = vrot.slane %v481, %v485
    %v487 = vlaneseq
    %v488 = vshrl.u32 %v487, 7
    %v489 = vsub.s32 1, %v488
    %v490 = vrot.slane %v481, %v489
    %v491 = vlaneseq
    %v492 = vshrl.u32 %v491, 7
    %v493 = vsub.s32 2, %v492
    %v494 = vrot.slane %v481, %v493
    %v495 = vlaneseq
    %v496 = vshrl.u32 %v495, 7
    %v497 = vsub.s32 3, %v496
    %v498 = vrot.slane %v481, %v497
    %v499 = vlaneseq
    %v500 = vshrl.u32 %v499, 7
    %v501 = vsub.s32 4, %v500
    %v502 = vrot.slane %v481, %v501
    %v503 = vlaneseq
    %v504 = vshrl.u32 %v503, 7
    %v505 = vsub.s32 5, %v504
    %v506 = vrot.slane %v481, %v505
    %v507 = vlaneseq
    %v508 = vshrl.u32 %v507, 7
    %v509 = vsub.s32 6, %v508
    %v510 = vrot.slane %v481, %v509
    %v511 = vlaneseq
    %v512 = vshrl.u32 %v511, 7
    %v513 = vsub.s32 7, %v512
    %v514 = vrot.slane %v481, %v513
    %v523 = vmul.f32 %v326, %v486
    %v524 = vmul.f32 %v327, %v490
    %v525 = vmul.f32 %v328, %v494
    %v526 = vmul.f32 %v329, %v498
    %v527 = vmul.f32 %v330, %v502
    %v528 = vmul.f32 %v331, %v506
    %v529 = vmul.f32 %v332, %v510
    %v530 = vmul.f32 %v333, %v514
    %v531 = vld [vmem:[#allocation4] sm:$0xff]
    %v533 = vlaneseq
    %v534 = vshrl.u32 %v533, 7
    %v535 = vsub.s32 0, %v534
    %v536 = vrot.slane %v531, %v535
    %v537 = vlaneseq
    %v538 = vshrl.u32 %v537, 7
    %v539 = vsub.s32 1, %v538
    %v540 = vrot.slane %v531, %v539
    %v541 = vlaneseq
    %v542 = vshrl.u32 %v541, 7
    %v543 = vsub.s32 2, %v542
    %v544 = vrot.slane %v531, %v543
    %v545 = vlaneseq
    %v546 = vshrl.u32 %v545, 7
    %v547 = vsub.s32 3, %v546
    %v548 = vrot.slane %v531, %v547
    %v549 = vlaneseq
    %v550 = vshrl.u32 %v549, 7
    %v551 = vsub.s32 4, %v550
    %v552 = vrot.slane %v531, %v551
    %v553 = vlaneseq
    %v554 = vshrl.u32 %v553, 7
    %v555 = vsub.s32 5, %v554
    %v556 = vrot.slane %v531, %v555
    %v557 = vlaneseq
    %v558 = vshrl.u32 %v557, 7
    %v559 = vsub.s32 6, %v558
    %v560 = vrot.slane %v531, %v559
    %v561 = vlaneseq
    %v562 = vshrl.u32 %v561, 7
    %v563 = vsub.s32 7, %v562
    %v564 = vrot.slane %v531, %v563
    %v573 = vadd.f32 %v523, %v536
    %v574 = vadd.f32 %v524, %v540
    %v575 = vadd.f32 %v525, %v544
    %v576 = vadd.f32 %v526, %v548
    %v577 = vadd.f32 %v527, %v552
    %v578 = vadd.f32 %v528, %v556
    %v579 = vadd.f32 %v529, %v560
    %v580 = vadd.f32 %v530, %v564
    %vm581 = vcmp.gt.f32.partialorder %v573, 0.0
    %vm582 = vcmp.gt.f32.partialorder %v574, 0.0
    %vm583 = vcmp.gt.f32.partialorder %v575, 0.0
    %vm584 = vcmp.gt.f32.partialorder %v576, 0.0
    %vm585 = vcmp.gt.f32.partialorder %v577, 0.0
    %vm586 = vcmp.gt.f32.partialorder %v578, 0.0
    %vm587 = vcmp.gt.f32.partialorder %v579, 0.0
    %vm588 = vcmp.gt.f32.partialorder %v580, 0.0
    %v589 = vmin.f32 %v573, 0.0
    %v590 = vmin.f32 %v574, 0.0
    %v591 = vmin.f32 %v575, 0.0
    %v592 = vmin.f32 %v576, 0.0
    %v593 = vmin.f32 %v577, 0.0
    %v594 = vmin.f32 %v578, 0.0
    %v595 = vmin.f32 %v579, 0.0
    %v596 = vmin.f32 %v580, 0.0
    %v597 = vmul.f32 %v589, 1.442695
    %v598 = vpow.pop %v597
    %v599 = vmul.f32 %v590, 1.442695
    %v600 = vpow.pop %v599
    %v601 = vmul.f32 %v591, 1.442695
    %v602 = vpow.pop %v601
    %v603 = vmul.f32 %v592, 1.442695
    %v604 = vpow.pop %v603
    %v605 = vmul.f32 %v593, 1.442695
    %v606 = vpow.pop %v605
    %v607 = vmul.f32 %v594, 1.442695
    %v608 = vpow.pop %v607
    %v609 = vmul.f32 %v595, 1.442695
    %v610 = vpow.pop %v609
    %v611 = vmul.f32 %v596, 1.442695
    %v612 = vpow.pop %v611
    %v613 = vsub.f32 %v598, 1.0
    %v614 = vsub.f32 %v600, 1.0
    %v615 = vsub.f32 %v602, 1.0
    %v616 = vsub.f32 %v604, 1.0
    %v617 = vsub.f32 %v606, 1.0
    %v618 = vsub.f32 %v608, 1.0
    %v619 = vsub.f32 %v610, 1.0
    %v620 = vsub.f32 %v612, 1.0
    %v621 = vsel %vm581, %v573, %v613
    %v622 = vsel %vm582, %v574, %v614
    %v623 = vsel %vm583, %v575, %v615
    %v624 = vsel %vm584, %v576, %v616
    %v625 = vsel %vm585, %v577, %v617
    %v626 = vsel %vm586, %v578, %v618
    %v627 = vsel %vm587, %v579, %v619
    %v628 = vsel %vm588, %v580, %v620
    %v629 = vpack.c.bf16 %v621, %v621
    %v630 = vpack.c.bf16 %v622, %v622
    %v631 = vpack.c.bf16 %v623, %v623
    %v632 = vpack.c.bf16 %v624, %v624
    %v633 = vpack.c.bf16 %v625, %v625
    %v634 = vpack.c.bf16 %v626, %v626
    %v635 = vpack.c.bf16 %v627, %v627
    %v636 = vpack.c.bf16 %v628, %v628
    %v645 = vcombine.low %v629, %v630
    %v646 = vcombine.low %v631, %v632
    %v647 = vcombine.low %v633, %v634
    %v648 = vcombine.low %v635, %v636
    %v650 = vunpack.c.l.s4 1966171168
    %v651 = vunpack.c.0.s8 %v650
    %v652 = vlaneseq
    %v653 = vshrl.u32 %v652, 7
    %v654 = vsub.s32 %v651, %v653
    %v655 = vrot.slane %v645, %v654
    %v657 = vunpack.c.l.s4 1966171168
    %v658 = vunpack.c.0.s8 %v657
    %v659 = vlaneseq
    %v660 = vshrl.u32 %v659, 7
    %v661 = vsub.s32 %v658, %v660
    %v662 = vrot.slane %v646, %v661
    %v664 = vunpack.c.l.s4 1966171168
    %v665 = vunpack.c.0.s8 %v664
    %v666 = vlaneseq
    %v667 = vshrl.u32 %v666, 7
    %v668 = vsub.s32 %v665, %v667
    %v669 = vrot.slane %v647, %v668
    %v671 = vunpack.c.l.s4 1966171168
    %v672 = vunpack.c.0.s8 %v671
    %v673 = vlaneseq
    %v674 = vshrl.u32 %v673, 7
    %v675 = vsub.s32 %v672, %v674
    %v676 = vrot.slane %v648, %v675
    %v677 = vcombine.low %v655, %v662
    %v678 = vcombine.low %v669, %v676
    %v680 = vunpack.c.l.s4 1966171168
    %v681 = vunpack.c.0.s8 %v680
    %v682 = vlaneseq
    %v683 = vshrl.u32 %v682, 7
    %v684 = vsub.s32 %v681, %v683
    %v685 = vrot.slane %v677, %v684
    %v687 = vunpack.c.l.s4 1966171168
    %v688 = vunpack.c.0.s8 %v687
    %v689 = vlaneseq
    %v690 = vshrl.u32 %v689, 7
    %v691 = vsub.s32 %v688, %v690
    %v692 = vrot.slane %v678, %v691
    %v693 = vcombine.low %v685, %v692
    %vm695 = vcmask 1040384
    %vm696 = vcmask 1041409
    %vm697 = vmor %vm696, %vm695
    %vm698 = vcmask 1042434
    %vm699 = vmor %vm698, %vm697
    %vm700 = vcmask 1043459
    %vm701 = vmor %vm700, %vm699
    %vm702 = vcmask 1044484
    %vm703 = vmor %vm702, %vm701
    %vm704 = vcmask 1045509
    %vm705 = vmor %vm704, %vm703
    %vm706 = vcmask 1046534
    %vm707 = vmor %vm706, %vm705
    %vm708 = vcmask 850951
    %vm709 = vmor %vm708, %vm707
    %710 = vst.msk [vmem:[%s4] sm:$0xff] %vm709, %v693
    // Predicated region
    $region26: #{decoder_forward.11} parent=1 // pred_check
      _
    $region27: #{decoder_forward.11} parent=1 // pred_check_branch
      %712 = sbr.rel (0) target = $region29
    $region28: #{decoder_forward.11} parent=1 // pred_region
      _
    $region29: #{decoder_forward.11} parent=1 // pred_fallthru
      _
    // Predicated region
    $region30: #{decoder_forward.11} parent=1 // pred_check
      _
    $region31: #{decoder_forward.11} parent=1 // pred_check_branch
      %714 = sbr.rel (0) target = $region33
    $region32: #{decoder_forward.11} parent=1 // pred_region
      _
    $region33: #{decoder_forward.11} parent=1 // pred_fallthru
      _
    %715 = vsyncpa [#allocation3], 1
    %716 = vsyncpa [#allocation5], 1

// kernel: decoder_forward.12
$region0: #{decoder_forward.12}
  #allocation0 [shape = 'u32[]', space=smem, size = 0x4, offset = 0x4, fixed_abs, tag = 'smem constant byte address 0x4 - core index']
  #allocation1 [shape = 'u32[144,128]{1,0:T(1,128)}', space=vmem, size = 0x12000, scoped, tag = 'internal scratch']
  %s0 = inlined_call_operand.vmem [shape: bf16[2,1000], index: 0, kind: input, shape index: {}]
  %s1 = inlined_call_operand.vmem [shape: bf16[1000,128], index: 1, kind: input, shape index: {}]
  %s2 = inlined_call_operand.hbm [shape: f32[1,128], index: 2, kind: input, shape index: {}]
  %s3 = inlined_call_operand.hbm [shape: f32[1,128], index: 3, kind: input, shape index: {}]
  %s4 = inlined_call_operand.vmem [shape: bf16[2,128], index: 4, kind: output, shape index: {}]
  %s5 = sld [smem:[#allocation0]]
  $region34: #{decoder_forward.12} parent=0
    _
  %s7 = ssub.s32 1, %s5
  %s8 = scalar_select 0, %s7, %s5
  $region1: #{decoder_forward.12} parent=0
    #allocation2 [shape = 'u8[512]{0}', space=vmem, size = 0x400, scoped, tag = 'input window, operand 2, single buffered']
    #allocation3 [shape = 's32[1]{0}', space=sflag, size = 0x4, scoped, tag = 'scoped memory for decoder_forward.12']
    #allocation4 [shape = 'u8[512]{0}', space=vmem, size = 0x400, scoped, tag = 'input window, operand 3, single buffered']
    #allocation5 [shape = 's32[1]{0}', space=sflag, size = 0x4, scoped, tag = 'scoped memory for decoder_forward.12']
    %9 = vsyncpa [#allocation3], 0
    %10 = vsyncpa [#allocation5], 0
    // Predicated region
    $region2: #{decoder_forward.12} parent=1 // pred_check
      _
    $region3: #{decoder_forward.12} parent=1 // pred_check_branch
      %12 = sbr.rel (0) target = $region5
    $region4: #{decoder_forward.12} parent=1 // pred_region
      _
    $region5: #{decoder_forward.12} parent=1 // pred_fallthru
      _
    // Predicated region
    $region6: #{decoder_forward.12} parent=1 // pred_check
      _
    $region7: #{decoder_forward.12} parent=1 // pred_check_branch
      %14 = sbr.rel (0) target = $region9
    $region8: #{decoder_forward.12} parent=1 // pred_region
      _
    $region9: #{decoder_forward.12} parent=1 // pred_fallthru
      _
    // Predicated region
    $region10: #{decoder_forward.12} parent=1 // pred_check
      _
    $region11: #{decoder_forward.12} parent=1 // pred_check_branch
      %16 = sbr.rel (0) target = $region13
    $region12: #{decoder_forward.12} parent=1 // pred_region
      %s18 = ssub.s32 16, 16
      %19 = vsyncadd [#allocation3], %s18
      %s21 = sshll.u32 [#allocation2], 4
      %s22 = int_to_ptr.vmem [resolvable:$true] %s21
      %24 = dma.hbm_to_vmem [thread:$0]  %s2, 16, %s22, [#allocation3]
    $region13: #{decoder_forward.12} parent=1 // pred_fallthru
      _
    // Predicated region
    $region14: #{decoder_forward.12} parent=1 // pred_check
      _
    $region15: #{decoder_forward.12} parent=1 // pred_check_branch
      %26 = sbr.rel (0) target = $region17
    $region16: #{decoder_forward.12} parent=1 // pred_region
      %s28 = ssub.s32 16, 16
      %29 = vsyncadd [#allocation5], %s28
      %s31 = sshll.u32 [#allocation4], 4
      %s32 = int_to_ptr.vmem [resolvable:$true] %s31
      %34 = dma.hbm_to_vmem [thread:$0]  %s3, 16, %s32, [#allocation5]
    $region17: #{decoder_forward.12} parent=1 // pred_fallthru
      _
    // Predicated region
    $region18: #{decoder_forward.12} parent=1 // pred_check
      _
    $region19: #{decoder_forward.12} parent=1 // pred_check_branch
      %36 = sbr.rel (0) target = $region21
    $region20: #{decoder_forward.12} parent=1 // pred_region
      %37 = dma.done [#allocation3], 16
    $region21: #{decoder_forward.12} parent=1 // pred_fallthru
      _
    // Predicated region
    $region22: #{decoder_forward.12} parent=1 // pred_check
      _
    $region23: #{decoder_forward.12} parent=1 // pred_check_branch
      %39 = sbr.rel (0) target = $region25
    $region24: #{decoder_forward.12} parent=1 // pred_region
      %40 = dma.done [#allocation5], 16
    $region25: #{decoder_forward.12} parent=1 // pred_fallthru
      _
    %v42 = vld [vmem:[%s0] sm:$0xff]
    %v43 = vld [vmem:[%s1] sm:$0xf]
    %v44 = vld [vmem:[%s1 + $0x4] sm:$0xf]
    %v45 = vld [vmem:[%s1 + $0x8] sm:$0xf]
    %v46 = vld [vmem:[%s1 + $0xc] sm:$0xf]
    %v47 = vld [vmem:[%s1 + $0x10] sm:$0xf]
    %v48 = vld [vmem:[%s1 + $0x14] sm:$0xf]
    %v49 = vld [vmem:[%s1 + $0x18] sm:$0xf]
    %v50 = vld [vmem:[%s1 + $0x1c] sm:$0xf]
    %v51 = vld [vmem:[%s1 + $0x20] sm:$0xf]
    %v52 = vld [vmem:[%s1 + $0x24] sm:$0xf]
    %v53 = vld [vmem:[%s1 + $0x28] sm:$0xf]
    %v54 = vld [vmem:[%s1 + $0x2c] sm:$0xf]
    %v55 = vld [vmem:[%s1 + $0x30] sm:$0xf]
    %v56 = vld [vmem:[%s1 + $0x34] sm:$0xf]
    %v57 = vld [vmem:[%s1 + $0x38] sm:$0xf]
    %v58 = vld [vmem:[%s1 + $0x3c] sm:$0xf]
    %v59 = vld [vmem:[%s1 + $0x40] sm:$0xf]
    %v60 = vld [vmem:[%s1 + $0x44] sm:$0xf]
    %v61 = vld [vmem:[%s1 + $0x48] sm:$0xf]
    %v62 = vld [vmem:[%s1 + $0x4c] sm:$0xf]
    %v63 = vld [vmem:[%s1 + $0x50] sm:$0xf]
    %v64 = vld [vmem:[%s1 + $0x54] sm:$0xf]
    %v65 = vld [vmem:[%s1 + $0x58] sm:$0xf]
    %v66 = vld [vmem:[%s1 + $0x5c] sm:$0xf]
    %v67 = vld [vmem:[%s1 + $0x60] sm:$0xf]
    %v68 = vld [vmem:[%s1 + $0x64] sm:$0xf]
    %v69 = vld [vmem:[%s1 + $0x68] sm:$0xf]
    %v70 = vld [vmem:[%s1 + $0x6c] sm:$0xf]
    %v71 = vld [vmem:[%s1 + $0x70] sm:$0xf]
    %v72 = vld [vmem:[%s1 + $0x74] sm:$0xf]
    %v73 = vld [vmem:[%s1 + $0x78] sm:$0xf]
    %v74 = vld [vmem:[%s1 + $0x7c] sm:$0xf]
    %v75 = vld [vmem:[%s1 + $0x80] sm:$0xf]
    %v76 = vld [vmem:[%s1 + $0x84] sm:$0xf]
    %v77 = vld [vmem:[%s1 + $0x88] sm:$0xf]
    %v78 = vld [vmem:[%s1 + $0x8c] sm:$0xf]
    %v79 = vld [vmem:[%s1 + $0x90] sm:$0xf]
    %v80 = vld [vmem:[%s1 + $0x94] sm:$0xf]
    %v81 = vld [vmem:[%s1 + $0x98] sm:$0xf]
    %v82 = vld [vmem:[%s1 + $0x9c] sm:$0xf]
    %v83 = vld [vmem:[%s1 + $0xa0] sm:$0xf]
    %v84 = vld [vmem:[%s1 + $0xa4] sm:$0xf]
    %v85 = vld [vmem:[%s1 + $0xa8] sm:$0xf]
    %v86 = vld [vmem:[%s1 + $0xac] sm:$0xf]
    %v87 = vld [vmem:[%s1 + $0xb0] sm:$0xf]
    %v88 = vld [vmem:[%s1 + $0xb4] sm:$0xf]
    %v89 = vld [vmem:[%s1 + $0xb8] sm:$0xf]
    %v90 = vld [vmem:[%s1 + $0xbc] sm:$0xf]
    %v91 = vld [vmem:[%s1 + $0xc0] sm:$0xf]
    %v92 = vld [vmem:[%s1 + $0xc4] sm:$0xf]
    %v93 = vld [vmem:[%s1 + $0xc8] sm:$0xf]
    %v94 = vld [vmem:[%s1 + $0xcc] sm:$0xf]
    %v95 = vld [vmem:[%s1 + $0xd0] sm:$0xf]
    %v96 = vld [vmem:[%s1 + $0xd4] sm:$0xf]
    %v97 = vld [vmem:[%s1 + $0xd8] sm:$0xf]
    %v98 = vld [vmem:[%s1 + $0xdc] sm:$0xf]
    %v99 = vld [vmem:[%s1 + $0xe0] sm:$0xf]
    %v100 = vld [vmem:[%s1 + $0xe4] sm:$0xf]
    %v101 = vld [vmem:[%s1 + $0xe8] sm:$0xf]
    %v102 = vld [vmem:[%s1 + $0xec] sm:$0xf]
    %v103 = vld [vmem:[%s1 + $0xf0] sm:$0xf]
    %v104 = vld [vmem:[%s1 + $0xf4] sm:$0xf]
    %v105 = vld [vmem:[%s1 + $0xf8] sm:$0xf]
    %v106 = vld [vmem:[%s1 + $0xfc] sm:$0xf]
    %v107 = vld [vmem:[%s1 + $0x100] sm:$0xf]
    %v108 = vld [vmem:[%s1 + $0x104] sm:$0xf]
    %v109 = vld [vmem:[%s1 + $0x108] sm:$0xf]
    %v110 = vld [vmem:[%s1 + $0x10c] sm:$0xf]
    %v111 = vld [vmem:[%s1 + $0x110] sm:$0xf]
    %v112 = vld [vmem:[%s1 + $0x114] sm:$0xf]
    %v113 = vld [vmem:[%s1 + $0x118] sm:$0xf]
    %v114 = vld [vmem:[%s1 + $0x11c] sm:$0xf]
    %v115 = vld [vmem:[%s1 + $0x120] sm:$0xf]
    %v116 = vld [vmem:[%s1 + $0x124] sm:$0xf]
    %v117 = vld [vmem:[%s1 + $0x128] sm:$0xf]
    %v118 = vld [vmem:[%s1 + $0x12c] sm:$0xf]
    %v119 = vld [vmem:[%s1 + $0x130] sm:$0xf]
    %v120 = vld [vmem:[%s1 + $0x134] sm:$0xf]
    %v121 = vld [vmem:[%s1 + $0x138] sm:$0xf]
    %v122 = vld [vmem:[%s1 + $0x13c] sm:$0xf]
    %v123 = vld [vmem:[%s1 + $0x140] sm:$0xf]
    %v124 = vld [vmem:[%s1 + $0x144] sm:$0xf]
    %v125 = vld [vmem:[%s1 + $0x148] sm:$0xf]
    %v126 = vld [vmem:[%s1 + $0x14c] sm:$0xf]
    %v127 = vld [vmem:[%s1 + $0x150] sm:$0xf]
    %v128 = vld [vmem:[%s1 + $0x154] sm:$0xf]
    %v129 = vld [vmem:[%s1 + $0x158] sm:$0xf]
    %v130 = vld [vmem:[%s1 + $0x15c] sm:$0xf]
    %v131 = vld [vmem:[%s1 + $0x160] sm:$0xf]
    %v132 = vld [vmem:[%s1 + $0x164] sm:$0xf]
    %v133 = vld [vmem:[%s1 + $0x168] sm:$0xf]
    %v134 = vld [vmem:[%s1 + $0x16c] sm:$0xf]
    %v135 = vld [vmem:[%s1 + $0x170] sm:$0xf]
    %v136 = vld [vmem:[%s1 + $0x174] sm:$0xf]
    %v137 = vld [vmem:[%s1 + $0x178] sm:$0xf]
    %v138 = vld [vmem:[%s1 + $0x17c] sm:$0xf]
    %v139 = vld [vmem:[%s1 + $0x180] sm:$0xf]
    %v140 = vld [vmem:[%s1 + $0x184] sm:$0xf]
    %v141 = vld [vmem:[%s1 + $0x188] sm:$0xf]
    %v142 = vld [vmem:[%s1 + $0x18c] sm:$0xf]
    %v143 = vld [vmem:[%s1 + $0x190] sm:$0xf]
    %v144 = vld [vmem:[%s1 + $0x194] sm:$0xf]
    %v145 = vld [vmem:[%s1 + $0x198] sm:$0xf]
    %v146 = vld [vmem:[%s1 + $0x19c] sm:$0xf]
    %v147 = vld [vmem:[%s1 + $0x1a0] sm:$0xf]
    %v148 = vld [vmem:[%s1 + $0x1a4] sm:$0xf]
    %v149 = vld [vmem:[%s1 + $0x1a8] sm:$0xf]
    %v150 = vld [vmem:[%s1 + $0x1ac] sm:$0xf]
    %v151 = vld [vmem:[%s1 + $0x1b0] sm:$0xf]
    %v152 = vld [vmem:[%s1 + $0x1b4] sm:$0xf]
    %v153 = vld [vmem:[%s1 + $0x1b8] sm:$0xf]
    %v154 = vld [vmem:[%s1 + $0x1bc] sm:$0xf]
    %v155 = vld [vmem:[%s1 + $0x1c0] sm:$0xf]
    %v156 = vld [vmem:[%s1 + $0x1c4] sm:$0xf]
    %v157 = vld [vmem:[%s1 + $0x1c8] sm:$0xf]
    %v158 = vld [vmem:[%s1 + $0x1cc] sm:$0xf]
    %v159 = vld [vmem:[%s1 + $0x1d0] sm:$0xf]
    %v160 = vld [vmem:[%s1 + $0x1d4] sm:$0xf]
    %v161 = vld [vmem:[%s1 + $0x1d8] sm:$0xf]
    %v162 = vld [vmem:[%s1 + $0x1dc] sm:$0xf]
    %v163 = vld [vmem:[%s1 + $0x1e0] sm:$0xf]
    %v164 = vld [vmem:[%s1 + $0x1e4] sm:$0xf]
    %v165 = vld [vmem:[%s1 + $0x1e8] sm:$0xf]
    %v166 = vld [vmem:[%s1 + $0x1ec] sm:$0xf]
    %v167 = vld [vmem:[%s1 + $0x1f0] sm:$0xf]
    %v169 = vcombine.high %v42, %v42
    %v171 = vunpack.c.l.s4 1966171168
    %v172 = vunpack.c.0.s8 %v171
    %v173 = vlaneseq
    %v174 = vshrl.u32 %v173, 7
    %v175 = vsub.s32 %v172, %v174
    %v176 = vrot.slane %v42, %v175
    %v178 = vunpack.c.l.s4 1966171168
    %v179 = vunpack.c.0.s8 %v178
    %v180 = vlaneseq
    %v181 = vshrl.u32 %v180, 7
    %v182 = vsub.s32 %v179, %v181
    %v183 = vrot.slane %v169, %v182
    %v184 = vcombine.high %v176, %v176
    %v185 = vcombine.high %v183, %v183
    %v187 = vunpack.c.l.s4 1966171168
    %v188 = vunpack.c.0.s8 %v187
    %v189 = vlaneseq
    %v190 = vshrl.u32 %v189, 7
    %v191 = vsub.s32 %v188, %v190
    %v192 = vrot.slane %v176, %v191
    %v194 = vunpack.c.l.s4 1966171168
    %v195 = vunpack.c.0.s8 %v194
    %v196 = vlaneseq
    %v197 = vshrl.u32 %v196, 7
    %v198 = vsub.s32 %v195, %v197
    %v199 = vrot.slane %v183, %v198
    %v201 = vunpack.c.l.s4 1966171168
    %v202 = vunpack.c.0.s8 %v201
    %v203 = vlaneseq
    %v204 = vshrl.u32 %v203, 7
    %v205 = vsub.s32 %v202, %v204
    %v206 = vrot.slane %v184, %v205
    %v208 = vunpack.c.l.s4 1966171168
    %v209 = vunpack.c.0.s8 %v208
    %v210 = vlaneseq
    %v211 = vshrl.u32 %v210, 7
    %v212 = vsub.s32 %v209, %v211
    %v213 = vrot.slane %v185, %v212
    %v214 = vcombine.high %v192, %v192
    %v215 = vcombine.high %v199, %v199
    %v216 = vcombine.high %v206, %v206
    %v217 = vcombine.high %v213, %v213
    %v350 = vunpack.c.l.b16 %v43
    %v351 = vunpack.c.l.b16 %v44
    %v352 = vunpack.c.l.b16 %v45
    %v353 = vunpack.c.l.b16 %v46
    %v354 = vunpack.c.l.b16 %v47
    %v355 = vunpack.c.l.b16 %v48
    %v356 = vunpack.c.l.b16 %v49
    %v357 = vunpack.c.l.b16 %v50
    %v358 = vunpack.c.l.b16 %v51
    %v359 = vunpack.c.l.b16 %v52
    %v360 = vunpack.c.l.b16 %v53
    %v361 = vunpack.c.l.b16 %v54
    %v362 = vunpack.c.l.b16 %v55
    %v363 = vunpack.c.l.b16 %v56
    %v364 = vunpack.c.l.b16 %v57
    %v365 = vunpack.c.l.b16 %v58
    %v366 = vunpack.c.l.b16 %v59
    %v367 = vunpack.c.l.b16 %v60
    %v368 = vunpack.c.l.b16 %v61
    %v369 = vunpack.c.l.b16 %v62
    %v370 = vunpack.c.l.b16 %v63
    %v371 = vunpack.c.l.b16 %v64
    %v372 = vunpack.c.l.b16 %v65
    %v373 = vunpack.c.l.b16 %v66
    %v374 = vunpack.c.l.b16 %v67
    %v375 = vunpack.c.l.b16 %v68
    %v376 = vunpack.c.l.b16 %v69
    %v377 = vunpack.c.l.b16 %v70
    %v378 = vunpack.c.l.b16 %v71
    %v379 = vunpack.c.l.b16 %v72
    %v380 = vunpack.c.l.b16 %v73
    %v381 = vunpack.c.l.b16 %v74
    %v382 = vunpack.c.l.b16 %v75
    %v383 = vunpack.c.l.b16 %v76
    %v384 = vunpack.c.l.b16 %v77
    %v385 = vunpack.c.l.b16 %v78
    %v386 = vunpack.c.l.b16 %v79
    %v387 = vunpack.c.l.b16 %v80
    %v388 = vunpack.c.l.b16 %v81
    %v389 = vunpack.c.l.b16 %v82
    %v390 = vunpack.c.l.b16 %v83
    %v391 = vunpack.c.l.b16 %v84
    %v392 = vunpack.c.l.b16 %v85
    %v393 = vunpack.c.l.b16 %v86
    %v394 = vunpack.c.l.b16 %v87
    %v395 = vunpack.c.l.b16 %v88
    %v396 = vunpack.c.l.b16 %v89
    %v397 = vunpack.c.l.b16 %v90
    %v398 = vunpack.c.l.b16 %v91
    %v399 = vunpack.c.l.b16 %v92
    %v400 = vunpack.c.l.b16 %v93
    %v401 = vunpack.c.l.b16 %v94
    %v402 = vunpack.c.l.b16 %v95
    %v403 = vunpack.c.l.b16 %v96
    %v404 = vunpack.c.l.b16 %v97
    %v405 = vunpack.c.l.b16 %v98
    %v406 = vunpack.c.l.b16 %v99
    %v407 = vunpack.c.l.b16 %v100
    %v408 = vunpack.c.l.b16 %v101
    %v409 = vunpack.c.l.b16 %v102
    %v410 = vunpack.c.l.b16 %v103
    %v411 = vunpack.c.l.b16 %v104
    %v412 = vunpack.c.l.b16 %v105
    %v413 = vunpack.c.l.b16 %v106
    %v414 = vunpack.c.l.b16 %v107
    %v415 = vunpack.c.l.b16 %v108
    %v416 = vunpack.c.l.b16 %v109
    %v417 = vunpack.c.l.b16 %v110
    %v418 = vunpack.c.l.b16 %v111
    %v419 = vunpack.c.l.b16 %v112
    %v420 = vunpack.c.l.b16 %v113
    %v421 = vunpack.c.l.b16 %v114
    %v422 = vunpack.c.l.b16 %v115
    %v423 = vunpack.c.l.b16 %v116
    %v424 = vunpack.c.l.b16 %v117
    %v425 = vunpack.c.l.b16 %v118
    %v426 = vunpack.c.l.b16 %v119
    %v427 = vunpack.c.l.b16 %v120
    %v428 = vunpack.c.l.b16 %v121
    %v429 = vunpack.c.l.b16 %v122
    %v430 = vunpack.c.l.b16 %v123
    %v431 = vunpack.c.l.b16 %v124
    %v432 = vunpack.c.l.b16 %v125
    %v433 = vunpack.c.l.b16 %v126
    %v434 = vunpack.c.l.b16 %v127
    %v435 = vunpack.c.l.b16 %v128
    %v436 = vunpack.c.l.b16 %v129
    %v437 = vunpack.c.l.b16 %v130
    %v438 = vunpack.c.l.b16 %v131
    %v439 = vunpack.c.l.b16 %v132
    %v440 = vunpack.c.l.b16 %v133
    %v441 = vunpack.c.l.b16 %v134
    %v442 = vunpack.c.l.b16 %v135
    %v443 = vunpack.c.l.b16 %v136
    %v444 = vunpack.c.l.b16 %v137
    %v445 = vunpack.c.l.b16 %v138
    %v446 = vunpack.c.l.b16 %v139
    %v447 = vunpack.c.l.b16 %v140
    %v448 = vunpack.c.l.b16 %v141
    %v449 = vunpack.c.l.b16 %v142
    %v450 = vunpack.c.l.b16 %v143
    %v451 = vunpack.c.l.b16 %v144
    %v452 = vunpack.c.l.b16 %v145
    %v453 = vunpack.c.l.b16 %v146
    %v454 = vunpack.c.l.b16 %v147
    %v455 = vunpack.c.l.b16 %v148
    %v456 = vunpack.c.l.b16 %v149
    %v457 = vunpack.c.l.b16 %v150
    %v458 = vunpack.c.l.b16 %v151
    %v459 = vunpack.c.l.b16 %v152
    %v460 = vunpack.c.l.b16 %v153
    %v461 = vunpack.c.l.b16 %v154
    %v462 = vunpack.c.l.b16 %v155
    %v463 = vunpack.c.l.b16 %v156
    %v464 = vunpack.c.l.b16 %v157
    %v465 = vunpack.c.l.b16 %v158
    %v466 = vunpack.c.l.b16 %v159
    %v467 = vunpack.c.l.b16 %v160
    %v468 = vunpack.c.l.b16 %v161
    %v469 = vunpack.c.l.b16 %v162
    %v470 = vunpack.c.l.b16 %v163
    %v471 = vunpack.c.l.b16 %v164
    %v472 = vunpack.c.l.b16 %v165
    %v473 = vunpack.c.l.b16 %v166
    %v474 = vunpack.c.l.b16 %v167
    %v475 = vpack.c.b16 %v351, %v350
    %v476 = vpack.c.b16 %v353, %v352
    %v477 = vpack.c.b16 %v355, %v354
    %v478 = vpack.c.b16 %v357, %v356
    %v479 = vpack.c.b16 %v359, %v358
    %v480 = vpack.c.b16 %v361, %v360
    %v481 = vpack.c.b16 %v363, %v362
    %v482 = vpack.c.b16 %v365, %v364
    %v483 = vpack.c.b16 %v367, %v366
    %v484 = vpack.c.b16 %v369, %v368
    %v485 = vpack.c.b16 %v371, %v370
    %v486 = vpack.c.b16 %v373, %v372
    %v487 = vpack.c.b16 %v375, %v374
    %v488 = vpack.c.b16 %v377, %v376
    %v489 = vpack.c.b16 %v379, %v378
    %v490 = vpack.c.b16 %v381, %v380
    %v491 = vpack.c.b16 %v383, %v382
    %v492 = vpack.c.b16 %v385, %v384
    %v493 = vpack.c.b16 %v387, %v386
    %v494 = vpack.c.b16 %v389, %v388
    %v495 = vpack.c.b16 %v391, %v390
    %v496 = vpack.c.b16 %v393, %v392
    %v497 = vpack.c.b16 %v395, %v394
    %v498 = vpack.c.b16 %v397, %v396
    %v499 = vpack.c.b16 %v399, %v398
    %v500 = vpack.c.b16 %v401, %v400
    %v501 = vpack.c.b16 %v403, %v402
    %v502 = vpack.c.b16 %v405, %v404
    %v503 = vpack.c.b16 %v407, %v406
    %v504 = vpack.c.b16 %v409, %v408
    %v505 = vpack.c.b16 %v411, %v410
    %v506 = vpack.c.b16 %v413, %v412
    %v507 = vpack.c.b16 %v415, %v414
    %v508 = vpack.c.b16 %v417, %v416
    %v509 = vpack.c.b16 %v419, %v418
    %v510 = vpack.c.b16 %v421, %v420
    %v511 = vpack.c.b16 %v423, %v422
    %v512 = vpack.c.b16 %v425, %v424
    %v513 = vpack.c.b16 %v427, %v426
    %v514 = vpack.c.b16 %v429, %v428
    %v515 = vpack.c.b16 %v431, %v430
    %v516 = vpack.c.b16 %v433, %v432
    %v517 = vpack.c.b16 %v435, %v434
    %v518 = vpack.c.b16 %v437, %v436
    %v519 = vpack.c.b16 %v439, %v438
    %v520 = vpack.c.b16 %v441, %v440
    %v521 = vpack.c.b16 %v443, %v442
    %v522 = vpack.c.b16 %v445, %v444
    %v523 = vpack.c.b16 %v447, %v446
    %v524 = vpack.c.b16 %v449, %v448
    %v525 = vpack.c.b16 %v451, %v450
    %v526 = vpack.c.b16 %v453, %v452
    %v527 = vpack.c.b16 %v455, %v454
    %v528 = vpack.c.b16 %v457, %v456
    %v529 = vpack.c.b16 %v459, %v458
    %v530 = vpack.c.b16 %v461, %v460
    %v531 = vpack.c.b16 %v463, %v462
    %v532 = vpack.c.b16 %v465, %v464
    %v533 = vpack.c.b16 %v467, %v466
    %v534 = vpack.c.b16 %v469, %v468
    %v535 = vpack.c.b16 %v471, %v470
    %v536 = vpack.c.b16 %v473, %v472
    %v537 = vpack.c.b16 %v474, %v474
    %vm600 = vcmask 850944
    %v602 = vsel %vm600, %v217, 0
    %vm604 = vcmask 1043456
    %v606 = vsel %vm604, %v537, 0
    %608 = vmatprep.subr.bf16.mxu0 0
    %609 = vmatpush1.bf16.msra.mxu0 %v475
    %610 = vmatprep.subr.bf16.mxu0 0
    %611 = vmatpush1.bf16.msra.mxu0 %v476
    %612 = vmatprep.subr.bf16.mxu0 0
    %613 = vmatpush1.bf16.msra.mxu0 %v477
    %614 = vmatprep.subr.bf16.mxu0 0
    %615 = vmatpush1.bf16.msra.mxu0 %v478
    %616 = vmatprep.subr.bf16.mxu0 0
    %617 = vmatpush1.bf16.msra.mxu0 %v479
    %618 = vmatprep.subr.bf16.mxu0 0
    %619 = vmatpush1.bf16.msra.mxu0 %v480
    %620 = vmatprep.subr.bf16.mxu0 0
    %621 = vmatpush1.bf16.msra.mxu0 %v481
    %622 = vmatprep.subr.bf16.mxu0 0
    %623 = vmatpush1.bf16.msra.mxu0 %v482
    %624 = vmatprep.subr.bf16.mxu0 0
    %625 = vmatpush1.bf16.msra.mxu0 %v483
    %626 = vmatprep.subr.bf16.mxu0 0
    %627 = vmatpush1.bf16.msra.mxu0 %v484
    %628 = vmatprep.subr.bf16.mxu0 0
    %629 = vmatpush1.bf16.msra.mxu0 %v485
    %630 = vmatprep.subr.bf16.mxu0 0
    %631 = vmatpush1.bf16.msra.mxu0 %v486
    %632 = vmatprep.subr.bf16.mxu0 0
    %633 = vmatpush1.bf16.msra.mxu0 %v487
    %634 = vmatprep.subr.bf16.mxu0 0
    %635 = vmatpush1.bf16.msra.mxu0 %v488
    %636 = vmatprep.subr.bf16.mxu0 0
    %637 = vmatpush1.bf16.msra.mxu0 %v489
    %638 = vmatprep.subr.bf16.mxu0 0
    %639 = vmatpush1.bf16.msra.mxu0 %v490
    %640 = vmatprep.mubr.bf16.mxu0 %v206
    %641 = vmatmul.mubr.bf16.gmra.mrb[0].mxu0 %v192
    %v642 = vpop.f32.mrb[0].mxu0
    %v643 = vadd.f32 0.0, %v642
    %v644 = vpop.f32.mrb[0].mxu0
    %v645 = vpop.f32.mrb[0].mxu0
    %v646 = vpop.f32.mrb[0].mxu0
    %647 = vdwg.mxu0
    %648 = vmatprep.subr.bf16.mxu0 0
    %649 = vmatpush1.bf16.msra.mxu0 %v491
    %650 = vmatprep.subr.bf16.mxu0 0
    %651 = vmatpush1.bf16.msra.mxu0 %v492
    %652 = vmatprep.subr.bf16.mxu0 0
    %653 = vmatpush1.bf16.msra.mxu0 %v493
    %654 = vmatprep.subr.bf16.mxu0 0
    %655 = vmatpush1.bf16.msra.mxu0 %v494
    %656 = vmatprep.subr.bf16.mxu0 0
    %657 = vmatpush1.bf16.msra.mxu0 %v495
    %658 = vmatprep.subr.bf16.mxu0 0
    %659 = vmatpush1.bf16.msra.mxu0 %v496
    %660 = vmatprep.subr.bf16.mxu0 0
    %661 = vmatpush1.bf16.msra.mxu0 %v497
    %662 = vmatprep.subr.bf16.mxu0 0
    %663 = vmatpush1.bf16.msra.mxu0 %v498
    %664 = vmatprep.subr.bf16.mxu0 0
    %665 = vmatpush1.bf16.msra.mxu0 %v499
    %666 = vmatprep.subr.bf16.mxu0 0
    %667 = vmatpush1.bf16.msra.mxu0 %v500
    %668 = vmatprep.subr.bf16.mxu0 0
    %669 = vmatpush1.bf16.msra.mxu0 %v501
    %670 = vmatprep.subr.bf16.mxu0 0
    %671 = vmatpush1.bf16.msra.mxu0 %v502
    %672 = vmatprep.subr.bf16.mxu0 0
    %673 = vmatpush1.bf16.msra.mxu0 %v503
    %674 = vmatprep.subr.bf16.mxu0 0
    %675 = vmatpush1.bf16.msra.mxu0 %v504
    %676 = vmatprep.subr.bf16.mxu0 0
    %677 = vmatpush1.bf16.msra.mxu0 %v505
    %678 = vmatprep.subr.bf16.mxu0 0
    %679 = vmatpush1.bf16.msra.mxu0 %v506
    %680 = vmatprep.mubr.bf16.mxu0 %v216
    %681 = vmatmul.mubr.bf16.gmra.mrb[0].mxu0 %v214
    %v682 = vpop.f32.mrb[0].mxu0
    %v683 = vadd.f32 %v643, %v682
    %v684 = vpop.f32.mrb[0].mxu0
    %v685 = vpop.f32.mrb[0].mxu0
    %v686 = vpop.f32.mrb[0].mxu0
    %687 = vdwg.mxu0
    %688 = vmatprep.subr.bf16.mxu0 0
    %689 = vmatpush1.bf16.msra.mxu0 %v507
    %690 = vmatprep.subr.bf16.mxu0 0
    %691 = vmatpush1.bf16.msra.mxu0 %v508
    %692 = vmatprep.subr.bf16.mxu0 0
    %693 = vmatpush1.bf16.msra.mxu0 %v509
    %694 = vmatprep.subr.bf16.mxu0 0
    %695 = vmatpush1.bf16.msra.mxu0 %v510
    %696 = vmatprep.subr.bf16.mxu0 0
    %697 = vmatpush1.bf16.msra.mxu0 %v511
    %698 = vmatprep.subr.bf16.mxu0 0
    %699 = vmatpush1.bf16.msra.mxu0 %v512
    %700 = vmatprep.subr.bf16.mxu0 0
    %701 = vmatpush1.bf16.msra.mxu0 %v513
    %702 = vmatprep.subr.bf16.mxu0 0
    %703 = vmatpush1.bf16.msra.mxu0 %v514
    %704 = vmatprep.subr.bf16.mxu0 0
    %705 = vmatpush1.bf16.msra.mxu0 %v515
    %706 = vmatprep.subr.bf16.mxu0 0
    %707 = vmatpush1.bf16.msra.mxu0 %v516
    %708 = vmatprep.subr.bf16.mxu0 0
    %709 = vmatpush1.bf16.msra.mxu0 %v517
    %710 = vmatprep.subr.bf16.mxu0 0
    %711 = vmatpush1.bf16.msra.mxu0 %v518
    %712 = vmatprep.subr.bf16.mxu0 0
    %713 = vmatpush1.bf16.msra.mxu0 %v519
    %714 = vmatprep.subr.bf16.mxu0 0
    %715 = vmatpush1.bf16.msra.mxu0 %v520
    %716 = vmatprep.subr.bf16.mxu0 0
    %717 = vmatpush1.bf16.msra.mxu0 %v521
    %718 = vmatprep.subr.bf16.mxu0 0
    %719 = vmatpush1.bf16.msra.mxu0 %v522
    %720 = vmatprep.mubr.bf16.mxu0 %v213
    %721 = vmatmul.mubr.bf16.gmra.mrb[0].mxu0 %v199
    %v722 = vpop.f32.mrb[0].mxu0
    %v723 = vadd.f32 %v683, %v722
    %v724 = vpop.f32.mrb[0].mxu0
    %v725 = vpop.f32.mrb[0].mxu0
    %v726 = vpop.f32.mrb[0].mxu0
    %727 = vdwg.mxu0
    %728 = vmatprep.subr.bf16.mxu0 0
    %729 = vmatpush1.bf16.msra.mxu0 %v523
    %730 = vmatprep.subr.bf16.mxu0 0
    %731 = vmatpush1.bf16.msra.mxu0 %v524
    %732 = vmatprep.subr.bf16.mxu0 0
    %733 = vmatpush1.bf16.msra.mxu0 %v525
    %734 = vmatprep.subr.bf16.mxu0 0
    %735 = vmatpush1.bf16.msra.mxu0 %v526
    %736 = vmatprep.subr.bf16.mxu0 0
    %737 = vmatpush1.bf16.msra.mxu0 %v527
    %738 = vmatprep.subr.bf16.mxu0 0
    %739 = vmatpush1.bf16.msra.mxu0 %v528
    %740 = vmatprep.subr.bf16.mxu0 0
    %741 = vmatpush1.bf16.msra.mxu0 %v529
    %742 = vmatprep.subr.bf16.mxu0 0
    %743 = vmatpush1.bf16.msra.mxu0 %v530
    %744 = vmatprep.subr.bf16.mxu0 0
    %745 = vmatpush1.bf16.msra.mxu0 %v531
    %746 = vmatprep.subr.bf16.mxu0 0
    %747 = vmatpush1.bf16.msra.mxu0 %v532
    %748 = vmatprep.subr.bf16.mxu0 0
    %749 = vmatpush1.bf16.msra.mxu0 %v533
    %750 = vmatprep.subr.bf16.mxu0 0
    %751 = vmatpush1.bf16.msra.mxu0 %v534
    %752 = vmatprep.subr.bf16.mxu0 0
    %753 = vmatpush1.bf16.msra.mxu0 %v535
    %754 = vmatprep.subr.bf16.mxu0 0
    %755 = vmatpush1.bf16.msra.mxu0 %v536
    %756 = vmatprep.subr.bf16.mxu0 0
    %757 = vmatpush1.bf16.msra.mxu0 %v606
    %758 = vmatprep.subr.bf16.mxu0 0
    %759 = vmatpush1.bf16.msra.mxu0 0
    %760 = vmatprep.mubr.bf16.mxu0 %v602
    %761 = vmatmul.mubr.bf16.gmra.mrb[0].mxu0 %v215
    %v762 = vpop.f32.mrb[0].mxu0
    %v763 = vadd.f32 %v723, %v762
    %v764 = vpop.f32.mrb[0].mxu0
    %v765 = vpop.f32.mrb[0].mxu0
    %v766 = vpop.f32.mrb[0].mxu0
    %767 = vdwg.mxu0
    %vm768 = vcmask 1041408
    %v769 = vsel %vm768, %v763, 0.0
    %v770 = vrot.slane %v769, 4
    %v771 = vadd.f32 %v769, %v770
    %v772 = vrot.slane %v771, 2
    %v773 = vadd.f32 %v771, %v772
    %v774 = vrot.slane %v773, 1
    %v775 = vadd.f32 %v773, %v774
    %v776 = vrcp.pop 2.0
    %v777 = vmul.f32 %v775, %v776
    %v778 = vsub.f32 %v763, %v777
    %v779 = vmul.f32 %v778, %v778
    %v780 = vsel %vm768, %v779, 0.0
    %v781 = vrot.slane %v780, 4
    %v782 = vadd.f32 %v780, %v781
    %v783 = vrot.slane %v782, 2
    %v784 = vadd.f32 %v782, %v783
    %v785 = vrot.slane %v784, 1
    %v786 = vadd.f32 %v784, %v785
    %v787 = vmul.f32 %v786, %v776
    %v788 = vld [vmem:[#allocation2] sm:$0x1]
    %v789 = vadd.f32 %v787, 1e-05
    %v790 = vrsqrt.pop %v789
    %v791 = vmul.f32 %v788, %v790
    %v793 = vlaneseq
    %v794 = vshrl.u32 %v793, 7
    %v795 = vsub.s32 0, %v794
    %v796 = vrot.slane %v791, %v795
    %v798 = vmul.f32 %v778, %v796
    %v799 = vld [vmem:[#allocation4] sm:$0x1]
    %v801 = vlaneseq
    %v802 = vshrl.u32 %v801, 7
    %v803 = vsub.s32 0, %v802
    %v804 = vrot.slane %v799, %v803
    %v806 = vadd.f32 %v798, %v804
    %vm807 = vcmp.gt.f32.partialorder %v806, 0.0
    %v808 = vmin.f32 %v806, 0.0
    %v809 = vmul.f32 %v808, 1.442695
    %v810 = vpow.pop %v809
    %v811 = vsub.f32 %v810, 1.0
    %v812 = vsel %vm807, %v806, %v811
    %v813 = vpack.c.bf16 %v812, %v812
    %814 = vst [vmem:[%s4] sm:$0x1] %v813
    // Predicated region
    $region26: #{decoder_forward.12} parent=1 // pred_check
      _
    $region27: #{decoder_forward.12} parent=1 // pred_check_branch
      %816 = sbr.rel (0) target = $region29
    $region28: #{decoder_forward.12} parent=1 // pred_region
      _
    $region29: #{decoder_forward.12} parent=1 // pred_fallthru
      _
    // Predicated region
    $region30: #{decoder_forward.12} parent=1 // pred_check
      _
    $region31: #{decoder_forward.12} parent=1 // pred_check_branch
      %818 = sbr.rel (0) target = $region33
    $region32: #{decoder_forward.12} parent=1 // pred_region
      _
    $region33: #{decoder_forward.12} parent=1 // pred_fallthru
      _
    %819 = vsyncpa [#allocation3], 1
    %820 = vsyncpa [#allocation5], 1

// kernel: tile.53
$region0: #{tile.53}
  #allocation0 [shape = 's32[1]{0}', space=sflag, size = 0x4, scoped, tag = 'scoped memory for tile.53']
  %s0 = inlined_call_operand.vmem [shape: f32[16], index: 0, kind: input, shape index: {}]
  %s1 = inlined_call_operand.vmem [shape: f32[4,16], index: 1, kind: output, shape index: {}]
  // Predicated region
  $region2: #{tile.53} parent=0 // pred_check
    _
  $region3: #{tile.53} parent=0 // pred_check_branch
    %3 = sbr.rel (0) target = $region5
  $region4: #{tile.53} parent=0 // pred_region
    _
  $region5: #{tile.53} parent=0 // pred_fallthru
    _
  %v4 = vld [vmem:[%s0] ss:$0 sm:$0xff]
  %5 = vst [vmem:[%s1] sm:$0xf] %v4

// kernel: tile.0
$region0: #{tile.0}
  %s0 = inlined_call_operand.vmem [shape: f32[4,16], index: 0, kind: input, shape index: {}]
  %s1 = inlined_call_operand.vmem [shape: f32[64,1], index: 1, kind: output, shape index: {}]
  $region1: #{tile.0} parent=0
    #allocation0 [shape = 'u8[4096]{0}', space=vmem, size = 0x1000, scoped, tag = 'scoped mem for input reshape']
    %s3 = sshllo.u32 0, 4
    %v4 = vld [vmem:[%s0] sm:%s3]
    %5 = vst [vmem:[#allocation0] sm:%s3] %v4
    %v6 = vld [vmem:[#allocation0] sm:$0xf]
    %vm7 = vcmask 7168
    %8 = vst.msk [vmem:[%s1] ss:$16 sm:$0x3] %vm7, %v6
    %9 = vst.msk [vmem:[%s1] ss:$16 sm:$0xc] %vm7, %v6
    %v10 = vld [vmem:[#allocation0] sm:$0xf]
    %11 = vrot.lane.b32.xlu0 %v10, 127
    %v12 = vpop.permute.xlu0 %11
    %vm13 = vcmask 7168
    %s14 = scalar_lea.vmem %s1, 1
    %15 = vst.msk [vmem:[%s14] ss:$16 sm:$0x3] %vm13, %v12
    %s16 = scalar_lea.vmem %s1, 1
    %17 = vst.msk [vmem:[%s16] ss:$16 sm:$0xc] %vm13, %v12
    %v18 = vld [vmem:[#allocation0] sm:$0xf]
    %19 = vrot.lane.b32.xlu0 %v18, 126
    %v20 = vpop.permute.xlu0 %19
    %vm21 = vcmask 7168
    %s22 = scalar_lea.vmem %s1, 2
    %23 = vst.msk [vmem:[%s22] ss:$16 sm:$0x3] %vm21, %v20
    %s24 = scalar_lea.vmem %s1, 2
    %25 = vst.msk [vmem:[%s24] ss:$16 sm:$0xc] %vm21, %v20
    %v26 = vld [vmem:[#allocation0] sm:$0xf]
    %27 = vrot.lane.b32.xlu0 %v26, 125
    %v28 = vpop.permute.xlu0 %27
    %vm29 = vcmask 7168
    %s30 = scalar_lea.vmem %s1, 3
    %31 = vst.msk [vmem:[%s30] ss:$16 sm:$0x3] %vm29, %v28
    %s32 = scalar_lea.vmem %s1, 3
    %33 = vst.msk [vmem:[%s32] ss:$16 sm:$0xc] %vm29, %v28
    %v34 = vld [vmem:[#allocation0] sm:$0xf]
    %35 = vrot.lane.b32.xlu0 %v34, 124
    %v36 = vpop.permute.xlu0 %35
    %vm37 = vcmask 7168
    %s38 = scalar_lea.vmem %s1, 4
    %39 = vst.msk [vmem:[%s38] ss:$16 sm:$0x3] %vm37, %v36
    %s40 = scalar_lea.vmem %s1, 4
    %41 = vst.msk [vmem:[%s40] ss:$16 sm:$0xc] %vm37, %v36
    %v42 = vld [vmem:[#allocation0] sm:$0xf]
    %43 = vrot.lane.b32.xlu0 %v42, 123
    %v44 = vpop.permute.xlu0 %43
    %vm45 = vcmask 7168
    %s46 = scalar_lea.vmem %s1, 5
    %47 = vst.msk [vmem:[%s46] ss:$16 sm:$0x3] %vm45, %v44
    %s48 = scalar_lea.vmem %s1, 5
    %49 = vst.msk [vmem:[%s48] ss:$16 sm:$0xc] %vm45, %v44
    %v50 = vld [vmem:[#allocation0] sm:$0xf]
    %51 = vrot.lane.b32.xlu0 %v50, 122
    %v52 = vpop.permute.xlu0 %51
    %vm53 = vcmask 7168
    %s54 = scalar_lea.vmem %s1, 6
    %55 = vst.msk [vmem:[%s54] ss:$16 sm:$0x3] %vm53, %v52
    %s56 = scalar_lea.vmem %s1, 6
    %57 = vst.msk [vmem:[%s56] ss:$16 sm:$0xc] %vm53, %v52
    %v58 = vld [vmem:[#allocation0] sm:$0xf]
    %59 = vrot.lane.b32.xlu0 %v58, 121
    %v60 = vpop.permute.xlu0 %59
    %vm61 = vcmask 7168
    %s62 = scalar_lea.vmem %s1, 7
    %63 = vst.msk [vmem:[%s62] ss:$16 sm:$0x3] %vm61, %v60
    %s64 = scalar_lea.vmem %s1, 7
    %65 = vst.msk [vmem:[%s64] ss:$16 sm:$0xc] %vm61, %v60
    %v66 = vld [vmem:[#allocation0] sm:$0xf]
    %67 = vrot.lane.b32.xlu0 %v66, 120
    %v68 = vpop.permute.xlu0 %67
    %vm69 = vcmask 7168
    %s70 = scalar_lea.vmem %s1, 8
    %71 = vst.msk [vmem:[%s70] ss:$16 sm:$0x3] %vm69, %v68
    %s72 = scalar_lea.vmem %s1, 8
    %73 = vst.msk [vmem:[%s72] ss:$16 sm:$0xc] %vm69, %v68
    %v74 = vld [vmem:[#allocation0] sm:$0xf]
    %75 = vrot.lane.b32.xlu0 %v74, 119
    %v76 = vpop.permute.xlu0 %75
    %vm77 = vcmask 7168
    %s78 = scalar_lea.vmem %s1, 9
    %79 = vst.msk [vmem:[%s78] ss:$16 sm:$0x3] %vm77, %v76
    %s80 = scalar_lea.vmem %s1, 9
    %81 = vst.msk [vmem:[%s80] ss:$16 sm:$0xc] %vm77, %v76
    %v82 = vld [vmem:[#allocation0] sm:$0xf]
    %83 = vrot.lane.b32.xlu0 %v82, 118
    %v84 = vpop.permute.xlu0 %83
    %vm85 = vcmask 7168
    %s86 = scalar_lea.vmem %s1, 10
    %87 = vst.msk [vmem:[%s86] ss:$16 sm:$0x3] %vm85, %v84
    %s88 = scalar_lea.vmem %s1, 10
    %89 = vst.msk [vmem:[%s88] ss:$16 sm:$0xc] %vm85, %v84
    %v90 = vld [vmem:[#allocation0] sm:$0xf]
    %91 = vrot.lane.b32.xlu0 %v90, 117
    %v92 = vpop.permute.xlu0 %91
    %vm93 = vcmask 7168
    %s94 = scalar_lea.vmem %s1, 11
    %95 = vst.msk [vmem:[%s94] ss:$16 sm:$0x3] %vm93, %v92
    %s96 = scalar_lea.vmem %s1, 11
    %97 = vst.msk [vmem:[%s96] ss:$16 sm:$0xc] %vm93, %v92
    %v98 = vld [vmem:[#allocation0] sm:$0xf]
    %99 = vrot.lane.b32.xlu0 %v98, 116
    %v100 = vpop.permute.xlu0 %99
    %vm101 = vcmask 7168
    %s102 = scalar_lea.vmem %s1, 12
    %103 = vst.msk [vmem:[%s102] ss:$16 sm:$0x3] %vm101, %v100
    %s104 = scalar_lea.vmem %s1, 12
    %105 = vst.msk [vmem:[%s104] ss:$16 sm:$0xc] %vm101, %v100
    %v106 = vld [vmem:[#allocation0] sm:$0xf]
    %107 = vrot.lane.b32.xlu0 %v106, 115
    %v108 = vpop.permute.xlu0 %107
    %vm109 = vcmask 7168
    %s110 = scalar_lea.vmem %s1, 13
    %111 = vst.msk [vmem:[%s110] ss:$16 sm:$0x3] %vm109, %v108
    %s112 = scalar_lea.vmem %s1, 13
    %113 = vst.msk [vmem:[%s112] ss:$16 sm:$0xc] %vm109, %v108
    %v114 = vld [vmem:[#allocation0] sm:$0xf]
    %115 = vrot.lane.b32.xlu0 %v114, 114
    %v116 = vpop.permute.xlu0 %115
    %vm117 = vcmask 7168
    %s118 = scalar_lea.vmem %s1, 14
    %119 = vst.msk [vmem:[%s118] ss:$16 sm:$0x3] %vm117, %v116
    %s120 = scalar_lea.vmem %s1, 14
    %121 = vst.msk [vmem:[%s120] ss:$16 sm:$0xc] %vm117, %v116
    %v122 = vld [vmem:[#allocation0] sm:$0xf]
    %123 = vrot.lane.b32.xlu0 %v122, 113
    %v124 = vpop.permute.xlu0 %123
    %vm125 = vcmask 7168
    %s126 = scalar_lea.vmem %s1, 15
    %127 = vst.msk [vmem:[%s126] ss:$16 sm:$0x3] %vm125, %v124
    %s128 = scalar_lea.vmem %s1, 15
    %129 = vst.msk [vmem:[%s128] ss:$16 sm:$0xc] %vm125, %v124

// kernel: decoder_forward.13
$region0: #{decoder_forward.13}
  #allocation0 [shape = 'u32[]', space=smem, size = 0x4, offset = 0x4, fixed_abs, tag = 'smem constant byte address 0x4 - core index']
  #allocation1 [shape = 'u32[144,128]{1,0:T(1,128)}', space=vmem, size = 0x12000, scoped, tag = 'internal scratch']
  %s0 = inlined_call_operand.vmem [shape: bf16[128,8], index: 0, kind: input, shape index: {}]
  %s1 = inlined_call_operand.vmem [shape: bf16[64,128], index: 1, kind: input, shape index: {}]
  %s2 = inlined_call_operand.vmem [shape: bf16[64,8], index: 2, kind: output, shape index: {0}]
  %s3 = inlined_call_operand.vmem [shape: f32[64,1], index: 3, kind: output, shape index: {1}]
  %s4 = inlined_call_operand.vmem [shape: f32[64,1], index: 4, kind: output, shape index: {2}]
  %5 = xla_tuple %s2, %s3, %s4
  %s6 = sld [smem:[#allocation0]]
  $region38: #{decoder_forward.13} parent=0
    _
  %s8 = ssub.s32 1, %s6
  %s9 = scalar_select 0, %s8, %s6
  // Predicated region
  $region2: #{decoder_forward.13} parent=0 // pred_check
    _
  $region3: #{decoder_forward.13} parent=0 // pred_check_branch
    %11 = sbr.rel (0) target = $region5
  $region4: #{decoder_forward.13} parent=0 // pred_region
    _
  $region5: #{decoder_forward.13} parent=0 // pred_fallthru
    _
  // Predicated region
  $region6: #{decoder_forward.13} parent=0 // pred_check
    _
  $region7: #{decoder_forward.13} parent=0 // pred_check_branch
    %13 = sbr.rel (0) target = $region9
  $region8: #{decoder_forward.13} parent=0 // pred_region
    _
  $region9: #{decoder_forward.13} parent=0 // pred_fallthru
    _
  %v15 = vld [vmem:[%s1] sm:$0xf]
  %v16 = vld [vmem:[%s1 + $0x4] sm:$0xf]
  %v17 = vld [vmem:[%s1 + $0x8] sm:$0xf]
  %v18 = vld [vmem:[%s1 + $0xc] sm:$0xf]
  %v19 = vld [vmem:[%s1 + $0x10] sm:$0xf]
  %v20 = vld [vmem:[%s1 + $0x14] sm:$0xf]
  %v21 = vld [vmem:[%s1 + $0x18] sm:$0xf]
  %v22 = vld [vmem:[%s1 + $0x1c] sm:$0xf]
  %v23 = vld [vmem:[%s0] sm:$0xf]
  %v24 = vld [vmem:[%s0 + $0x4] sm:$0xf]
  %v25 = vld [vmem:[%s0 + $0x8] sm:$0xf]
  %v26 = vld [vmem:[%s0 + $0xc] sm:$0xf]
  %v27 = vld [vmem:[%s0 + $0x10] sm:$0xf]
  %v28 = vld [vmem:[%s0 + $0x14] sm:$0xf]
  %v29 = vld [vmem:[%s0 + $0x18] sm:$0xf]
  %v30 = vld [vmem:[%s0 + $0x1c] sm:$0xf]
  %v31 = vld [vmem:[%s0 + $0x20] sm:$0xf]
  %v32 = vld [vmem:[%s0 + $0x24] sm:$0xf]
  %v33 = vld [vmem:[%s0 + $0x28] sm:$0xf]
  %v34 = vld [vmem:[%s0 + $0x2c] sm:$0xf]
  %v35 = vld [vmem:[%s0 + $0x30] sm:$0xf]
  %v36 = vld [vmem:[%s0 + $0x34] sm:$0xf]
  %v37 = vld [vmem:[%s0 + $0x38] sm:$0xf]
  %v38 = vld [vmem:[%s0 + $0x3c] sm:$0xf]
  %v47 = vunpack.c.l.b16 %v15
  %v48 = vunpack.c.l.b16 %v16
  %v49 = vunpack.c.l.b16 %v17
  %v50 = vunpack.c.l.b16 %v18
  %v51 = vunpack.c.l.b16 %v19
  %v52 = vunpack.c.l.b16 %v20
  %v53 = vunpack.c.l.b16 %v21
  %v54 = vunpack.c.l.b16 %v22
  %v55 = vpack.c.b16 %v48, %v47
  %v56 = vpack.c.b16 %v50, %v49
  %v57 = vpack.c.b16 %v52, %v51
  %v58 = vpack.c.b16 %v54, %v53
  %v79 = vunpack.c.l.b16 %v23
  %v80 = vunpack.c.l.b16 %v24
  %v81 = vunpack.c.l.b16 %v25
  %v82 = vunpack.c.l.b16 %v26
  %v83 = vunpack.c.l.b16 %v27
  %v84 = vunpack.c.l.b16 %v28
  %v85 = vunpack.c.l.b16 %v29
  %v86 = vunpack.c.l.b16 %v30
  %v87 = vunpack.c.l.b16 %v31
  %v88 = vunpack.c.l.b16 %v32
  %v89 = vunpack.c.l.b16 %v33
  %v90 = vunpack.c.l.b16 %v34
  %v91 = vunpack.c.l.b16 %v35
  %v92 = vunpack.c.l.b16 %v36
  %v93 = vunpack.c.l.b16 %v37
  %v94 = vunpack.c.l.b16 %v38
  %v95 = vpack.c.b16 %v80, %v79
  %v96 = vpack.c.b16 %v82, %v81
  %v97 = vpack.c.b16 %v84, %v83
  %v98 = vpack.c.b16 %v86, %v85
  %v99 = vpack.c.b16 %v88, %v87
  %v100 = vpack.c.b16 %v90, %v89
  %v101 = vpack.c.b16 %v92, %v91
  %v102 = vpack.c.b16 %v94, %v93
  %111 = vmatprep.subr.bf16.mxu0 0
  %112 = vmatpush1.bf16.msra.mxu0 %v95
  %113 = vmatprep.subr.bf16.mxu0 0
  %114 = vmatpush1.bf16.msra.mxu0 %v96
  %115 = vmatprep.subr.bf16.mxu0 0
  %116 = vmatpush1.bf16.msra.mxu0 %v97
  %117 = vmatprep.subr.bf16.mxu0 0
  %118 = vmatpush1.bf16.msra.mxu0 %v98
  %119 = vmatprep.subr.bf16.mxu0 0
  %120 = vmatpush1.bf16.msra.mxu0 %v99
  %121 = vmatprep.subr.bf16.mxu0 0
  %122 = vmatpush1.bf16.msra.mxu0 %v100
  %123 = vmatprep.subr.bf16.mxu0 0
  %124 = vmatpush1.bf16.msra.mxu0 %v101
  %125 = vmatprep.subr.bf16.mxu0 0
  %126 = vmatpush1.bf16.msra.mxu0 %v102
  %127 = vmatprep.subr.bf16.mxu0 0
  %128 = vmatpush1.bf16.msra.mxu0 0
  %129 = vmatprep.subr.bf16.mxu0 0
  %130 = vmatpush1.bf16.msra.mxu0 0
  %131 = vmatprep.subr.bf16.mxu0 0
  %132 = vmatpush1.bf16.msra.mxu0 0
  %133 = vmatprep.subr.bf16.mxu0 0
  %134 = vmatpush1.bf16.msra.mxu0 0
  %135 = vmatprep.subr.bf16.mxu0 0
  %136 = vmatpush1.bf16.msra.mxu0 0
  %137 = vmatprep.subr.bf16.mxu0 0
  %138 = vmatpush1.bf16.msra.mxu0 0
  %139 = vmatprep.subr.bf16.mxu0 0
  %140 = vmatpush1.bf16.msra.mxu0 0
  %141 = vmatprep.subr.bf16.mxu0 0
  %142 = vmatpush1.bf16.msra.mxu0 0
  %143 = vmatprep.mubr.bf16.mxu0 0
  %144 = vmatmul.mubr.bf16.gmra.mrb[0].mxu0 %v55
  %v145 = vpop.f32.mrb[0].mxu0
  %v146 = vadd.f32 0.0, %v145
  %v147 = vpop.f32.mrb[0].mxu0
  %v148 = vpop.f32.mrb[0].mxu0
  %v149 = vadd.f32 0.0, %v148
  %v150 = vpop.f32.mrb[0].mxu0
  %151 = vmatprep.mubr.bf16.mxu0 0
  %152 = vmatmul.mubr.bf16.gmra.mrb[0].mxu0 %v56
  %v153 = vpop.f32.mrb[0].mxu0
  %v154 = vadd.f32 0.0, %v153
  %v155 = vpop.f32.mrb[0].mxu0
  %v156 = vpop.f32.mrb[0].mxu0
  %v157 = vadd.f32 0.0, %v156
  %v158 = vpop.f32.mrb[0].mxu0
  %159 = vmatprep.mubr.bf16.mxu0 0
  %160 = vmatmul.mubr.bf16.gmra.mrb[0].mxu0 %v57
  %v161 = vpop.f32.mrb[0].mxu0
  %v162 = vadd.f32 0.0, %v161
  %v163 = vpop.f32.mrb[0].mxu0
  %v164 = vpop.f32.mrb[0].mxu0
  %v165 = vadd.f32 0.0, %v164
  %v166 = vpop.f32.mrb[0].mxu0
  %167 = vmatprep.mubr.bf16.mxu0 0
  %168 = vmatmul.mubr.bf16.gmra.mrb[0].mxu0 %v58
  %v169 = vpop.f32.mrb[0].mxu0
  %v170 = vadd.f32 0.0, %v169
  %v171 = vpop.f32.mrb[0].mxu0
  %v172 = vpop.f32.mrb[0].mxu0
  %v173 = vadd.f32 0.0, %v172
  %v174 = vpop.f32.mrb[0].mxu0
  %175 = vdwg.mxu0
  %v176 = vpack.c.bf16 %v149, %v146
  %v177 = vpack.c.bf16 %v157, %v154
  %v178 = vpack.c.bf16 %v165, %v162
  %v179 = vpack.c.bf16 %v173, %v170
  %v184 = vunpack.c.l.b16 %v176
  %v185 = vunpack.c.h.b16 %v176
  %v186 = vunpack.c.l.b16 %v177
  %v187 = vunpack.c.h.b16 %v177
  %v188 = vunpack.c.l.b16 %v178
  %v189 = vunpack.c.h.b16 %v178
  %v190 = vunpack.c.l.b16 %v179
  %v191 = vunpack.c.h.b16 %v179
  %v192 = vpack.c.b16 %v184, %v184
  %v193 = vpack.c.b16 %v185, %v185
  %v194 = vpack.c.b16 %v186, %v186
  %v195 = vpack.c.b16 %v187, %v187
  %v196 = vpack.c.b16 %v188, %v188
  %v197 = vpack.c.b16 %v189, %v189
  %v198 = vpack.c.b16 %v190, %v190
  %v199 = vpack.c.b16 %v191, %v191
  %vm208 = vcmask 60416
  %209 = vst.msk [vmem:[%s2] sm:$0xf] %vm208, %v192
  %210 = vst.msk [vmem:[%s2 + $0x4] sm:$0xf] %vm208, %v193
  %211 = vst.msk [vmem:[%s2 + $0x8] sm:$0xf] %vm208, %v194
  %212 = vst.msk [vmem:[%s2 + $0xc] sm:$0xf] %vm208, %v195
  %213 = vst.msk [vmem:[%s2 + $0x10] sm:$0xf] %vm208, %v196
  %214 = vst.msk [vmem:[%s2 + $0x14] sm:$0xf] %vm208, %v197
  %215 = vst.msk [vmem:[%s2 + $0x18] sm:$0xf] %vm208, %v198
  %216 = vst.msk [vmem:[%s2 + $0x1c] sm:$0xf] %vm208, %v199
  %p217 = scmp.eq.s32.totalorder 0, 0
  // Predicated region
  $region10: #{decoder_forward.13} parent=0 // pred_check
    %p218 = pneg %p217
  $region11: #{decoder_forward.13} parent=0 // pred_check_branch
    %220 = sbr.rel (%p218) target = $region13
  $region12: #{decoder_forward.13} parent=0 // pred_region
    %vm221 = vcmask 7168
    %222 = vst.msk [vmem:[%s3] sm:$0xff] %vm221, 0.0
    %223 = vst.msk [vmem:[%s3 + $0x8] sm:$0xff] %vm221, 0.0
    %224 = vst.msk [vmem:[%s3 + $0x10] sm:$0xff] %vm221, 0.0
    %225 = vst.msk [vmem:[%s3 + $0x18] sm:$0xff] %vm221, 0.0
    %226 = vst.msk [vmem:[%s3 + $0x20] sm:$0xff] %vm221, 0.0
    %227 = vst.msk [vmem:[%s3 + $0x28] sm:$0xff] %vm221, 0.0
    %228 = vst.msk [vmem:[%s3 + $0x30] sm:$0xff] %vm221, 0.0
    %229 = vst.msk [vmem:[%s3 + $0x38] sm:$0xff] %vm221, 0.0
    %230 = vst.msk [vmem:[%s4] sm:$0xff] %vm221, 0.0
    %231 = vst.msk [vmem:[%s4 + $0x8] sm:$0xff] %vm221, 0.0
    %232 = vst.msk [vmem:[%s4 + $0x10] sm:$0xff] %vm221, 0.0
    %233 = vst.msk [vmem:[%s4 + $0x18] sm:$0xff] %vm221, 0.0
    %234 = vst.msk [vmem:[%s4 + $0x20] sm:$0xff] %vm221, 0.0
    %235 = vst.msk [vmem:[%s4 + $0x28] sm:$0xff] %vm221, 0.0
    %236 = vst.msk [vmem:[%s4 + $0x30] sm:$0xff] %vm221, 0.0
    %237 = vst.msk [vmem:[%s4 + $0x38] sm:$0xff] %vm221, 0.0
  $region13: #{decoder_forward.13} parent=0 // pred_fallthru
    _
  %v238 = vld [vmem:[%s3] sm:$0xff]
  %v239 = vld [vmem:[%s3 + $0x8] sm:$0xff]
  %v240 = vld [vmem:[%s3 + $0x10] sm:$0xff]
  %v241 = vld [vmem:[%s3 + $0x18] sm:$0xff]
  %v242 = vld [vmem:[%s3 + $0x20] sm:$0xff]
  %v243 = vld [vmem:[%s3 + $0x28] sm:$0xff]
  %v244 = vld [vmem:[%s3 + $0x30] sm:$0xff]
  %v245 = vld [vmem:[%s3 + $0x38] sm:$0xff]
  %vm246 = vcmask 64512
  %v247 = vsel %vm246, %v146, 0.0
  %248 = vadd.xlane.f32.xlu0 %v247
  %v249 = vpop.xlane.xlu0 %248
  %v250 = vsel %vm246, %v149, 0.0
  %251 = vadd.xlane.f32.xlu0 %v250
  %v252 = vpop.xlane.xlu0 %251
  %v253 = vsel %vm246, %v154, 0.0
  %254 = vadd.xlane.f32.xlu0 %v253
  %v255 = vpop.xlane.xlu0 %254
  %v256 = vsel %vm246, %v157, 0.0
  %257 = vadd.xlane.f32.xlu0 %v256
  %v258 = vpop.xlane.xlu0 %257
  %v259 = vsel %vm246, %v162, 0.0
  %260 = vadd.xlane.f32.xlu0 %v259
  %v261 = vpop.xlane.xlu0 %260
  %v262 = vsel %vm246, %v165, 0.0
  %263 = vadd.xlane.f32.xlu0 %v262
  %v264 = vpop.xlane.xlu0 %263
  %v265 = vsel %vm246, %v170, 0.0
  %266 = vadd.xlane.f32.xlu0 %v265
  %v267 = vpop.xlane.xlu0 %266
  %v268 = vsel %vm246, %v173, 0.0
  %269 = vadd.xlane.f32.xlu0 %v268
  %v270 = vpop.xlane.xlu0 %269
  %v271 = vadd.f32 %v238, %v249
  %v272 = vadd.f32 %v239, %v252
  %v273 = vadd.f32 %v240, %v255
  %v274 = vadd.f32 %v241, %v258
  %v275 = vadd.f32 %v242, %v261
  %v276 = vadd.f32 %v243, %v264
  %v277 = vadd.f32 %v244, %v267
  %v278 = vadd.f32 %v245, %v270
  %vm279 = vcmask 7168
  %280 = vst.msk [vmem:[%s3] sm:$0xff] %vm279, %v271
  %281 = vst.msk [vmem:[%s3 + $0x8] sm:$0xff] %vm279, %v272
  %282 = vst.msk [vmem:[%s3 + $0x10] sm:$0xff] %vm279, %v273
  %283 = vst.msk [vmem:[%s3 + $0x18] sm:$0xff] %vm279, %v274
  %284 = vst.msk [vmem:[%s3 + $0x20] sm:$0xff] %vm279, %v275
  %285 = vst.msk [vmem:[%s3 + $0x28] sm:$0xff] %vm279, %v276
  %286 = vst.msk [vmem:[%s3 + $0x30] sm:$0xff] %vm279, %v277
  %287 = vst.msk [vmem:[%s3 + $0x38] sm:$0xff] %vm279, %v278
  %v288 = vld [vmem:[%s4] sm:$0xff]
  %v289 = vld [vmem:[%s4 + $0x8] sm:$0xff]
  %v290 = vld [vmem:[%s4 + $0x10] sm:$0xff]
  %v291 = vld [vmem:[%s4 + $0x18] sm:$0xff]
  %v292 = vld [vmem:[%s4 + $0x20] sm:$0xff]
  %v293 = vld [vmem:[%s4 + $0x28] sm:$0xff]
  %v294 = vld [vmem:[%s4 + $0x30] sm:$0xff]
  %v295 = vld [vmem:[%s4 + $0x38] sm:$0xff]
  %v296 = vmul.f32 %v146, %v146
  %v297 = vmul.f32 %v149, %v149
  %v298 = vmul.f32 %v154, %v154
  %v299 = vmul.f32 %v157, %v157
  %v300 = vmul.f32 %v162, %v162
  %v301 = vmul.f32 %v165, %v165
  %v302 = vmul.f32 %v170, %v170
  %v303 = vmul.f32 %v173, %v173
  %v304 = vsel %vm246, %v296, 0.0
  %305 = vadd.xlane.f32.xlu0 %v304
  %v306 = vpop.xlane.xlu0 %305
  %v307 = vsel %vm246, %v297, 0.0
  %308 = vadd.xlane.f32.xlu0 %v307
  %v309 = vpop.xlane.xlu0 %308
  %v310 = vsel %vm246, %v298, 0.0
  %311 = vadd.xlane.f32.xlu0 %v310
  %v312 = vpop.xlane.xlu0 %311
  %v313 = vsel %vm246, %v299, 0.0
  %314 = vadd.xlane.f32.xlu0 %v313
  %v315 = vpop.xlane.xlu0 %314
  %v316 = vsel %vm246, %v300, 0.0
  %317 = vadd.xlane.f32.xlu0 %v316
  %v318 = vpop.xlane.xlu0 %317
  %v319 = vsel %vm246, %v301, 0.0
  %320 = vadd.xlane.f32.xlu0 %v319
  %v321 = vpop.xlane.xlu0 %320
  %v322 = vsel %vm246, %v302, 0.0
  %323 = vadd.xlane.f32.xlu0 %v322
  %v324 = vpop.xlane.xlu0 %323
  %v325 = vsel %vm246, %v303, 0.0
  %326 = vadd.xlane.f32.xlu0 %v325
  %v327 = vpop.xlane.xlu0 %326
  %v328 = vadd.f32 %v288, %v306
  %v329 = vadd.f32 %v289, %v309
  %v330 = vadd.f32 %v290, %v312
  %v331 = vadd.f32 %v291, %v315
  %v332 = vadd.f32 %v292, %v318
  %v333 = vadd.f32 %v293, %v321
  %v334 = vadd.f32 %v294, %v324
  %v335 = vadd.f32 %v295, %v327
  %336 = vst.msk [vmem:[%s4] sm:$0xff] %vm279, %v328
  %337 = vst.msk [vmem:[%s4 + $0x8] sm:$0xff] %vm279, %v329
  %338 = vst.msk [vmem:[%s4 + $0x10] sm:$0xff] %vm279, %v330
  %339 = vst.msk [vmem:[%s4 + $0x18] sm:$0xff] %vm279, %v331
  %340 = vst.msk [vmem:[%s4 + $0x20] sm:$0xff] %vm279, %v332
  %341 = vst.msk [vmem:[%s4 + $0x28] sm:$0xff] %vm279, %v333
  %342 = vst.msk [vmem:[%s4 + $0x30] sm:$0xff] %vm279, %v334
  %343 = vst.msk [vmem:[%s4 + $0x38] sm:$0xff] %vm279, %v335
  // Predicated region
  $region14: #{decoder_forward.13} parent=0 // pred_check
    _
  $region15: #{decoder_forward.13} parent=0 // pred_check_branch
    %345 = sbr.rel (0) target = $region17
  $region16: #{decoder_forward.13} parent=0 // pred_region
    _
  $region17: #{decoder_forward.13} parent=0 // pred_fallthru
    _
  // Predicated region
  $region18: #{decoder_forward.13} parent=0 // pred_check
    _
  $region19: #{decoder_forward.13} parent=0 // pred_check_branch
    %347 = sbr.rel (0) target = $region21
  $region20: #{decoder_forward.13} parent=0 // pred_region
    _
  $region21: #{decoder_forward.13} parent=0 // pred_fallthru
    _
  // Predicated region
  $region22: #{decoder_forward.13} parent=0 // pred_check
    _
  $region23: #{decoder_forward.13} parent=0 // pred_check_branch
    %349 = sbr.rel (0) target = $region25
  $region24: #{decoder_forward.13} parent=0 // pred_region
    _
  $region25: #{decoder_forward.13} parent=0 // pred_fallthru
    _
  // Predicated region
  $region26: #{decoder_forward.13} parent=0 // pred_check
    _
  $region27: #{decoder_forward.13} parent=0 // pred_check_branch
    %351 = sbr.rel (0) target = $region29
  $region28: #{decoder_forward.13} parent=0 // pred_region
    _
  $region29: #{decoder_forward.13} parent=0 // pred_fallthru
    _
  // Predicated region
  $region30: #{decoder_forward.13} parent=0 // pred_check
    _
  $region31: #{decoder_forward.13} parent=0 // pred_check_branch
    %353 = sbr.rel (0) target = $region33
  $region32: #{decoder_forward.13} parent=0 // pred_region
    _
  $region33: #{decoder_forward.13} parent=0 // pred_fallthru
    _
  // Predicated region
  $region34: #{decoder_forward.13} parent=0 // pred_check
    _
  $region35: #{decoder_forward.13} parent=0 // pred_check_branch
    %355 = sbr.rel (0) target = $region37
  $region36: #{decoder_forward.13} parent=0 // pred_region
    _
  $region37: #{decoder_forward.13} parent=0 // pred_fallthru
    _

// kernel: tile.63
$region0: #{tile.63}
  #allocation0 [shape = 's32[1]{0}', space=sflag, size = 0x4, scoped, tag = 'scoped memory for tile.63']
  %s0 = inlined_call_operand.vmem [shape: f32[8], index: 0, kind: input, shape index: {}]
  %s1 = inlined_call_operand.vmem [shape: f32[4,8], index: 1, kind: output, shape index: {}]
  // Predicated region
  $region2: #{tile.63} parent=0 // pred_check
    _
  $region3: #{tile.63} parent=0 // pred_check_branch
    %3 = sbr.rel (0) target = $region5
  $region4: #{tile.63} parent=0 // pred_region
    _
  $region5: #{tile.63} parent=0 // pred_fallthru
    _
  %v4 = vld [vmem:[%s0] ss:$0 sm:$0xff]
  %5 = vst [vmem:[%s1] sm:$0xf] %v4

// kernel: tile.2
$region0: #{tile.2}
  %s0 = inlined_call_operand.vmem [shape: f32[4,8], index: 0, kind: input, shape index: {}]
  %s1 = inlined_call_operand.vmem [shape: f32[32,1], index: 1, kind: output, shape index: {}]
  $region1: #{tile.2} parent=0
    #allocation0 [shape = 'u8[4096]{0}', space=vmem, size = 0x1000, scoped, tag = 'scoped mem for input reshape']
    %s3 = sshllo.u32 0, 4
    %v4 = vld [vmem:[%s0] sm:%s3]
    %5 = vst [vmem:[#allocation0] sm:%s3] %v4
    %v6 = vld [vmem:[#allocation0] sm:$0xf]
    %vm7 = vcmask 7168
    %8 = vst.msk [vmem:[%s1] ss:$8 sm:$0xf] %vm7, %v6
    %v9 = vld [vmem:[#allocation0] sm:$0xf]
    %10 = vrot.lane.b32.xlu0 %v9, 127
    %v11 = vpop.permute.xlu0 %10
    %vm12 = vcmask 7168
    %s13 = scalar_lea.vmem %s1, 1
    %14 = vst.msk [vmem:[%s13] ss:$8 sm:$0xf] %vm12, %v11
    %v15 = vld [vmem:[#allocation0] sm:$0xf]
    %16 = vrot.lane.b32.xlu0 %v15, 126
    %v17 = vpop.permute.xlu0 %16
    %vm18 = vcmask 7168
    %s19 = scalar_lea.vmem %s1, 2
    %20 = vst.msk [vmem:[%s19] ss:$8 sm:$0xf] %vm18, %v17
    %v21 = vld [vmem:[#allocation0] sm:$0xf]
    %22 = vrot.lane.b32.xlu0 %v21, 125
    %v23 = vpop.permute.xlu0 %22
    %vm24 = vcmask 7168
    %s25 = scalar_lea.vmem %s1, 3
    %26 = vst.msk [vmem:[%s25] ss:$8 sm:$0xf] %vm24, %v23
    %v27 = vld [vmem:[#allocation0] sm:$0xf]
    %28 = vrot.lane.b32.xlu0 %v27, 124
    %v29 = vpop.permute.xlu0 %28
    %vm30 = vcmask 7168
    %s31 = scalar_lea.vmem %s1, 4
    %32 = vst.msk [vmem:[%s31] ss:$8 sm:$0xf] %vm30, %v29
    %v33 = vld [vmem:[#allocation0] sm:$0xf]
    %34 = vrot.lane.b32.xlu0 %v33, 123
    %v35 = vpop.permute.xlu0 %34
    %vm36 = vcmask 7168
    %s37 = scalar_lea.vmem %s1, 5
    %38 = vst.msk [vmem:[%s37] ss:$8 sm:$0xf] %vm36, %v35
    %v39 = vld [vmem:[#allocation0] sm:$0xf]
    %40 = vrot.lane.b32.xlu0 %v39, 122
    %v41 = vpop.permute.xlu0 %40
    %vm42 = vcmask 7168
    %s43 = scalar_lea.vmem %s1, 6
    %44 = vst.msk [vmem:[%s43] ss:$8 sm:$0xf] %vm42, %v41
    %v45 = vld [vmem:[#allocation0] sm:$0xf]
    %46 = vrot.lane.b32.xlu0 %v45, 121
    %v47 = vpop.permute.xlu0 %46
    %vm48 = vcmask 7168
    %s49 = scalar_lea.vmem %s1, 7
    %50 = vst.msk [vmem:[%s49] ss:$8 sm:$0xf] %vm48, %v47

// kernel: decoder_forward.15
$region0: #{decoder_forward.15}
  #allocation0 [shape = 'u32[]', space=smem, size = 0x4, offset = 0x4, fixed_abs, tag = 'smem constant byte address 0x4 - core index']
  #allocation1 [shape = 'u32[144,128]{1,0:T(1,128)}', space=vmem, size = 0x12000, scoped, tag = 'internal scratch']
  %s0 = inlined_call_operand.vmem [shape: bf16[64,32], index: 0, kind: input, shape index: {}]
  %s1 = inlined_call_operand.vmem [shape: bf16[32,64], index: 1, kind: input, shape index: {}]
  %s2 = inlined_call_operand.vmem [shape: bf16[32,32], index: 2, kind: output, shape index: {0}]
  %s3 = inlined_call_operand.vmem [shape: f32[32,1], index: 3, kind: output, shape index: {1}]
  %s4 = inlined_call_operand.vmem [shape: f32[32,1], index: 4, kind: output, shape index: {2}]
  %5 = xla_tuple %s2, %s3, %s4
  %s6 = sld [smem:[#allocation0]]
  $region38: #{decoder_forward.15} parent=0
    _
  %s8 = ssub.s32 1, %s6
  %s9 = scalar_select 0, %s8, %s6
  // Predicated region
  $region2: #{decoder_forward.15} parent=0 // pred_check
    _
  $region3: #{decoder_forward.15} parent=0 // pred_check_branch
    %11 = sbr.rel (0) target = $region5
  $region4: #{decoder_forward.15} parent=0 // pred_region
    _
  $region5: #{decoder_forward.15} parent=0 // pred_fallthru
    _
  // Predicated region
  $region6: #{decoder_forward.15} parent=0 // pred_check
    _
  $region7: #{decoder_forward.15} parent=0 // pred_check_branch
    %13 = sbr.rel (0) target = $region9
  $region8: #{decoder_forward.15} parent=0 // pred_region
    _
  $region9: #{decoder_forward.15} parent=0 // pred_fallthru
    _
  %v15 = vld [vmem:[%s1] sm:$0xf]
  %v16 = vld [vmem:[%s1 + $0x4] sm:$0xf]
  %v17 = vld [vmem:[%s1 + $0x8] sm:$0xf]
  %v18 = vld [vmem:[%s1 + $0xc] sm:$0xf]
  %v19 = vld [vmem:[%s0] sm:$0xf]
  %v20 = vld [vmem:[%s0 + $0x4] sm:$0xf]
  %v21 = vld [vmem:[%s0 + $0x8] sm:$0xf]
  %v22 = vld [vmem:[%s0 + $0xc] sm:$0xf]
  %v23 = vld [vmem:[%s0 + $0x10] sm:$0xf]
  %v24 = vld [vmem:[%s0 + $0x14] sm:$0xf]
  %v25 = vld [vmem:[%s0 + $0x18] sm:$0xf]
  %v26 = vld [vmem:[%s0 + $0x1c] sm:$0xf]
  %v31 = vunpack.c.l.b16 %v15
  %v32 = vunpack.c.l.b16 %v16
  %v33 = vunpack.c.l.b16 %v17
  %v34 = vunpack.c.l.b16 %v18
  %v35 = vpack.c.b16 %v32, %v31
  %v36 = vpack.c.b16 %v34, %v33
  %v45 = vunpack.c.l.b16 %v19
  %v46 = vunpack.c.l.b16 %v20
  %v47 = vunpack.c.l.b16 %v21
  %v48 = vunpack.c.l.b16 %v22
  %v49 = vunpack.c.l.b16 %v23
  %v50 = vunpack.c.l.b16 %v24
  %v51 = vunpack.c.l.b16 %v25
  %v52 = vunpack.c.l.b16 %v26
  %v53 = vpack.c.b16 %v46, %v45
  %v54 = vpack.c.b16 %v48, %v47
  %v55 = vpack.c.b16 %v50, %v49
  %v56 = vpack.c.b16 %v52, %v51
  %vm61 = vcmask 523264
  %v63 = vsel %vm61, %v35, 0
  %v66 = vsel %vm61, %v36, 0
  %68 = vmatprep.subr.bf16.mxu0 0
  %69 = vmatpush1.bf16.msra.mxu0 %v53
  %70 = vmatprep.subr.bf16.mxu0 0
  %71 = vmatpush1.bf16.msra.mxu0 %v54
  %72 = vmatprep.subr.bf16.mxu0 0
  %73 = vmatpush1.bf16.msra.mxu0 %v55
  %74 = vmatprep.subr.bf16.mxu0 0
  %75 = vmatpush1.bf16.msra.mxu0 %v56
  %76 = vmatprep.subr.bf16.mxu0 0
  %77 = vmatpush1.bf16.msra.mxu0 0
  %78 = vmatprep.subr.bf16.mxu0 0
  %79 = vmatpush1.bf16.msra.mxu0 0
  %80 = vmatprep.subr.bf16.mxu0 0
  %81 = vmatpush1.bf16.msra.mxu0 0
  %82 = vmatprep.subr.bf16.mxu0 0
  %83 = vmatpush1.bf16.msra.mxu0 0
  %84 = vmatprep.subr.bf16.mxu0 0
  %85 = vmatpush1.bf16.msra.mxu0 0
  %86 = vmatprep.subr.bf16.mxu0 0
  %87 = vmatpush1.bf16.msra.mxu0 0
  %88 = vmatprep.subr.bf16.mxu0 0
  %89 = vmatpush1.bf16.msra.mxu0 0
  %90 = vmatprep.subr.bf16.mxu0 0
  %91 = vmatpush1.bf16.msra.mxu0 0
  %92 = vmatprep.subr.bf16.mxu0 0
  %93 = vmatpush1.bf16.msra.mxu0 0
  %94 = vmatprep.subr.bf16.mxu0 0
  %95 = vmatpush1.bf16.msra.mxu0 0
  %96 = vmatprep.subr.bf16.mxu0 0
  %97 = vmatpush1.bf16.msra.mxu0 0
  %98 = vmatprep.subr.bf16.mxu0 0
  %99 = vmatpush1.bf16.msra.mxu0 0
  %100 = vmatprep.mubr.bf16.mxu0 0
  %101 = vmatmul.mubr.bf16.gmra.mrb[0].mxu0 %v63
  %v102 = vpop.f32.mrb[0].mxu0
  %v103 = vadd.f32 0.0, %v102
  %v104 = vpop.f32.mrb[0].mxu0
  %v105 = vpop.f32.mrb[0].mxu0
  %v106 = vadd.f32 0.0, %v105
  %v107 = vpop.f32.mrb[0].mxu0
  %108 = vmatprep.mubr.bf16.mxu0 0
  %109 = vmatmul.mubr.bf16.gmra.mrb[0].mxu0 %v66
  %v110 = vpop.f32.mrb[0].mxu0
  %v111 = vadd.f32 0.0, %v110
  %v112 = vpop.f32.mrb[0].mxu0
  %v113 = vpop.f32.mrb[0].mxu0
  %v114 = vadd.f32 0.0, %v113
  %v115 = vpop.f32.mrb[0].mxu0
  %116 = vdwg.mxu0
  %v117 = vpack.c.bf16 %v106, %v103
  %v118 = vpack.c.bf16 %v114, %v111
  %v121 = vunpack.c.l.b16 %v117
  %v122 = vunpack.c.h.b16 %v117
  %v123 = vunpack.c.l.b16 %v118
  %v124 = vunpack.c.h.b16 %v118
  %v125 = vpack.c.b16 %v121, %v121
  %v126 = vpack.c.b16 %v122, %v122
  %v127 = vpack.c.b16 %v123, %v123
  %v128 = vpack.c.b16 %v124, %v124
  %vm133 = vcmask 257024
  %134 = vst.msk [vmem:[%s2] sm:$0xf] %vm133, %v125
  %135 = vst.msk [vmem:[%s2 + $0x4] sm:$0xf] %vm133, %v126
  %136 = vst.msk [vmem:[%s2 + $0x8] sm:$0xf] %vm133, %v127
  %137 = vst.msk [vmem:[%s2 + $0xc] sm:$0xf] %vm133, %v128
  %p138 = scmp.eq.s32.totalorder 0, 0
  // Predicated region
  $region10: #{decoder_forward.15} parent=0 // pred_check
    %p139 = pneg %p138
  $region11: #{decoder_forward.15} parent=0 // pred_check_branch
    %141 = sbr.rel (%p139) target = $region13
  $region12: #{decoder_forward.15} parent=0 // pred_region
    %vm142 = vcmask 7168
    %143 = vst.msk [vmem:[%s3] sm:$0xff] %vm142, 0.0
    %144 = vst.msk [vmem:[%s3 + $0x8] sm:$0xff] %vm142, 0.0
    %145 = vst.msk [vmem:[%s3 + $0x10] sm:$0xff] %vm142, 0.0
    %146 = vst.msk [vmem:[%s3 + $0x18] sm:$0xff] %vm142, 0.0
    %147 = vst.msk [vmem:[%s4] sm:$0xff] %vm142, 0.0
    %148 = vst.msk [vmem:[%s4 + $0x8] sm:$0xff] %vm142, 0.0
    %149 = vst.msk [vmem:[%s4 + $0x10] sm:$0xff] %vm142, 0.0
    %150 = vst.msk [vmem:[%s4 + $0x18] sm:$0xff] %vm142, 0.0
  $region13: #{decoder_forward.15} parent=0 // pred_fallthru
    _
  %v151 = vld [vmem:[%s3] sm:$0xff]
  %v152 = vld [vmem:[%s3 + $0x8] sm:$0xff]
  %v153 = vld [vmem:[%s3 + $0x10] sm:$0xff]
  %v154 = vld [vmem:[%s3 + $0x18] sm:$0xff]
  %vm155 = vcmask 261120
  %v156 = vsel %vm155, %v103, 0.0
  %157 = vadd.xlane.f32.xlu0 %v156
  %v158 = vpop.xlane.xlu0 %157
  %v159 = vsel %vm155, %v106, 0.0
  %160 = vadd.xlane.f32.xlu0 %v159
  %v161 = vpop.xlane.xlu0 %160
  %v162 = vsel %vm155, %v111, 0.0
  %163 = vadd.xlane.f32.xlu0 %v162
  %v164 = vpop.xlane.xlu0 %163
  %v165 = vsel %vm155, %v114, 0.0
  %166 = vadd.xlane.f32.xlu0 %v165
  %v167 = vpop.xlane.xlu0 %166
  %v168 = vadd.f32 %v151, %v158
  %v169 = vadd.f32 %v152, %v161
  %v170 = vadd.f32 %v153, %v164
  %v171 = vadd.f32 %v154, %v167
  %vm172 = vcmask 7168
  %173 = vst.msk [vmem:[%s3] sm:$0xff] %vm172, %v168
  %174 = vst.msk [vmem:[%s3 + $0x8] sm:$0xff] %vm172, %v169
  %175 = vst.msk [vmem:[%s3 + $0x10] sm:$0xff] %vm172, %v170
  %176 = vst.msk [vmem:[%s3 + $0x18] sm:$0xff] %vm172, %v171
  %v177 = vld [vmem:[%s4] sm:$0xff]
  %v178 = vld [vmem:[%s4 + $0x8] sm:$0xff]
  %v179 = vld [vmem:[%s4 + $0x10] sm:$0xff]
  %v180 = vld [vmem:[%s4 + $0x18] sm:$0xff]
  %v181 = vmul.f32 %v103, %v103
  %v182 = vmul.f32 %v106, %v106
  %v183 = vmul.f32 %v111, %v111
  %v184 = vmul.f32 %v114, %v114
  %v185 = vsel %vm155, %v181, 0.0
  %186 = vadd.xlane.f32.xlu0 %v185
  %v187 = vpop.xlane.xlu0 %186
  %v188 = vsel %vm155, %v182, 0.0
  %189 = vadd.xlane.f32.xlu0 %v188
  %v190 = vpop.xlane.xlu0 %189
  %v191 = vsel %vm155, %v183, 0.0
  %192 = vadd.xlane.f32.xlu0 %v191
  %v193 = vpop.xlane.xlu0 %192
  %v194 = vsel %vm155, %v184, 0.0
  %195 = vadd.xlane.f32.xlu0 %v194
  %v196 = vpop.xlane.xlu0 %195
  %v197 = vadd.f32 %v177, %v187
  %v198 = vadd.f32 %v178, %v190
  %v199 = vadd.f32 %v179, %v193
  %v200 = vadd.f32 %v180, %v196
  %201 = vst.msk [vmem:[%s4] sm:$0xff] %vm172, %v197
  %202 = vst.msk [vmem:[%s4 + $0x8] sm:$0xff] %vm172, %v198
  %203 = vst.msk [vmem:[%s4 + $0x10] sm:$0xff] %vm172, %v199
  %204 = vst.msk [vmem:[%s4 + $0x18] sm:$0xff] %vm172, %v200
  // Predicated region
  $region14: #{decoder_forward.15} parent=0 // pred_check
    _
  $region15: #{decoder_forward.15} parent=0 // pred_check_branch
    %206 = sbr.rel (0) target = $region17
  $region16: #{decoder_forward.15} parent=0 // pred_region
    _
  $region17: #{decoder_forward.15} parent=0 // pred_fallthru
    _
  // Predicated region
  $region18: #{decoder_forward.15} parent=0 // pred_check
    _
  $region19: #{decoder_forward.15} parent=0 // pred_check_branch
    %208 = sbr.rel (0) target = $region21
  $region20: #{decoder_forward.15} parent=0 // pred_region
    _
  $region21: #{decoder_forward.15} parent=0 // pred_fallthru
    _
  // Predicated region
  $region22: #{decoder_forward.15} parent=0 // pred_check
    _
  $region23: #{decoder_forward.15} parent=0 // pred_check_branch
    %210 = sbr.rel (0) target = $region25
  $region24: #{decoder_forward.15} parent=0 // pred_region
    _
  $region25: #{decoder_forward.15} parent=0 // pred_fallthru
    _
  // Predicated region
  $region26: #{decoder_forward.15} parent=0 // pred_check
    _
  $region27: #{decoder_forward.15} parent=0 // pred_check_branch
    %212 = sbr.rel (0) target = $region29
  $region28: #{decoder_forward.15} parent=0 // pred_region
    _
  $region29: #{decoder_forward.15} parent=0 // pred_fallthru
    _
  // Predicated region
  $region30: #{decoder_forward.15} parent=0 // pred_check
    _
  $region31: #{decoder_forward.15} parent=0 // pred_check_branch
    %214 = sbr.rel (0) target = $region33
  $region32: #{decoder_forward.15} parent=0 // pred_region
    _
  $region33: #{decoder_forward.15} parent=0 // pred_fallthru
    _
  // Predicated region
  $region34: #{decoder_forward.15} parent=0 // pred_check
    _
  $region35: #{decoder_forward.15} parent=0 // pred_check_branch
    %216 = sbr.rel (0) target = $region37
  $region36: #{decoder_forward.15} parent=0 // pred_region
    _
  $region37: #{decoder_forward.15} parent=0 // pred_fallthru
    _

// kernel: decoder_forward.16
$region0: #{decoder_forward.16}
  #allocation0 [shape = 'u32[]', space=smem, size = 0x4, offset = 0x4, fixed_abs, tag = 'smem constant byte address 0x4 - core index']
  #allocation1 [shape = 'u32[144,128]{1,0:T(1,128)}', space=vmem, size = 0x12000, scoped, tag = 'internal scratch']
  %s0 = inlined_call_operand.vmem [shape: bf16[32,32], index: 0, kind: input, shape index: {}]
  %s1 = inlined_call_operand.vmem [shape: f32[32,1], index: 1, kind: input, shape index: {}]
  %s2 = inlined_call_operand.vmem [shape: f32[32,1], index: 2, kind: input, shape index: {}]
  %s3 = inlined_call_operand.vmem [shape: bf16[32,32], index: 3, kind: output, shape index: {}]
  %s4 = sld [smem:[#allocation0]]
  $region22: #{decoder_forward.16} parent=0
    _
  %s6 = ssub.s32 1, %s4
  %s7 = scalar_select 0, %s6, %s4
  // Predicated region
  $region2: #{decoder_forward.16} parent=0 // pred_check
    _
  $region3: #{decoder_forward.16} parent=0 // pred_check_branch
    %9 = sbr.rel (0) target = $region5
  $region4: #{decoder_forward.16} parent=0 // pred_region
    _
  $region5: #{decoder_forward.16} parent=0 // pred_fallthru
    _
  // Predicated region
  $region6: #{decoder_forward.16} parent=0 // pred_check
    _
  $region7: #{decoder_forward.16} parent=0 // pred_check_branch
    %11 = sbr.rel (0) target = $region9
  $region8: #{decoder_forward.16} parent=0 // pred_region
    _
  $region9: #{decoder_forward.16} parent=0 // pred_fallthru
    _
  // Predicated region
  $region10: #{decoder_forward.16} parent=0 // pred_check
    _
  $region11: #{decoder_forward.16} parent=0 // pred_check_branch
    %13 = sbr.rel (0) target = $region13
  $region12: #{decoder_forward.16} parent=0 // pred_region
    _
  $region13: #{decoder_forward.16} parent=0 // pred_fallthru
    _
  %v14 = vld [vmem:[%s0] sm:$0xf]
  %v15 = vld [vmem:[%s0 + $0x4] sm:$0xf]
  %v16 = vld [vmem:[%s0 + $0x8] sm:$0xf]
  %v17 = vld [vmem:[%s0 + $0xc] sm:$0xf]
  %v18 = vunpack.c.l.bf16 %v14
  %v19 = vunpack.c.l.bf16 %v15
  %v20 = vunpack.c.l.bf16 %v16
  %v21 = vunpack.c.l.bf16 %v17
  %v22 = vld [vmem:[%s1] sm:$0xff]
  %v23 = vld [vmem:[%s1 + $0x8] sm:$0xff]
  %v24 = vld [vmem:[%s1 + $0x10] sm:$0xff]
  %v25 = vld [vmem:[%s1 + $0x18] sm:$0xff]
  %27 = vset.pattern.permute.xlu0 0
  %28 = vperm.xlu0 %27, %v22
  %v29 = vpop.permute.xlu0 %28
  %32 = vset.pattern.permute.xlu0 0
  %33 = vperm.xlu0 %32, %v23
  %v34 = vpop.permute.xlu0 %33
  %37 = vset.pattern.permute.xlu0 0
  %38 = vperm.xlu0 %37, %v24
  %v39 = vpop.permute.xlu0 %38
  %42 = vset.pattern.permute.xlu0 0
  %43 = vperm.xlu0 %42, %v25
  %v44 = vpop.permute.xlu0 %43
  %v46 = vmul.f32 %v18, %v29
  %v47 = vmul.f32 %v19, %v34
  %v48 = vmul.f32 %v20, %v39
  %v49 = vmul.f32 %v21, %v44
  %v50 = vld [vmem:[%s2] sm:$0xff]
  %v51 = vld [vmem:[%s2 + $0x8] sm:$0xff]
  %v52 = vld [vmem:[%s2 + $0x10] sm:$0xff]
  %v53 = vld [vmem:[%s2 + $0x18] sm:$0xff]
  %55 = vset.pattern.permute.xlu0 0
  %56 = vperm.xlu0 %55, %v50
  %v57 = vpop.permute.xlu0 %56
  %60 = vset.pattern.permute.xlu0 0
  %61 = vperm.xlu0 %60, %v51
  %v62 = vpop.permute.xlu0 %61
  %65 = vset.pattern.permute.xlu0 0
  %66 = vperm.xlu0 %65, %v52
  %v67 = vpop.permute.xlu0 %66
  %70 = vset.pattern.permute.xlu0 0
  %71 = vperm.xlu0 %70, %v53
  %v72 = vpop.permute.xlu0 %71
  %v74 = vadd.f32 %v46, %v57
  %v75 = vadd.f32 %v47, %v62
  %v76 = vadd.f32 %v48, %v67
  %v77 = vadd.f32 %v49, %v72
  %vm78 = vcmp.gt.f32.partialorder %v74, 0.0
  %vm79 = vcmp.gt.f32.partialorder %v75, 0.0
  %vm80 = vcmp.gt.f32.partialorder %v76, 0.0
  %vm81 = vcmp.gt.f32.partialorder %v77, 0.0
  %v82 = vmin.f32 %v74, 0.0
  %v83 = vmin.f32 %v75, 0.0
  %v84 = vmin.f32 %v76, 0.0
  %v85 = vmin.f32 %v77, 0.0
  %v86 = vmul.f32 %v82, 1.442695
  %v87 = vpow.pop %v86
  %v88 = vmul.f32 %v83, 1.442695
  %v89 = vpow.pop %v88
  %v90 = vmul.f32 %v84, 1.442695
  %v91 = vpow.pop %v90
  %v92 = vmul.f32 %v85, 1.442695
  %v93 = vpow.pop %v92
  %v94 = vsub.f32 %v87, 1.0
  %v95 = vsub.f32 %v89, 1.0
  %v96 = vsub.f32 %v91, 1.0
  %v97 = vsub.f32 %v93, 1.0
  %v98 = vsel %vm78, %v74, %v94
  %v99 = vsel %vm79, %v75, %v95
  %v100 = vsel %vm80, %v76, %v96
  %v101 = vsel %vm81, %v77, %v97
  %v102 = vpack.c.bf16 %v99, %v98
  %v103 = vpack.c.bf16 %v101, %v100
  %v106 = vunpack.c.l.b16 %v102
  %v107 = vunpack.c.h.b16 %v102
  %v108 = vunpack.c.l.b16 %v103
  %v109 = vunpack.c.h.b16 %v103
  %v110 = vpack.c.b16 %v106, %v106
  %v111 = vpack.c.b16 %v107, %v107
  %v112 = vpack.c.b16 %v108, %v108
  %v113 = vpack.c.b16 %v109, %v109
  %vm118 = vcmask 257024
  %119 = vst.msk [vmem:[%s3] sm:$0xf] %vm118, %v110
  %120 = vst.msk [vmem:[%s3 + $0x4] sm:$0xf] %vm118, %v111
  %121 = vst.msk [vmem:[%s3 + $0x8] sm:$0xf] %vm118, %v112
  %122 = vst.msk [vmem:[%s3 + $0xc] sm:$0xf] %vm118, %v113
  // Predicated region
  $region14: #{decoder_forward.16} parent=0 // pred_check
    _
  $region15: #{decoder_forward.16} parent=0 // pred_check_branch
    %124 = sbr.rel (0) target = $region17
  $region16: #{decoder_forward.16} parent=0 // pred_region
    _
  $region17: #{decoder_forward.16} parent=0 // pred_fallthru
    _
  // Predicated region
  $region18: #{decoder_forward.16} parent=0 // pred_check
    _
  $region19: #{decoder_forward.16} parent=0 // pred_check_branch
    %126 = sbr.rel (0) target = $region21
  $region20: #{decoder_forward.16} parent=0 // pred_region
    _
  $region21: #{decoder_forward.16} parent=0 // pred_fallthru
    _

// kernel: tile.73
$region0: #{tile.73}
  #allocation0 [shape = 's32[1]{0}', space=sflag, size = 0x4, scoped, tag = 'scoped memory for tile.73']
  %s0 = inlined_call_operand.vmem [shape: f32[4], index: 0, kind: input, shape index: {}]
  %s1 = inlined_call_operand.vmem [shape: f32[4,4], index: 1, kind: output, shape index: {}]
  // Predicated region
  $region2: #{tile.73} parent=0 // pred_check
    _
  $region3: #{tile.73} parent=0 // pred_check_branch
    %3 = sbr.rel (0) target = $region5
  $region4: #{tile.73} parent=0 // pred_region
    _
  $region5: #{tile.73} parent=0 // pred_fallthru
    _
  %v4 = vld [vmem:[%s0] ss:$0 sm:$0xff]
  %5 = vst [vmem:[%s1] sm:$0xf] %v4

// kernel: decoder_forward.14
$region0: #{decoder_forward.14}
  #allocation0 [shape = 'u32[]', space=smem, size = 0x4, offset = 0x4, fixed_abs, tag = 'smem constant byte address 0x4 - core index']
  #allocation1 [shape = 'u32[144,128]{1,0:T(1,128)}', space=vmem, size = 0x12000, scoped, tag = 'internal scratch']
  %s0 = inlined_call_operand.vmem [shape: bf16[64,8], index: 0, kind: input, shape index: {}]
  %s1 = inlined_call_operand.vmem [shape: f32[64,1], index: 1, kind: input, shape index: {}]
  %s2 = inlined_call_operand.vmem [shape: f32[64,1], index: 2, kind: input, shape index: {}]
  %s3 = inlined_call_operand.vmem [shape: bf16[64,8], index: 3, kind: output, shape index: {}]
  %s4 = sld [smem:[#allocation0]]
  $region22: #{decoder_forward.14} parent=0
    _
  %s6 = ssub.s32 1, %s4
  %s7 = scalar_select 0, %s6, %s4
  // Predicated region
  $region2: #{decoder_forward.14} parent=0 // pred_check
    _
  $region3: #{decoder_forward.14} parent=0 // pred_check_branch
    %9 = sbr.rel (0) target = $region5
  $region4: #{decoder_forward.14} parent=0 // pred_region
    _
  $region5: #{decoder_forward.14} parent=0 // pred_fallthru
    _
  // Predicated region
  $region6: #{decoder_forward.14} parent=0 // pred_check
    _
  $region7: #{decoder_forward.14} parent=0 // pred_check_branch
    %11 = sbr.rel (0) target = $region9
  $region8: #{decoder_forward.14} parent=0 // pred_region
    _
  $region9: #{decoder_forward.14} parent=0 // pred_fallthru
    _
  // Predicated region
  $region10: #{decoder_forward.14} parent=0 // pred_check
    _
  $region11: #{decoder_forward.14} parent=0 // pred_check_branch
    %13 = sbr.rel (0) target = $region13
  $region12: #{decoder_forward.14} parent=0 // pred_region
    _
  $region13: #{decoder_forward.14} parent=0 // pred_fallthru
    _
  %v14 = vld [vmem:[%s0] sm:$0xf]
  %v15 = vld [vmem:[%s0 + $0x4] sm:$0xf]
  %v16 = vld [vmem:[%s0 + $0x8] sm:$0xf]
  %v17 = vld [vmem:[%s0 + $0xc] sm:$0xf]
  %v18 = vld [vmem:[%s0 + $0x10] sm:$0xf]
  %v19 = vld [vmem:[%s0 + $0x14] sm:$0xf]
  %v20 = vld [vmem:[%s0 + $0x18] sm:$0xf]
  %v21 = vld [vmem:[%s0 + $0x1c] sm:$0xf]
  %v22 = vunpack.c.l.bf16 %v14
  %v23 = vunpack.c.l.bf16 %v15
  %v24 = vunpack.c.l.bf16 %v16
  %v25 = vunpack.c.l.bf16 %v17
  %v26 = vunpack.c.l.bf16 %v18
  %v27 = vunpack.c.l.bf16 %v19
  %v28 = vunpack.c.l.bf16 %v20
  %v29 = vunpack.c.l.bf16 %v21
  %v30 = vld [vmem:[%s1] sm:$0xff]
  %v31 = vld [vmem:[%s1 + $0x8] sm:$0xff]
  %v32 = vld [vmem:[%s1 + $0x10] sm:$0xff]
  %v33 = vld [vmem:[%s1 + $0x18] sm:$0xff]
  %v34 = vld [vmem:[%s1 + $0x20] sm:$0xff]
  %v35 = vld [vmem:[%s1 + $0x28] sm:$0xff]
  %v36 = vld [vmem:[%s1 + $0x30] sm:$0xff]
  %v37 = vld [vmem:[%s1 + $0x38] sm:$0xff]
  %39 = vset.pattern.permute.xlu0 0
  %40 = vperm.xlu0 %39, %v30
  %v41 = vpop.permute.xlu0 %40
  %44 = vset.pattern.permute.xlu0 0
  %45 = vperm.xlu0 %44, %v31
  %v46 = vpop.permute.xlu0 %45
  %49 = vset.pattern.permute.xlu0 0
  %50 = vperm.xlu0 %49, %v32
  %v51 = vpop.permute.xlu0 %50
  %54 = vset.pattern.permute.xlu0 0
  %55 = vperm.xlu0 %54, %v33
  %v56 = vpop.permute.xlu0 %55
  %59 = vset.pattern.permute.xlu0 0
  %60 = vperm.xlu0 %59, %v34
  %v61 = vpop.permute.xlu0 %60
  %64 = vset.pattern.permute.xlu0 0
  %65 = vperm.xlu0 %64, %v35
  %v66 = vpop.permute.xlu0 %65
  %69 = vset.pattern.permute.xlu0 0
  %70 = vperm.xlu0 %69, %v36
  %v71 = vpop.permute.xlu0 %70
  %74 = vset.pattern.permute.xlu0 0
  %75 = vperm.xlu0 %74, %v37
  %v76 = vpop.permute.xlu0 %75
  %v78 = vmul.f32 %v22, %v41
  %v79 = vmul.f32 %v23, %v46
  %v80 = vmul.f32 %v24, %v51
  %v81 = vmul.f32 %v25, %v56
  %v82 = vmul.f32 %v26, %v61
  %v83 = vmul.f32 %v27, %v66
  %v84 = vmul.f32 %v28, %v71
  %v85 = vmul.f32 %v29, %v76
  %v86 = vld [vmem:[%s2] sm:$0xff]
  %v87 = vld [vmem:[%s2 + $0x8] sm:$0xff]
  %v88 = vld [vmem:[%s2 + $0x10] sm:$0xff]
  %v89 = vld [vmem:[%s2 + $0x18] sm:$0xff]
  %v90 = vld [vmem:[%s2 + $0x20] sm:$0xff]
  %v91 = vld [vmem:[%s2 + $0x28] sm:$0xff]
  %v92 = vld [vmem:[%s2 + $0x30] sm:$0xff]
  %v93 = vld [vmem:[%s2 + $0x38] sm:$0xff]
  %95 = vset.pattern.permute.xlu0 0
  %96 = vperm.xlu0 %95, %v86
  %v97 = vpop.permute.xlu0 %96
  %100 = vset.pattern.permute.xlu0 0
  %101 = vperm.xlu0 %100, %v87
  %v102 = vpop.permute.xlu0 %101
  %105 = vset.pattern.permute.xlu0 0
  %106 = vperm.xlu0 %105, %v88
  %v107 = vpop.permute.xlu0 %106
  %110 = vset.pattern.permute.xlu0 0
  %111 = vperm.xlu0 %110, %v89
  %v112 = vpop.permute.xlu0 %111
  %115 = vset.pattern.permute.xlu0 0
  %116 = vperm.xlu0 %115, %v90
  %v117 = vpop.permute.xlu0 %116
  %120 = vset.pattern.permute.xlu0 0
  %121 = vperm.xlu0 %120, %v91
  %v122 = vpop.permute.xlu0 %121
  %125 = vset.pattern.permute.xlu0 0
  %126 = vperm.xlu0 %125, %v92
  %v127 = vpop.permute.xlu0 %126
  %130 = vset.pattern.permute.xlu0 0
  %131 = vperm.xlu0 %130, %v93
  %v132 = vpop.permute.xlu0 %131
  %v134 = vadd.f32 %v78, %v97
  %v135 = vadd.f32 %v79, %v102
  %v136 = vadd.f32 %v80, %v107
  %v137 = vadd.f32 %v81, %v112
  %v138 = vadd.f32 %v82, %v117
  %v139 = vadd.f32 %v83, %v122
  %v140 = vadd.f32 %v84, %v127
  %v141 = vadd.f32 %v85, %v132
  %vm142 = vcmp.gt.f32.partialorder %v134, 0.0
  %vm143 = vcmp.gt.f32.partialorder %v135, 0.0
  %vm144 = vcmp.gt.f32.partialorder %v136, 0.0
  %vm145 = vcmp.gt.f32.partialorder %v137, 0.0
  %vm146 = vcmp.gt.f32.partialorder %v138, 0.0
  %vm147 = vcmp.gt.f32.partialorder %v139, 0.0
  %vm148 = vcmp.gt.f32.partialorder %v140, 0.0
  %vm149 = vcmp.gt.f32.partialorder %v141, 0.0
  %v150 = vmin.f32 %v134, 0.0
  %v151 = vmin.f32 %v135, 0.0
  %v152 = vmin.f32 %v136, 0.0
  %v153 = vmin.f32 %v137, 0.0
  %v154 = vmin.f32 %v138, 0.0
  %v155 = vmin.f32 %v139, 0.0
  %v156 = vmin.f32 %v140, 0.0
  %v157 = vmin.f32 %v141, 0.0
  %v158 = vmul.f32 %v150, 1.442695
  %v159 = vpow.pop %v158
  %v160 = vmul.f32 %v151, 1.442695
  %v161 = vpow.pop %v160
  %v162 = vmul.f32 %v152, 1.442695
  %v163 = vpow.pop %v162
  %v164 = vmul.f32 %v153, 1.442695
  %v165 = vpow.pop %v164
  %v166 = vmul.f32 %v154, 1.442695
  %v167 = vpow.pop %v166
  %v168 = vmul.f32 %v155, 1.442695
  %v169 = vpow.pop %v168
  %v170 = vmul.f32 %v156, 1.442695
  %v171 = vpow.pop %v170
  %v172 = vmul.f32 %v157, 1.442695
  %v173 = vpow.pop %v172
  %v174 = vsub.f32 %v159, 1.0
  %v175 = vsub.f32 %v161, 1.0
  %v176 = vsub.f32 %v163, 1.0
  %v177 = vsub.f32 %v165, 1.0
  %v178 = vsub.f32 %v167, 1.0
  %v179 = vsub.f32 %v169, 1.0
  %v180 = vsub.f32 %v171, 1.0
  %v181 = vsub.f32 %v173, 1.0
  %v182 = vsel %vm142, %v134, %v174
  %v183 = vsel %vm143, %v135, %v175
  %v184 = vsel %vm144, %v136, %v176
  %v185 = vsel %vm145, %v137, %v177
  %v186 = vsel %vm146, %v138, %v178
  %v187 = vsel %vm147, %v139, %v179
  %v188 = vsel %vm148, %v140, %v180
  %v189 = vsel %vm149, %v141, %v181
  %v190 = vpack.c.bf16 %v183, %v182
  %v191 = vpack.c.bf16 %v185, %v184
  %v192 = vpack.c.bf16 %v187, %v186
  %v193 = vpack.c.bf16 %v189, %v188
  %v198 = vunpack.c.l.b16 %v190
  %v199 = vunpack.c.h.b16 %v190
  %v200 = vunpack.c.l.b16 %v191
  %v201 = vunpack.c.h.b16 %v191
  %v202 = vunpack.c.l.b16 %v192
  %v203 = vunpack.c.h.b16 %v192
  %v204 = vunpack.c.l.b16 %v193
  %v205 = vunpack.c.h.b16 %v193
  %v206 = vpack.c.b16 %v198, %v198
  %v207 = vpack.c.b16 %v199, %v199
  %v208 = vpack.c.b16 %v200, %v200
  %v209 = vpack.c.b16 %v201, %v201
  %v210 = vpack.c.b16 %v202, %v202
  %v211 = vpack.c.b16 %v203, %v203
  %v212 = vpack.c.b16 %v204, %v204
  %v213 = vpack.c.b16 %v205, %v205
  %vm222 = vcmask 60416
  %223 = vst.msk [vmem:[%s3] sm:$0xf] %vm222, %v206
  %224 = vst.msk [vmem:[%s3 + $0x4] sm:$0xf] %vm222, %v207
  %225 = vst.msk [vmem:[%s3 + $0x8] sm:$0xf] %vm222, %v208
  %226 = vst.msk [vmem:[%s3 + $0xc] sm:$0xf] %vm222, %v209
  %227 = vst.msk [vmem:[%s3 + $0x10] sm:$0xf] %vm222, %v210
  %228 = vst.msk [vmem:[%s3 + $0x14] sm:$0xf] %vm222, %v211
  %229 = vst.msk [vmem:[%s3 + $0x18] sm:$0xf] %vm222, %v212
  %230 = vst.msk [vmem:[%s3 + $0x1c] sm:$0xf] %vm222, %v213
  // Predicated region
  $region14: #{decoder_forward.14} parent=0 // pred_check
    _
  $region15: #{decoder_forward.14} parent=0 // pred_check_branch
    %232 = sbr.rel (0) target = $region17
  $region16: #{decoder_forward.14} parent=0 // pred_region
    _
  $region17: #{decoder_forward.14} parent=0 // pred_fallthru
    _
  // Predicated region
  $region18: #{decoder_forward.14} parent=0 // pred_check
    _
  $region19: #{decoder_forward.14} parent=0 // pred_check_branch
    %234 = sbr.rel (0) target = $region21
  $region20: #{decoder_forward.14} parent=0 // pred_region
    _
  $region21: #{decoder_forward.14} parent=0 // pred_fallthru
    _

// kernel: tile.4
$region0: #{tile.4}
  %s0 = inlined_call_operand.vmem [shape: f32[4,4], index: 0, kind: input, shape index: {}]
  %s1 = inlined_call_operand.vmem [shape: f32[16,1], index: 1, kind: output, shape index: {}]
  $region1: #{tile.4} parent=0
    #allocation0 [shape = 'u8[4096]{0}', space=vmem, size = 0x1000, scoped, tag = 'scoped mem for input reshape']
    %s3 = sshllo.u32 0, 4
    %v4 = vld [vmem:[%s0] sm:%s3]
    %5 = vst [vmem:[#allocation0] sm:%s3] %v4
    %v6 = vld [vmem:[#allocation0] sm:$0xf]
    %vm7 = vcmask 7168
    %8 = vst.msk [vmem:[%s1] ss:$4 sm:$0xf] %vm7, %v6
    %v9 = vld [vmem:[#allocation0] sm:$0xf]
    %10 = vrot.lane.b32.xlu0 %v9, 127
    %v11 = vpop.permute.xlu0 %10
    %vm12 = vcmask 7168
    %s13 = scalar_lea.vmem %s1, 1
    %14 = vst.msk [vmem:[%s13] ss:$4 sm:$0xf] %vm12, %v11
    %v15 = vld [vmem:[#allocation0] sm:$0xf]
    %16 = vrot.lane.b32.xlu0 %v15, 126
    %v17 = vpop.permute.xlu0 %16
    %vm18 = vcmask 7168
    %s19 = scalar_lea.vmem %s1, 2
    %20 = vst.msk [vmem:[%s19] ss:$4 sm:$0xf] %vm18, %v17
    %v21 = vld [vmem:[#allocation0] sm:$0xf]
    %22 = vrot.lane.b32.xlu0 %v21, 125
    %v23 = vpop.permute.xlu0 %22
    %vm24 = vcmask 7168
    %s25 = scalar_lea.vmem %s1, 3
    %26 = vst.msk [vmem:[%s25] ss:$4 sm:$0xf] %vm24, %v23

// kernel: decoder_forward.17
$region0: #{decoder_forward.17}
  #allocation0 [shape = 'u32[]', space=smem, size = 0x4, offset = 0x4, fixed_abs, tag = 'smem constant byte address 0x4 - core index']
  #allocation1 [shape = 'u32[144,128]{1,0:T(1,128)}', space=vmem, size = 0x12000, scoped, tag = 'internal scratch']
  %s0 = inlined_call_operand.vmem [shape: bf16[32,128], index: 0, kind: input, shape index: {}]
  %s1 = inlined_call_operand.vmem [shape: bf16[16,32], index: 1, kind: input, shape index: {}]
  %s2 = inlined_call_operand.vmem [shape: bf16[16,128], index: 2, kind: output, shape index: {0}]
  %s3 = inlined_call_operand.vmem [shape: f32[16,1], index: 3, kind: output, shape index: {1}]
  %s4 = inlined_call_operand.vmem [shape: f32[16,1], index: 4, kind: output, shape index: {2}]
  %5 = xla_tuple %s2, %s3, %s4
  %s6 = sld [smem:[#allocation0]]
  $region38: #{decoder_forward.17} parent=0
    _
  %s8 = ssub.s32 1, %s6
  %s9 = scalar_select 0, %s8, %s6
  // Predicated region
  $region2: #{decoder_forward.17} parent=0 // pred_check
    _
  $region3: #{decoder_forward.17} parent=0 // pred_check_branch
    %11 = sbr.rel (0) target = $region5
  $region4: #{decoder_forward.17} parent=0 // pred_region
    _
  $region5: #{decoder_forward.17} parent=0 // pred_fallthru
    _
  // Predicated region
  $region6: #{decoder_forward.17} parent=0 // pred_check
    _
  $region7: #{decoder_forward.17} parent=0 // pred_check_branch
    %13 = sbr.rel (0) target = $region9
  $region8: #{decoder_forward.17} parent=0 // pred_region
    _
  $region9: #{decoder_forward.17} parent=0 // pred_fallthru
    _
  %v15 = vld [vmem:[%s1] sm:$0xf]
  %v16 = vld [vmem:[%s1 + $0x4] sm:$0xf]
  %v17 = vld [vmem:[%s0] sm:$0xf]
  %v18 = vld [vmem:[%s0 + $0x4] sm:$0xf]
  %v19 = vld [vmem:[%s0 + $0x8] sm:$0xf]
  %v20 = vld [vmem:[%s0 + $0xc] sm:$0xf]
  %v23 = vunpack.c.l.b16 %v15
  %v24 = vunpack.c.l.b16 %v16
  %v25 = vpack.c.b16 %v24, %v23
  %v30 = vunpack.c.l.b16 %v17
  %v31 = vunpack.c.l.b16 %v18
  %v32 = vunpack.c.l.b16 %v19
  %v33 = vunpack.c.l.b16 %v20
  %v34 = vpack.c.b16 %v31, %v30
  %v35 = vpack.c.b16 %v33, %v32
  %vm38 = vcmask 261120
  %v40 = vsel %vm38, %v25, 0
  %42 = vmatprep.subr.bf16.mxu0 0
  %43 = vmatpush1.bf16.msra.mxu0 %v34
  %44 = vmatprep.subr.bf16.mxu0 0
  %45 = vmatpush1.bf16.msra.mxu0 %v35
  %46 = vmatprep.subr.bf16.mxu0 0
  %47 = vmatpush1.bf16.msra.mxu0 0
  %48 = vmatprep.subr.bf16.mxu0 0
  %49 = vmatpush1.bf16.msra.mxu0 0
  %50 = vmatprep.subr.bf16.mxu0 0
  %51 = vmatpush1.bf16.msra.mxu0 0
  %52 = vmatprep.subr.bf16.mxu0 0
  %53 = vmatpush1.bf16.msra.mxu0 0
  %54 = vmatprep.subr.bf16.mxu0 0
  %55 = vmatpush1.bf16.msra.mxu0 0
  %56 = vmatprep.subr.bf16.mxu0 0
  %57 = vmatpush1.bf16.msra.mxu0 0
  %58 = vmatprep.subr.bf16.mxu0 0
  %59 = vmatpush1.bf16.msra.mxu0 0
  %60 = vmatprep.subr.bf16.mxu0 0
  %61 = vmatpush1.bf16.msra.mxu0 0
  %62 = vmatprep.subr.bf16.mxu0 0
  %63 = vmatpush1.bf16.msra.mxu0 0
  %64 = vmatprep.subr.bf16.mxu0 0
  %65 = vmatpush1.bf16.msra.mxu0 0
  %66 = vmatprep.subr.bf16.mxu0 0
  %67 = vmatpush1.bf16.msra.mxu0 0
  %68 = vmatprep.subr.bf16.mxu0 0
  %69 = vmatpush1.bf16.msra.mxu0 0
  %70 = vmatprep.subr.bf16.mxu0 0
  %71 = vmatpush1.bf16.msra.mxu0 0
  %72 = vmatprep.subr.bf16.mxu0 0
  %73 = vmatpush1.bf16.msra.mxu0 0
  %74 = vmatprep.mubr.bf16.mxu0 0
  %75 = vmatmul.mubr.bf16.gmra.mrb[0].mxu0 %v40
  %v76 = vpop.f32.mrb[0].mxu0
  %v77 = vadd.f32 0.0, %v76
  %v78 = vpop.f32.mrb[0].mxu0
  %v79 = vpop.f32.mrb[0].mxu0
  %v80 = vadd.f32 0.0, %v79
  %v81 = vpop.f32.mrb[0].mxu0
  %82 = vdwg.mxu0
  %v83 = vpack.c.bf16 %v80, %v77
  %v85 = vunpack.c.l.b16 %v83
  %v86 = vunpack.c.h.b16 %v83
  %v87 = vpack.c.b16 %v85, %v85
  %v88 = vpack.c.b16 %v86, %v86
  %91 = vst [vmem:[%s2] sm:$0xf] %v87
  %92 = vst [vmem:[%s2 + $0x4] sm:$0xf] %v88
  %p93 = scmp.eq.s32.totalorder 0, 0
  // Predicated region
  $region10: #{decoder_forward.17} parent=0 // pred_check
    %p94 = pneg %p93
  $region11: #{decoder_forward.17} parent=0 // pred_check_branch
    %96 = sbr.rel (%p94) target = $region13
  $region12: #{decoder_forward.17} parent=0 // pred_region
    %vm97 = vcmask 7168
    %98 = vst.msk [vmem:[%s3] sm:$0xff] %vm97, 0.0
    %99 = vst.msk [vmem:[%s3 + $0x8] sm:$0xff] %vm97, 0.0
    %100 = vst.msk [vmem:[%s4] sm:$0xff] %vm97, 0.0
    %101 = vst.msk [vmem:[%s4 + $0x8] sm:$0xff] %vm97, 0.0
  $region13: #{decoder_forward.17} parent=0 // pred_fallthru
    _
  %v102 = vld [vmem:[%s3] sm:$0xff]
  %v103 = vld [vmem:[%s3 + $0x8] sm:$0xff]
  %104 = vadd.xlane.f32.xlu0 %v77
  %v105 = vpop.xlane.xlu0 %104
  %106 = vadd.xlane.f32.xlu0 %v80
  %v107 = vpop.xlane.xlu0 %106
  %v108 = vadd.f32 %v102, %v105
  %v109 = vadd.f32 %v103, %v107
  %vm110 = vcmask 7168
  %111 = vst.msk [vmem:[%s3] sm:$0xff] %vm110, %v108
  %112 = vst.msk [vmem:[%s3 + $0x8] sm:$0xff] %vm110, %v109
  %v113 = vld [vmem:[%s4] sm:$0xff]
  %v114 = vld [vmem:[%s4 + $0x8] sm:$0xff]
  %v115 = vmul.f32 %v77, %v77
  %v116 = vmul.f32 %v80, %v80
  %117 = vadd.xlane.f32.xlu0 %v115
  %v118 = vpop.xlane.xlu0 %117
  %119 = vadd.xlane.f32.xlu0 %v116
  %v120 = vpop.xlane.xlu0 %119
  %v121 = vadd.f32 %v113, %v118
  %v122 = vadd.f32 %v114, %v120
  %123 = vst.msk [vmem:[%s4] sm:$0xff] %vm110, %v121
  %124 = vst.msk [vmem:[%s4 + $0x8] sm:$0xff] %vm110, %v122
  // Predicated region
  $region14: #{decoder_forward.17} parent=0 // pred_check
    _
  $region15: #{decoder_forward.17} parent=0 // pred_check_branch
    %126 = sbr.rel (0) target = $region17
  $region16: #{decoder_forward.17} parent=0 // pred_region
    _
  $region17: #{decoder_forward.17} parent=0 // pred_fallthru
    _
  // Predicated region
  $region18: #{decoder_forward.17} parent=0 // pred_check
    _
  $region19: #{decoder_forward.17} parent=0 // pred_check_branch
    %128 = sbr.rel (0) target = $region21
  $region20: #{decoder_forward.17} parent=0 // pred_region
    _
  $region21: #{decoder_forward.17} parent=0 // pred_fallthru
    _
  // Predicated region
  $region22: #{decoder_forward.17} parent=0 // pred_check
    _
  $region23: #{decoder_forward.17} parent=0 // pred_check_branch
    %130 = sbr.rel (0) target = $region25
  $region24: #{decoder_forward.17} parent=0 // pred_region
    _
  $region25: #{decoder_forward.17} parent=0 // pred_fallthru
    _
  // Predicated region
  $region26: #{decoder_forward.17} parent=0 // pred_check
    _
  $region27: #{decoder_forward.17} parent=0 // pred_check_branch
    %132 = sbr.rel (0) target = $region29
  $region28: #{decoder_forward.17} parent=0 // pred_region
    _
  $region29: #{decoder_forward.17} parent=0 // pred_fallthru
    _
  // Predicated region
  $region30: #{decoder_forward.17} parent=0 // pred_check
    _
  $region31: #{decoder_forward.17} parent=0 // pred_check_branch
    %134 = sbr.rel (0) target = $region33
  $region32: #{decoder_forward.17} parent=0 // pred_region
    _
  $region33: #{decoder_forward.17} parent=0 // pred_fallthru
    _
  // Predicated region
  $region34: #{decoder_forward.17} parent=0 // pred_check
    _
  $region35: #{decoder_forward.17} parent=0 // pred_check_branch
    %136 = sbr.rel (0) target = $region37
  $region36: #{decoder_forward.17} parent=0 // pred_region
    _
  $region37: #{decoder_forward.17} parent=0 // pred_fallthru
    _

// kernel: tile.83
$region0: #{tile.83}
  #allocation0 [shape = 's32[1]{0}', space=sflag, size = 0x4, scoped, tag = 'scoped memory for tile.83']
  %s0 = inlined_call_operand.vmem [shape: f32[2], index: 0, kind: input, shape index: {}]
  %s1 = inlined_call_operand.vmem [shape: f32[4,2], index: 1, kind: output, shape index: {}]
  // Predicated region
  $region2: #{tile.83} parent=0 // pred_check
    _
  $region3: #{tile.83} parent=0 // pred_check_branch
    %3 = sbr.rel (0) target = $region5
  $region4: #{tile.83} parent=0 // pred_region
    _
  $region5: #{tile.83} parent=0 // pred_fallthru
    _
  %v4 = vld [vmem:[%s0] ss:$0 sm:$0xff]
  %5 = vst [vmem:[%s1] sm:$0xf] %v4

// kernel: tile.7
$region0: #{tile.7}
  %s0 = inlined_call_operand.vmem [shape: f32[4,2], index: 0, kind: input, shape index: {}]
  %s1 = inlined_call_operand.vmem [shape: f32[8,1], index: 1, kind: output, shape index: {}]
  $region1: #{tile.7} parent=0
    #allocation0 [shape = 'u8[4096]{0}', space=vmem, size = 0x1000, scoped, tag = 'scoped mem for input reshape']
    %s3 = sshllo.u32 0, 4
    %v4 = vld [vmem:[%s0] sm:%s3]
    %5 = vst [vmem:[#allocation0] sm:%s3] %v4
    %v6 = vld [vmem:[#allocation0] sm:$0xf]
    %vm7 = vcmask 7168
    %8 = vst.msk [vmem:[%s1] ss:$2 sm:$0xf] %vm7, %v6
    %v9 = vld [vmem:[#allocation0] sm:$0xf]
    %10 = vrot.lane.b32.xlu0 %v9, 127
    %v11 = vpop.permute.xlu0 %10
    %vm12 = vcmask 7168
    %s13 = scalar_lea.vmem %s1, 1
    %14 = vst.msk [vmem:[%s13] ss:$2 sm:$0xf] %vm12, %v11

// kernel: decoder_forward.18
$region0: #{decoder_forward.18}
  #allocation0 [shape = 'u32[]', space=smem, size = 0x4, offset = 0x4, fixed_abs, tag = 'smem constant byte address 0x4 - core index']
  #allocation1 [shape = 'u32[144,128]{1,0:T(1,128)}', space=vmem, size = 0x12000, scoped, tag = 'internal scratch']
  %s0 = inlined_call_operand.vmem [shape: bf16[16,128], index: 0, kind: input, shape index: {}]
  %s1 = inlined_call_operand.vmem [shape: f32[16,1], index: 1, kind: input, shape index: {}]
  %s2 = inlined_call_operand.vmem [shape: f32[16,1], index: 2, kind: input, shape index: {}]
  %s3 = inlined_call_operand.vmem [shape: bf16[16,128], index: 3, kind: output, shape index: {}]
  %s4 = sld [smem:[#allocation0]]
  $region22: #{decoder_forward.18} parent=0
    _
  %s6 = ssub.s32 1, %s4
  %s7 = scalar_select 0, %s6, %s4
  // Predicated region
  $region2: #{decoder_forward.18} parent=0 // pred_check
    _
  $region3: #{decoder_forward.18} parent=0 // pred_check_branch
    %9 = sbr.rel (0) target = $region5
  $region4: #{decoder_forward.18} parent=0 // pred_region
    _
  $region5: #{decoder_forward.18} parent=0 // pred_fallthru
    _
  // Predicated region
  $region6: #{decoder_forward.18} parent=0 // pred_check
    _
  $region7: #{decoder_forward.18} parent=0 // pred_check_branch
    %11 = sbr.rel (0) target = $region9
  $region8: #{decoder_forward.18} parent=0 // pred_region
    _
  $region9: #{decoder_forward.18} parent=0 // pred_fallthru
    _
  // Predicated region
  $region10: #{decoder_forward.18} parent=0 // pred_check
    _
  $region11: #{decoder_forward.18} parent=0 // pred_check_branch
    %13 = sbr.rel (0) target = $region13
  $region12: #{decoder_forward.18} parent=0 // pred_region
    _
  $region13: #{decoder_forward.18} parent=0 // pred_fallthru
    _
  %v14 = vld [vmem:[%s0] sm:$0xf]
  %v15 = vld [vmem:[%s0 + $0x4] sm:$0xf]
  %v16 = vunpack.c.l.bf16 %v14
  %v17 = vunpack.c.l.bf16 %v15
  %v18 = vld [vmem:[%s1] sm:$0xff]
  %v19 = vld [vmem:[%s1 + $0x8] sm:$0xff]
  %21 = vset.pattern.permute.xlu0 0
  %22 = vperm.xlu0 %21, %v18
  %v23 = vpop.permute.xlu0 %22
  %26 = vset.pattern.permute.xlu0 0
  %27 = vperm.xlu0 %26, %v19
  %v28 = vpop.permute.xlu0 %27
  %v30 = vmul.f32 %v16, %v23
  %v31 = vmul.f32 %v17, %v28
  %v32 = vld [vmem:[%s2] sm:$0xff]
  %v33 = vld [vmem:[%s2 + $0x8] sm:$0xff]
  %35 = vset.pattern.permute.xlu0 0
  %36 = vperm.xlu0 %35, %v32
  %v37 = vpop.permute.xlu0 %36
  %40 = vset.pattern.permute.xlu0 0
  %41 = vperm.xlu0 %40, %v33
  %v42 = vpop.permute.xlu0 %41
  %v44 = vadd.f32 %v30, %v37
  %v45 = vadd.f32 %v31, %v42
  %vm46 = vcmp.gt.f32.partialorder %v44, 0.0
  %vm47 = vcmp.gt.f32.partialorder %v45, 0.0
  %v48 = vmin.f32 %v44, 0.0
  %v49 = vmin.f32 %v45, 0.0
  %v50 = vmul.f32 %v48, 1.442695
  %v51 = vpow.pop %v50
  %v52 = vmul.f32 %v49, 1.442695
  %v53 = vpow.pop %v52
  %v54 = vsub.f32 %v51, 1.0
  %v55 = vsub.f32 %v53, 1.0
  %v56 = vsel %vm46, %v44, %v54
  %v57 = vsel %vm47, %v45, %v55
  %v58 = vpack.c.bf16 %v57, %v56
  %v60 = vunpack.c.l.b16 %v58
  %v61 = vunpack.c.h.b16 %v58
  %v62 = vpack.c.b16 %v60, %v60
  %v63 = vpack.c.b16 %v61, %v61
  %66 = vst [vmem:[%s3] sm:$0xf] %v62
  %67 = vst [vmem:[%s3 + $0x4] sm:$0xf] %v63
  // Predicated region
  $region14: #{decoder_forward.18} parent=0 // pred_check
    _
  $region15: #{decoder_forward.18} parent=0 // pred_check_branch
    %69 = sbr.rel (0) target = $region17
  $region16: #{decoder_forward.18} parent=0 // pred_region
    _
  $region17: #{decoder_forward.18} parent=0 // pred_fallthru
    _
  // Predicated region
  $region18: #{decoder_forward.18} parent=0 // pred_check
    _
  $region19: #{decoder_forward.18} parent=0 // pred_check_branch
    %71 = sbr.rel (0) target = $region21
  $region20: #{decoder_forward.18} parent=0 // pred_region
    _
  $region21: #{decoder_forward.18} parent=0 // pred_fallthru
    _

// kernel: decoder_forward.19
$region0: #{decoder_forward.19}
  #allocation0 [shape = 'u32[]', space=smem, size = 0x4, offset = 0x4, fixed_abs, tag = 'smem constant byte address 0x4 - core index']
  #allocation1 [shape = 'u32[144,128]{1,0:T(1,128)}', space=vmem, size = 0x12000, scoped, tag = 'internal scratch']
  %s0 = inlined_call_operand.vmem [shape: bf16[16,512], index: 0, kind: input, shape index: {}]
  %s1 = inlined_call_operand.vmem [shape: bf16[8,16], index: 1, kind: input, shape index: {}]
  %s2 = inlined_call_operand.vmem [shape: bf16[8,512], index: 2, kind: output, shape index: {0}]
  %s3 = inlined_call_operand.vmem [shape: f32[8,1], index: 3, kind: output, shape index: {1}]
  %s4 = inlined_call_operand.vmem [shape: f32[8,1], index: 4, kind: output, shape index: {2}]
  %5 = xla_tuple %s2, %s3, %s4
  %s6 = sld [smem:[#allocation0]]
  $region38: #{decoder_forward.19} parent=0
    _
  %s8 = ssub.s32 1, %s6
  %s9 = scalar_select 0, %s8, %s6
  // Predicated region
  $region2: #{decoder_forward.19} parent=0 // pred_check
    _
  $region3: #{decoder_forward.19} parent=0 // pred_check_branch
    %11 = sbr.rel (0) target = $region5
  $region4: #{decoder_forward.19} parent=0 // pred_region
    _
  $region5: #{decoder_forward.19} parent=0 // pred_fallthru
    _
  // Predicated region
  $region6: #{decoder_forward.19} parent=0 // pred_check
    _
  $region7: #{decoder_forward.19} parent=0 // pred_check_branch
    %13 = sbr.rel (0) target = $region9
  $region8: #{decoder_forward.19} parent=0 // pred_region
    _
  $region9: #{decoder_forward.19} parent=0 // pred_fallthru
    _
  %v15 = vld [vmem:[%s1] sm:$0xf]
  %v16 = vld [vmem:[%s0] sm:$0xff]
  %v17 = vld [vmem:[%s0 + $0x8] sm:$0xff]
  %v18 = vld [vmem:[%s0 + $0x10] sm:$0xff]
  %v19 = vld [vmem:[%s0 + $0x18] sm:$0xff]
  %v24 = vunpack.c.l.b16 %v16
  %v25 = vunpack.c.h.b16 %v16
  %v26 = vunpack.c.l.b16 %v17
  %v27 = vunpack.c.h.b16 %v17
  %v28 = vunpack.c.l.b16 %v18
  %v29 = vunpack.c.h.b16 %v18
  %v30 = vunpack.c.l.b16 %v19
  %v31 = vunpack.c.h.b16 %v19
  %v32 = vpack.c.b16 %v28, %v24
  %v33 = vpack.c.b16 %v29, %v25
  %v34 = vpack.c.b16 %v30, %v26
  %v35 = vpack.c.b16 %v31, %v27
  %vm40 = vcmask 130048
  %v42 = vsel %vm40, %v15, 0
  %44 = vmatprep.subr.bf16.mxu0 %v33
  %45 = vmatpush1.bf16.msra.mxu0 %v32
  %46 = vmatprep.subr.bf16.mxu0 0
  %47 = vmatpush1.bf16.msra.mxu0 0
  %48 = vmatprep.subr.bf16.mxu0 0
  %49 = vmatpush1.bf16.msra.mxu0 0
  %50 = vmatprep.subr.bf16.mxu0 0
  %51 = vmatpush1.bf16.msra.mxu0 0
  %52 = vmatprep.subr.bf16.mxu0 0
  %53 = vmatpush1.bf16.msra.mxu0 0
  %54 = vmatprep.subr.bf16.mxu0 0
  %55 = vmatpush1.bf16.msra.mxu0 0
  %56 = vmatprep.subr.bf16.mxu0 0
  %57 = vmatpush1.bf16.msra.mxu0 0
  %58 = vmatprep.subr.bf16.mxu0 0
  %59 = vmatpush1.bf16.msra.mxu0 0
  %60 = vmatprep.subr.bf16.mxu0 0
  %61 = vmatpush1.bf16.msra.mxu0 0
  %62 = vmatprep.subr.bf16.mxu0 0
  %63 = vmatpush1.bf16.msra.mxu0 0
  %64 = vmatprep.subr.bf16.mxu0 0
  %65 = vmatpush1.bf16.msra.mxu0 0
  %66 = vmatprep.subr.bf16.mxu0 0
  %67 = vmatpush1.bf16.msra.mxu0 0
  %68 = vmatprep.subr.bf16.mxu0 0
  %69 = vmatpush1.bf16.msra.mxu0 0
  %70 = vmatprep.subr.bf16.mxu0 0
  %71 = vmatpush1.bf16.msra.mxu0 0
  %72 = vmatprep.subr.bf16.mxu0 0
  %73 = vmatpush1.bf16.msra.mxu0 0
  %74 = vmatprep.subr.bf16.mxu0 0
  %75 = vmatpush1.bf16.msra.mxu0 0
  %76 = vmatprep.mubr.bf16.mxu0 0
  %77 = vmatmul.mubr.bf16.gmra.mrb[0].mxu0 %v42
  %v78 = vpop.f32.mrb[0].mxu0
  %v79 = vadd.f32 0.0, %v78
  %v80 = vpop.f32.mrb[0].mxu0
  %v81 = vadd.f32 0.0, %v80
  %v82 = vpop.f32.mrb[0].mxu0
  %v83 = vpop.f32.mrb[0].mxu0
  %84 = vdwg.mxu0
  %85 = vmatprep.subr.bf16.mxu0 %v35
  %86 = vmatpush1.bf16.msra.mxu0 %v34
  %87 = vmatprep.subr.bf16.mxu0 0
  %88 = vmatpush1.bf16.msra.mxu0 0
  %89 = vmatprep.subr.bf16.mxu0 0
  %90 = vmatpush1.bf16.msra.mxu0 0
  %91 = vmatprep.subr.bf16.mxu0 0
  %92 = vmatpush1.bf16.msra.mxu0 0
  %93 = vmatprep.subr.bf16.mxu0 0
  %94 = vmatpush1.bf16.msra.mxu0 0
  %95 = vmatprep.subr.bf16.mxu0 0
  %96 = vmatpush1.bf16.msra.mxu0 0
  %97 = vmatprep.subr.bf16.mxu0 0
  %98 = vmatpush1.bf16.msra.mxu0 0
  %99 = vmatprep.subr.bf16.mxu0 0
  %100 = vmatpush1.bf16.msra.mxu0 0
  %101 = vmatprep.subr.bf16.mxu0 0
  %102 = vmatpush1.bf16.msra.mxu0 0
  %103 = vmatprep.subr.bf16.mxu0 0
  %104 = vmatpush1.bf16.msra.mxu0 0
  %105 = vmatprep.subr.bf16.mxu0 0
  %106 = vmatpush1.bf16.msra.mxu0 0
  %107 = vmatprep.subr.bf16.mxu0 0
  %108 = vmatpush1.bf16.msra.mxu0 0
  %109 = vmatprep.subr.bf16.mxu0 0
  %110 = vmatpush1.bf16.msra.mxu0 0
  %111 = vmatprep.subr.bf16.mxu0 0
  %112 = vmatpush1.bf16.msra.mxu0 0
  %113 = vmatprep.subr.bf16.mxu0 0
  %114 = vmatpush1.bf16.msra.mxu0 0
  %115 = vmatprep.subr.bf16.mxu0 0
  %116 = vmatpush1.bf16.msra.mxu0 0
  %117 = vmatprep.mubr.bf16.mxu0 0
  %118 = vmatmul.mubr.bf16.gmra.mrb[0].mxu0 %v42
  %v119 = vpop.f32.mrb[0].mxu0
  %v120 = vadd.f32 0.0, %v119
  %v121 = vpop.f32.mrb[0].mxu0
  %v122 = vadd.f32 0.0, %v121
  %v123 = vpop.f32.mrb[0].mxu0
  %v124 = vpop.f32.mrb[0].mxu0
  %125 = vdwg.mxu0
  %v126 = vpack.c.bf16 %v79, %v79
  %v127 = vpack.c.bf16 %v81, %v81
  %v128 = vpack.c.bf16 %v120, %v120
  %v129 = vpack.c.bf16 %v122, %v122
  %v134 = vunpack.c.l.b16 %v126
  %v135 = vunpack.c.l.b16 %v127
  %v136 = vunpack.c.l.b16 %v128
  %v137 = vunpack.c.l.b16 %v129
  %v138 = vpack.c.b16 %v135, %v134
  %v139 = vpack.c.b16 %v137, %v136
  %142 = vst [vmem:[%s2] sm:$0xff] %v138
  %143 = vst [vmem:[%s2 + $0x8] sm:$0xff] %v139
  %p144 = scmp.eq.s32.totalorder 0, 0
  // Predicated region
  $region10: #{decoder_forward.19} parent=0 // pred_check
    %p145 = pneg %p144
  $region11: #{decoder_forward.19} parent=0 // pred_check_branch
    %147 = sbr.rel (%p145) target = $region13
  $region12: #{decoder_forward.19} parent=0 // pred_region
    %vm148 = vcmask 7168
    %149 = vst.msk [vmem:[%s3] sm:$0xff] %vm148, 0.0
    %150 = vst.msk [vmem:[%s4] sm:$0xff] %vm148, 0.0
  $region13: #{decoder_forward.19} parent=0 // pred_fallthru
    _
  %v151 = vld [vmem:[%s3] sm:$0xff]
  %v152 = vadd.f32 %v79, %v81
  %v153 = vadd.f32 %v152, %v120
  %v154 = vadd.f32 %v153, %v122
  %155 = vadd.xlane.f32.xlu0 %v154
  %v156 = vpop.xlane.xlu0 %155
  %v157 = vadd.f32 %v151, %v156
  %vm158 = vcmask 7168
  %159 = vst.msk [vmem:[%s3] sm:$0xff] %vm158, %v157
  %v160 = vld [vmem:[%s4] sm:$0xff]
  %v161 = vmul.f32 %v79, %v79
  %v162 = vmul.f32 %v81, %v81
  %v163 = vmul.f32 %v120, %v120
  %v164 = vmul.f32 %v122, %v122
  %v165 = vadd.f32 %v161, %v162
  %v166 = vadd.f32 %v165, %v163
  %v167 = vadd.f32 %v166, %v164
  %168 = vadd.xlane.f32.xlu0 %v167
  %v169 = vpop.xlane.xlu0 %168
  %v170 = vadd.f32 %v160, %v169
  %171 = vst.msk [vmem:[%s4] sm:$0xff] %vm158, %v170
  // Predicated region
  $region14: #{decoder_forward.19} parent=0 // pred_check
    _
  $region15: #{decoder_forward.19} parent=0 // pred_check_branch
    %173 = sbr.rel (0) target = $region17
  $region16: #{decoder_forward.19} parent=0 // pred_region
    _
  $region17: #{decoder_forward.19} parent=0 // pred_fallthru
    _
  // Predicated region
  $region18: #{decoder_forward.19} parent=0 // pred_check
    _
  $region19: #{decoder_forward.19} parent=0 // pred_check_branch
    %175 = sbr.rel (0) target = $region21
  $region20: #{decoder_forward.19} parent=0 // pred_region
    _
  $region21: #{decoder_forward.19} parent=0 // pred_fallthru
    _
  // Predicated region
  $region22: #{decoder_forward.19} parent=0 // pred_check
    _
  $region23: #{decoder_forward.19} parent=0 // pred_check_branch
    %177 = sbr.rel (0) target = $region25
  $region24: #{decoder_forward.19} parent=0 // pred_region
    _
  $region25: #{decoder_forward.19} parent=0 // pred_fallthru
    _
  // Predicated region
  $region26: #{decoder_forward.19} parent=0 // pred_check
    _
  $region27: #{decoder_forward.19} parent=0 // pred_check_branch
    %179 = sbr.rel (0) target = $region29
  $region28: #{decoder_forward.19} parent=0 // pred_region
    _
  $region29: #{decoder_forward.19} parent=0 // pred_fallthru
    _
  // Predicated region
  $region30: #{decoder_forward.19} parent=0 // pred_check
    _
  $region31: #{decoder_forward.19} parent=0 // pred_check_branch
    %181 = sbr.rel (0) target = $region33
  $region32: #{decoder_forward.19} parent=0 // pred_region
    _
  $region33: #{decoder_forward.19} parent=0 // pred_fallthru
    _
  // Predicated region
  $region34: #{decoder_forward.19} parent=0 // pred_check
    _
  $region35: #{decoder_forward.19} parent=0 // pred_check_branch
    %183 = sbr.rel (0) target = $region37
  $region36: #{decoder_forward.19} parent=0 // pred_region
    _
  $region37: #{decoder_forward.19} parent=0 // pred_fallthru
    _

// kernel: decoder_forward.20
$region0: #{decoder_forward.20}
  #allocation0 [shape = 'u32[]', space=smem, size = 0x4, offset = 0x4, fixed_abs, tag = 'smem constant byte address 0x4 - core index']
  #allocation1 [shape = 'u32[144,128]{1,0:T(1,128)}', space=vmem, size = 0x12000, scoped, tag = 'internal scratch']
  %s0 = inlined_call_operand.vmem [shape: bf16[8,512], index: 0, kind: input, shape index: {}]
  %s1 = inlined_call_operand.vmem [shape: f32[8,1], index: 1, kind: input, shape index: {}]
  %s2 = inlined_call_operand.vmem [shape: f32[8,1], index: 2, kind: input, shape index: {}]
  %s3 = inlined_call_operand.vmem [shape: bf16[8,512], index: 3, kind: output, shape index: {}]
  %s4 = sld [smem:[#allocation0]]
  $region22: #{decoder_forward.20} parent=0
    _
  %s6 = ssub.s32 1, %s4
  %s7 = scalar_select 0, %s6, %s4
  // Predicated region
  $region2: #{decoder_forward.20} parent=0 // pred_check
    _
  $region3: #{decoder_forward.20} parent=0 // pred_check_branch
    %9 = sbr.rel (0) target = $region5
  $region4: #{decoder_forward.20} parent=0 // pred_region
    _
  $region5: #{decoder_forward.20} parent=0 // pred_fallthru
    _
  // Predicated region
  $region6: #{decoder_forward.20} parent=0 // pred_check
    _
  $region7: #{decoder_forward.20} parent=0 // pred_check_branch
    %11 = sbr.rel (0) target = $region9
  $region8: #{decoder_forward.20} parent=0 // pred_region
    _
  $region9: #{decoder_forward.20} parent=0 // pred_fallthru
    _
  // Predicated region
  $region10: #{decoder_forward.20} parent=0 // pred_check
    _
  $region11: #{decoder_forward.20} parent=0 // pred_check_branch
    %13 = sbr.rel (0) target = $region13
  $region12: #{decoder_forward.20} parent=0 // pred_region
    _
  $region13: #{decoder_forward.20} parent=0 // pred_fallthru
    _
  %v14 = vld [vmem:[%s0] sm:$0xff]
  %v15 = vld [vmem:[%s0 + $0x8] sm:$0xff]
  %v16 = vunpack.c.l.bf16 %v14
  %v17 = vunpack.c.h.bf16 %v14
  %v18 = vunpack.c.l.bf16 %v15
  %v19 = vunpack.c.h.bf16 %v15
  %v20 = vld [vmem:[%s1] sm:$0xff]
  %22 = vset.pattern.permute.xlu0 0
  %23 = vperm.xlu0 %22, %v20
  %v24 = vpop.permute.xlu0 %23
  %v26 = vmul.f32 %v16, %v24
  %v27 = vmul.f32 %v17, %v24
  %v28 = vmul.f32 %v18, %v24
  %v29 = vmul.f32 %v19, %v24
  %v30 = vld [vmem:[%s2] sm:$0xff]
  %32 = vset.pattern.permute.xlu0 0
  %33 = vperm.xlu0 %32, %v30
  %v34 = vpop.permute.xlu0 %33
  %v36 = vadd.f32 %v26, %v34
  %v37 = vadd.f32 %v27, %v34
  %v38 = vadd.f32 %v28, %v34
  %v39 = vadd.f32 %v29, %v34
  %vm40 = vcmp.gt.f32.partialorder %v36, 0.0
  %vm41 = vcmp.gt.f32.partialorder %v37, 0.0
  %vm42 = vcmp.gt.f32.partialorder %v38, 0.0
  %vm43 = vcmp.gt.f32.partialorder %v39, 0.0
  %v44 = vmin.f32 %v36, 0.0
  %v45 = vmin.f32 %v37, 0.0
  %v46 = vmin.f32 %v38, 0.0
  %v47 = vmin.f32 %v39, 0.0
  %v48 = vmul.f32 %v44, 1.442695
  %v49 = vpow.pop %v48
  %v50 = vmul.f32 %v45, 1.442695
  %v51 = vpow.pop %v50
  %v52 = vmul.f32 %v46, 1.442695
  %v53 = vpow.pop %v52
  %v54 = vmul.f32 %v47, 1.442695
  %v55 = vpow.pop %v54
  %v56 = vsub.f32 %v49, 1.0
  %v57 = vsub.f32 %v51, 1.0
  %v58 = vsub.f32 %v53, 1.0
  %v59 = vsub.f32 %v55, 1.0
  %v60 = vsel %vm40, %v36, %v56
  %v61 = vsel %vm41, %v37, %v57
  %v62 = vsel %vm42, %v38, %v58
  %v63 = vsel %vm43, %v39, %v59
  %v64 = vpack.c.bf16 %v60, %v60
  %v65 = vpack.c.bf16 %v61, %v61
  %v66 = vpack.c.bf16 %v62, %v62
  %v67 = vpack.c.bf16 %v63, %v63
  %v72 = vunpack.c.l.b16 %v64
  %v73 = vunpack.c.l.b16 %v65
  %v74 = vunpack.c.l.b16 %v66
  %v75 = vunpack.c.l.b16 %v67
  %v76 = vpack.c.b16 %v73, %v72
  %v77 = vpack.c.b16 %v75, %v74
  %80 = vst [vmem:[%s3] sm:$0xff] %v76
  %81 = vst [vmem:[%s3 + $0x8] sm:$0xff] %v77
  // Predicated region
  $region14: #{decoder_forward.20} parent=0 // pred_check
    _
  $region15: #{decoder_forward.20} parent=0 // pred_check_branch
    %83 = sbr.rel (0) target = $region17
  $region16: #{decoder_forward.20} parent=0 // pred_region
    _
  $region17: #{decoder_forward.20} parent=0 // pred_fallthru
    _
  // Predicated region
  $region18: #{decoder_forward.20} parent=0 // pred_check
    _
  $region19: #{decoder_forward.20} parent=0 // pred_check_branch
    %85 = sbr.rel (0) target = $region21
  $region20: #{decoder_forward.20} parent=0 // pred_region
    _
  $region21: #{decoder_forward.20} parent=0 // pred_fallthru
    _

// kernel: decoder_forward.21
$region0: #{decoder_forward.21}
  #allocation0 [shape = 'u32[]', space=smem, size = 0x4, offset = 0x4, fixed_abs, tag = 'smem constant byte address 0x4 - core index']
  #allocation1 [shape = 'u32[144,128]{1,0:T(1,128)}', space=vmem, size = 0x12000, scoped, tag = 'internal scratch']
  %s0 = inlined_call_operand.vmem [shape: bf16[8,2048], index: 0, kind: input, shape index: {}]
  %s1 = inlined_call_operand.vmem [shape: bf16[12,8], index: 1, kind: input, shape index: {}]
  %s2 = inlined_call_operand.vmem [shape: f32[12,1], index: 2, kind: input, shape index: {}]
  %s3 = inlined_call_operand.vmem [shape: f32[12,2048], index: 3, kind: output, shape index: {}]
  %s4 = sld [smem:[#allocation0]]
  $region22: #{decoder_forward.21} parent=0
    _
  %s6 = ssub.s32 1, %s4
  %s7 = scalar_select 0, %s6, %s4
  // Predicated region
  $region2: #{decoder_forward.21} parent=0 // pred_check
    _
  $region3: #{decoder_forward.21} parent=0 // pred_check_branch
    %9 = sbr.rel (0) target = $region5
  $region4: #{decoder_forward.21} parent=0 // pred_region
    _
  $region5: #{decoder_forward.21} parent=0 // pred_fallthru
    _
  // Predicated region
  $region6: #{decoder_forward.21} parent=0 // pred_check
    _
  $region7: #{decoder_forward.21} parent=0 // pred_check_branch
    %11 = sbr.rel (0) target = $region9
  $region8: #{decoder_forward.21} parent=0 // pred_region
    _
  $region9: #{decoder_forward.21} parent=0 // pred_fallthru
    _
  // Predicated region
  $region10: #{decoder_forward.21} parent=0 // pred_check
    _
  $region11: #{decoder_forward.21} parent=0 // pred_check_branch
    %13 = sbr.rel (0) target = $region13
  $region12: #{decoder_forward.21} parent=0 // pred_region
    _
  $region13: #{decoder_forward.21} parent=0 // pred_fallthru
    _
  %v15 = vld [vmem:[%s1] sm:$0xf]
  %v16 = vld [vmem:[%s1 + $0x4] sm:$0x3]
  %v17 = vld [vmem:[%s0] sm:$0xff]
  %v18 = vld [vmem:[%s0 + $0x8] sm:$0xff]
  %v19 = vld [vmem:[%s0 + $0x10] sm:$0xff]
  %v20 = vld [vmem:[%s0 + $0x18] sm:$0xff]
  %v21 = vld [vmem:[%s0 + $0x20] sm:$0xff]
  %v22 = vld [vmem:[%s0 + $0x28] sm:$0xff]
  %v23 = vld [vmem:[%s0 + $0x30] sm:$0xff]
  %v24 = vld [vmem:[%s0 + $0x38] sm:$0xff]
  %v25 = vld [vmem:[%s2] sm:$0xff]
  %v26 = vld [vmem:[%s2 + $0x8] sm:$0xf]
  %28 = vset.pattern.permute.xlu0 0
  %29 = vperm.xlu0 %28, %v25
  %v30 = vpop.permute.xlu0 %29
  %33 = vset.pattern.permute.xlu0 0
  %34 = vperm.xlu0 %33, %v26
  %v35 = vpop.permute.xlu0 %34
  %v39 = vunpack.c.l.b16 %v15
  %v40 = vunpack.c.l.b16 %v16
  %v41 = vpack.c.b16 %v40, %v39
  %v50 = vunpack.c.l.b16 %v17
  %v51 = vunpack.c.h.b16 %v17
  %v52 = vunpack.c.l.b16 %v18
  %v53 = vunpack.c.h.b16 %v18
  %v54 = vunpack.c.l.b16 %v19
  %v55 = vunpack.c.h.b16 %v19
  %v56 = vunpack.c.l.b16 %v20
  %v57 = vunpack.c.h.b16 %v20
  %v58 = vunpack.c.l.b16 %v21
  %v59 = vunpack.c.h.b16 %v21
  %v60 = vunpack.c.l.b16 %v22
  %v61 = vunpack.c.h.b16 %v22
  %v62 = vunpack.c.l.b16 %v23
  %v63 = vunpack.c.h.b16 %v23
  %v64 = vunpack.c.l.b16 %v24
  %v65 = vunpack.c.h.b16 %v24
  %v66 = vpack.c.b16 %v50, %v50
  %v67 = vpack.c.b16 %v51, %v51
  %v68 = vpack.c.b16 %v52, %v52
  %v69 = vpack.c.b16 %v53, %v53
  %v70 = vpack.c.b16 %v54, %v54
  %v71 = vpack.c.b16 %v55, %v55
  %v72 = vpack.c.b16 %v56, %v56
  %v73 = vpack.c.b16 %v57, %v57
  %v74 = vpack.c.b16 %v58, %v58
  %v75 = vpack.c.b16 %v59, %v59
  %v76 = vpack.c.b16 %v60, %v60
  %v77 = vpack.c.b16 %v61, %v61
  %v78 = vpack.c.b16 %v62, %v62
  %v79 = vpack.c.b16 %v63, %v63
  %v80 = vpack.c.b16 %v64, %v64
  %v81 = vpack.c.b16 %v65, %v65
  %vm82 = vcmask 64512
  %v84 = vsel %vm82, %v41, 0
  %vm86 = vcmask 1043456
  %v88 = vsel %vm86, %v66, 0
  %v91 = vsel %vm86, %v67, 0
  %v94 = vsel %vm86, %v68, 0
  %v97 = vsel %vm86, %v69, 0
  %v100 = vsel %vm86, %v70, 0
  %v103 = vsel %vm86, %v71, 0
  %v106 = vsel %vm86, %v72, 0
  %v109 = vsel %vm86, %v73, 0
  %v112 = vsel %vm86, %v74, 0
  %v115 = vsel %vm86, %v75, 0
  %v118 = vsel %vm86, %v76, 0
  %v121 = vsel %vm86, %v77, 0
  %v124 = vsel %vm86, %v78, 0
  %v127 = vsel %vm86, %v79, 0
  %v130 = vsel %vm86, %v80, 0
  %v133 = vsel %vm86, %v81, 0
  %135 = vmatprep.subr.bf16.mxu0 %v91
  %136 = vmatpush1.bf16.msra.mxu0 %v88
  %137 = vmatprep.subr.bf16.mxu0 0
  %138 = vmatpush1.bf16.msra.mxu0 0
  %139 = vmatprep.subr.bf16.mxu0 0
  %140 = vmatpush1.bf16.msra.mxu0 0
  %141 = vmatprep.subr.bf16.mxu0 0
  %142 = vmatpush1.bf16.msra.mxu0 0
  %143 = vmatprep.subr.bf16.mxu0 0
  %144 = vmatpush1.bf16.msra.mxu0 0
  %145 = vmatprep.subr.bf16.mxu0 0
  %146 = vmatpush1.bf16.msra.mxu0 0
  %147 = vmatprep.subr.bf16.mxu0 0
  %148 = vmatpush1.bf16.msra.mxu0 0
  %149 = vmatprep.subr.bf16.mxu0 0
  %150 = vmatpush1.bf16.msra.mxu0 0
  %151 = vmatprep.subr.bf16.mxu0 0
  %152 = vmatpush1.bf16.msra.mxu0 0
  %153 = vmatprep.subr.bf16.mxu0 0
  %154 = vmatpush1.bf16.msra.mxu0 0
  %155 = vmatprep.subr.bf16.mxu0 0
  %156 = vmatpush1.bf16.msra.mxu0 0
  %157 = vmatprep.subr.bf16.mxu0 0
  %158 = vmatpush1.bf16.msra.mxu0 0
  %159 = vmatprep.subr.bf16.mxu0 0
  %160 = vmatpush1.bf16.msra.mxu0 0
  %161 = vmatprep.subr.bf16.mxu0 0
  %162 = vmatpush1.bf16.msra.mxu0 0
  %163 = vmatprep.subr.bf16.mxu0 0
  %164 = vmatpush1.bf16.msra.mxu0 0
  %165 = vmatprep.subr.bf16.mxu0 0
  %166 = vmatpush1.bf16.msra.mxu0 0
  %167 = vmatprep.mubr.bf16.mxu0 0
  %168 = vmatmul.mubr.bf16.gmra.mrb[0].mxu0 %v84
  %v169 = vpop.f32.mrb[0].mxu0
  %v170 = vadd.f32 %v30, %v169
  %v171 = vpop.f32.mrb[0].mxu0
  %v172 = vadd.f32 %v30, %v171
  %v173 = vpop.f32.mrb[0].mxu0
  %v174 = vadd.f32 %v35, %v173
  %v175 = vpop.f32.mrb[0].mxu0
  %v176 = vadd.f32 %v35, %v175
  %177 = vdwg.mxu0
  %178 = vmatprep.subr.bf16.mxu0 %v97
  %179 = vmatpush1.bf16.msra.mxu0 %v94
  %180 = vmatprep.subr.bf16.mxu0 0
  %181 = vmatpush1.bf16.msra.mxu0 0
  %182 = vmatprep.subr.bf16.mxu0 0
  %183 = vmatpush1.bf16.msra.mxu0 0
  %184 = vmatprep.subr.bf16.mxu0 0
  %185 = vmatpush1.bf16.msra.mxu0 0
  %186 = vmatprep.subr.bf16.mxu0 0
  %187 = vmatpush1.bf16.msra.mxu0 0
  %188 = vmatprep.subr.bf16.mxu0 0
  %189 = vmatpush1.bf16.msra.mxu0 0
  %190 = vmatprep.subr.bf16.mxu0 0
  %191 = vmatpush1.bf16.msra.mxu0 0
  %192 = vmatprep.subr.bf16.mxu0 0
  %193 = vmatpush1.bf16.msra.mxu0 0
  %194 = vmatprep.subr.bf16.mxu0 0
  %195 = vmatpush1.bf16.msra.mxu0 0
  %196 = vmatprep.subr.bf16.mxu0 0
  %197 = vmatpush1.bf16.msra.mxu0 0
  %198 = vmatprep.subr.bf16.mxu0 0
  %199 = vmatpush1.bf16.msra.mxu0 0
  %200 = vmatprep.subr.bf16.mxu0 0
  %201 = vmatpush1.bf16.msra.mxu0 0
  %202 = vmatprep.subr.bf16.mxu0 0
  %203 = vmatpush1.bf16.msra.mxu0 0
  %204 = vmatprep.subr.bf16.mxu0 0
  %205 = vmatpush1.bf16.msra.mxu0 0
  %206 = vmatprep.subr.bf16.mxu0 0
  %207 = vmatpush1.bf16.msra.mxu0 0
  %208 = vmatprep.subr.bf16.mxu0 0
  %209 = vmatpush1.bf16.msra.mxu0 0
  %210 = vmatprep.mubr.bf16.mxu0 0
  %211 = vmatmul.mubr.bf16.gmra.mrb[0].mxu0 %v84
  %v212 = vpop.f32.mrb[0].mxu0
  %v213 = vadd.f32 %v30, %v212
  %v214 = vpop.f32.mrb[0].mxu0
  %v215 = vadd.f32 %v30, %v214
  %v216 = vpop.f32.mrb[0].mxu0
  %v217 = vadd.f32 %v35, %v216
  %v218 = vpop.f32.mrb[0].mxu0
  %v219 = vadd.f32 %v35, %v218
  %220 = vdwg.mxu0
  %221 = vmatprep.subr.bf16.mxu0 %v103
  %222 = vmatpush1.bf16.msra.mxu0 %v100
  %223 = vmatprep.subr.bf16.mxu0 0
  %224 = vmatpush1.bf16.msra.mxu0 0
  %225 = vmatprep.subr.bf16.mxu0 0
  %226 = vmatpush1.bf16.msra.mxu0 0
  %227 = vmatprep.subr.bf16.mxu0 0
  %228 = vmatpush1.bf16.msra.mxu0 0
  %229 = vmatprep.subr.bf16.mxu0 0
  %230 = vmatpush1.bf16.msra.mxu0 0
  %231 = vmatprep.subr.bf16.mxu0 0
  %232 = vmatpush1.bf16.msra.mxu0 0
  %233 = vmatprep.subr.bf16.mxu0 0
  %234 = vmatpush1.bf16.msra.mxu0 0
  %235 = vmatprep.subr.bf16.mxu0 0
  %236 = vmatpush1.bf16.msra.mxu0 0
  %237 = vmatprep.subr.bf16.mxu0 0
  %238 = vmatpush1.bf16.msra.mxu0 0
  %239 = vmatprep.subr.bf16.mxu0 0
  %240 = vmatpush1.bf16.msra.mxu0 0
  %241 = vmatprep.subr.bf16.mxu0 0
  %242 = vmatpush1.bf16.msra.mxu0 0
  %243 = vmatprep.subr.bf16.mxu0 0
  %244 = vmatpush1.bf16.msra.mxu0 0
  %245 = vmatprep.subr.bf16.mxu0 0
  %246 = vmatpush1.bf16.msra.mxu0 0
  %247 = vmatprep.subr.bf16.mxu0 0
  %248 = vmatpush1.bf16.msra.mxu0 0
  %249 = vmatprep.subr.bf16.mxu0 0
  %250 = vmatpush1.bf16.msra.mxu0 0
  %251 = vmatprep.subr.bf16.mxu0 0
  %252 = vmatpush1.bf16.msra.mxu0 0
  %253 = vmatprep.mubr.bf16.mxu0 0
  %254 = vmatmul.mubr.bf16.gmra.mrb[0].mxu0 %v84
  %v255 = vpop.f32.mrb[0].mxu0
  %v256 = vadd.f32 %v30, %v255
  %v257 = vpop.f32.mrb[0].mxu0
  %v258 = vadd.f32 %v30, %v257
  %v259 = vpop.f32.mrb[0].mxu0
  %v260 = vadd.f32 %v35, %v259
  %v261 = vpop.f32.mrb[0].mxu0
  %v262 = vadd.f32 %v35, %v261
  %263 = vdwg.mxu0
  %264 = vmatprep.subr.bf16.mxu0 %v109
  %265 = vmatpush1.bf16.msra.mxu0 %v106
  %266 = vmatprep.subr.bf16.mxu0 0
  %267 = vmatpush1.bf16.msra.mxu0 0
  %268 = vmatprep.subr.bf16.mxu0 0
  %269 = vmatpush1.bf16.msra.mxu0 0
  %270 = vmatprep.subr.bf16.mxu0 0
  %271 = vmatpush1.bf16.msra.mxu0 0
  %272 = vmatprep.subr.bf16.mxu0 0
  %273 = vmatpush1.bf16.msra.mxu0 0
  %274 = vmatprep.subr.bf16.mxu0 0
  %275 = vmatpush1.bf16.msra.mxu0 0
  %276 = vmatprep.subr.bf16.mxu0 0
  %277 = vmatpush1.bf16.msra.mxu0 0
  %278 = vmatprep.subr.bf16.mxu0 0
  %279 = vmatpush1.bf16.msra.mxu0 0
  %280 = vmatprep.subr.bf16.mxu0 0
  %281 = vmatpush1.bf16.msra.mxu0 0
  %282 = vmatprep.subr.bf16.mxu0 0
  %283 = vmatpush1.bf16.msra.mxu0 0
  %284 = vmatprep.subr.bf16.mxu0 0
  %285 = vmatpush1.bf16.msra.mxu0 0
  %286 = vmatprep.subr.bf16.mxu0 0
  %287 = vmatpush1.bf16.msra.mxu0 0
  %288 = vmatprep.subr.bf16.mxu0 0
  %289 = vmatpush1.bf16.msra.mxu0 0
  %290 = vmatprep.subr.bf16.mxu0 0
  %291 = vmatpush1.bf16.msra.mxu0 0
  %292 = vmatprep.subr.bf16.mxu0 0
  %293 = vmatpush1.bf16.msra.mxu0 0
  %294 = vmatprep.subr.bf16.mxu0 0
  %295 = vmatpush1.bf16.msra.mxu0 0
  %296 = vmatprep.mubr.bf16.mxu0 0
  %297 = vmatmul.mubr.bf16.gmra.mrb[0].mxu0 %v84
  %v298 = vpop.f32.mrb[0].mxu0
  %v299 = vadd.f32 %v30, %v298
  %v300 = vpop.f32.mrb[0].mxu0
  %v301 = vadd.f32 %v30, %v300
  %v302 = vpop.f32.mrb[0].mxu0
  %v303 = vadd.f32 %v35, %v302
  %v304 = vpop.f32.mrb[0].mxu0
  %v305 = vadd.f32 %v35, %v304
  %306 = vdwg.mxu0
  %307 = vmatprep.subr.bf16.mxu0 %v115
  %308 = vmatpush1.bf16.msra.mxu0 %v112
  %309 = vmatprep.subr.bf16.mxu0 0
  %310 = vmatpush1.bf16.msra.mxu0 0
  %311 = vmatprep.subr.bf16.mxu0 0
  %312 = vmatpush1.bf16.msra.mxu0 0
  %313 = vmatprep.subr.bf16.mxu0 0
  %314 = vmatpush1.bf16.msra.mxu0 0
  %315 = vmatprep.subr.bf16.mxu0 0
  %316 = vmatpush1.bf16.msra.mxu0 0
  %317 = vmatprep.subr.bf16.mxu0 0
  %318 = vmatpush1.bf16.msra.mxu0 0
  %319 = vmatprep.subr.bf16.mxu0 0
  %320 = vmatpush1.bf16.msra.mxu0 0
  %321 = vmatprep.subr.bf16.mxu0 0
  %322 = vmatpush1.bf16.msra.mxu0 0
  %323 = vmatprep.subr.bf16.mxu0 0
  %324 = vmatpush1.bf16.msra.mxu0 0
  %325 = vmatprep.subr.bf16.mxu0 0
  %326 = vmatpush1.bf16.msra.mxu0 0
  %327 = vmatprep.subr.bf16.mxu0 0
  %328 = vmatpush1.bf16.msra.mxu0 0
  %329 = vmatprep.subr.bf16.mxu0 0
  %330 = vmatpush1.bf16.msra.mxu0 0
  %331 = vmatprep.subr.bf16.mxu0 0
  %332 = vmatpush1.bf16.msra.mxu0 0
  %333 = vmatprep.subr.bf16.mxu0 0
  %334 = vmatpush1.bf16.msra.mxu0 0
  %335 = vmatprep.subr.bf16.mxu0 0
  %336 = vmatpush1.bf16.msra.mxu0 0
  %337 = vmatprep.subr.bf16.mxu0 0
  %338 = vmatpush1.bf16.msra.mxu0 0
  %339 = vmatprep.mubr.bf16.mxu0 0
  %340 = vmatmul.mubr.bf16.gmra.mrb[0].mxu0 %v84
  %v341 = vpop.f32.mrb[0].mxu0
  %v342 = vadd.f32 %v30, %v341
  %v343 = vpop.f32.mrb[0].mxu0
  %v344 = vadd.f32 %v30, %v343
  %v345 = vpop.f32.mrb[0].mxu0
  %v346 = vadd.f32 %v35, %v345
  %v347 = vpop.f32.mrb[0].mxu0
  %v348 = vadd.f32 %v35, %v347
  %349 = vdwg.mxu0
  %350 = vmatprep.subr.bf16.mxu0 %v121
  %351 = vmatpush1.bf16.msra.mxu0 %v118
  %352 = vmatprep.subr.bf16.mxu0 0
  %353 = vmatpush1.bf16.msra.mxu0 0
  %354 = vmatprep.subr.bf16.mxu0 0
  %355 = vmatpush1.bf16.msra.mxu0 0
  %356 = vmatprep.subr.bf16.mxu0 0
  %357 = vmatpush1.bf16.msra.mxu0 0
  %358 = vmatprep.subr.bf16.mxu0 0
  %359 = vmatpush1.bf16.msra.mxu0 0
  %360 = vmatprep.subr.bf16.mxu0 0
  %361 = vmatpush1.bf16.msra.mxu0 0
  %362 = vmatprep.subr.bf16.mxu0 0
  %363 = vmatpush1.bf16.msra.mxu0 0
  %364 = vmatprep.subr.bf16.mxu0 0
  %365 = vmatpush1.bf16.msra.mxu0 0
  %366 = vmatprep.subr.bf16.mxu0 0
  %367 = vmatpush1.bf16.msra.mxu0 0
  %368 = vmatprep.subr.bf16.mxu0 0
  %369 = vmatpush1.bf16.msra.mxu0 0
  %370 = vmatprep.subr.bf16.mxu0 0
  %371 = vmatpush1.bf16.msra.mxu0 0
  %372 = vmatprep.subr.bf16.mxu0 0
  %373 = vmatpush1.bf16.msra.mxu0 0
  %374 = vmatprep.subr.bf16.mxu0 0
  %375 = vmatpush1.bf16.msra.mxu0 0
  %376 = vmatprep.subr.bf16.mxu0 0
  %377 = vmatpush1.bf16.msra.mxu0 0
  %378 = vmatprep.subr.bf16.mxu0 0
  %379 = vmatpush1.bf16.msra.mxu0 0
  %380 = vmatprep.subr.bf16.mxu0 0
  %381 = vmatpush1.bf16.msra.mxu0 0
  %382 = vmatprep.mubr.bf16.mxu0 0
  %383 = vmatmul.mubr.bf16.gmra.mrb[0].mxu0 %v84
  %v384 = vpop.f32.mrb[0].mxu0
  %v385 = vadd.f32 %v30, %v384
  %v386 = vpop.f32.mrb[0].mxu0
  %v387 = vadd.f32 %v30, %v386
  %v388 = vpop.f32.mrb[0].mxu0
  %v389 = vadd.f32 %v35, %v388
  %v390 = vpop.f32.mrb[0].mxu0
  %v391 = vadd.f32 %v35, %v390
  %392 = vdwg.mxu0
  %393 = vmatprep.subr.bf16.mxu0 %v127
  %394 = vmatpush1.bf16.msra.mxu0 %v124
  %395 = vmatprep.subr.bf16.mxu0 0
  %396 = vmatpush1.bf16.msra.mxu0 0
  %397 = vmatprep.subr.bf16.mxu0 0
  %398 = vmatpush1.bf16.msra.mxu0 0
  %399 = vmatprep.subr.bf16.mxu0 0
  %400 = vmatpush1.bf16.msra.mxu0 0
  %401 = vmatprep.subr.bf16.mxu0 0
  %402 = vmatpush1.bf16.msra.mxu0 0
  %403 = vmatprep.subr.bf16.mxu0 0
  %404 = vmatpush1.bf16.msra.mxu0 0
  %405 = vmatprep.subr.bf16.mxu0 0
  %406 = vmatpush1.bf16.msra.mxu0 0
  %407 = vmatprep.subr.bf16.mxu0 0
  %408 = vmatpush1.bf16.msra.mxu0 0
  %409 = vmatprep.subr.bf16.mxu0 0
  %410 = vmatpush1.bf16.msra.mxu0 0
  %411 = vmatprep.subr.bf16.mxu0 0
  %412 = vmatpush1.bf16.msra.mxu0 0
  %413 = vmatprep.subr.bf16.mxu0 0
  %414 = vmatpush1.bf16.msra.mxu0 0
  %415 = vmatprep.subr.bf16.mxu0 0
  %416 = vmatpush1.bf16.msra.mxu0 0
  %417 = vmatprep.subr.bf16.mxu0 0
  %418 = vmatpush1.bf16.msra.mxu0 0
  %419 = vmatprep.subr.bf16.mxu0 0
  %420 = vmatpush1.bf16.msra.mxu0 0
  %421 = vmatprep.subr.bf16.mxu0 0
  %422 = vmatpush1.bf16.msra.mxu0 0
  %423 = vmatprep.subr.bf16.mxu0 0
  %424 = vmatpush1.bf16.msra.mxu0 0
  %425 = vmatprep.mubr.bf16.mxu0 0
  %426 = vmatmul.mubr.bf16.gmra.mrb[0].mxu0 %v84
  %v427 = vpop.f32.mrb[0].mxu0
  %v428 = vadd.f32 %v30, %v427
  %v429 = vpop.f32.mrb[0].mxu0
  %v430 = vadd.f32 %v30, %v429
  %v431 = vpop.f32.mrb[0].mxu0
  %v432 = vadd.f32 %v35, %v431
  %v433 = vpop.f32.mrb[0].mxu0
  %v434 = vadd.f32 %v35, %v433
  %435 = vdwg.mxu0
  %436 = vmatprep.subr.bf16.mxu0 %v133
  %437 = vmatpush1.bf16.msra.mxu0 %v130
  %438 = vmatprep.subr.bf16.mxu0 0
  %439 = vmatpush1.bf16.msra.mxu0 0
  %440 = vmatprep.subr.bf16.mxu0 0
  %441 = vmatpush1.bf16.msra.mxu0 0
  %442 = vmatprep.subr.bf16.mxu0 0
  %443 = vmatpush1.bf16.msra.mxu0 0
  %444 = vmatprep.subr.bf16.mxu0 0
  %445 = vmatpush1.bf16.msra.mxu0 0
  %446 = vmatprep.subr.bf16.mxu0 0
  %447 = vmatpush1.bf16.msra.mxu0 0
  %448 = vmatprep.subr.bf16.mxu0 0
  %449 = vmatpush1.bf16.msra.mxu0 0
  %450 = vmatprep.subr.bf16.mxu0 0
  %451 = vmatpush1.bf16.msra.mxu0 0
  %452 = vmatprep.subr.bf16.mxu0 0
  %453 = vmatpush1.bf16.msra.mxu0 0
  %454 = vmatprep.subr.bf16.mxu0 0
  %455 = vmatpush1.bf16.msra.mxu0 0
  %456 = vmatprep.subr.bf16.mxu0 0
  %457 = vmatpush1.bf16.msra.mxu0 0
  %458 = vmatprep.subr.bf16.mxu0 0
  %459 = vmatpush1.bf16.msra.mxu0 0
  %460 = vmatprep.subr.bf16.mxu0 0
  %461 = vmatpush1.bf16.msra.mxu0 0
  %462 = vmatprep.subr.bf16.mxu0 0
  %463 = vmatpush1.bf16.msra.mxu0 0
  %464 = vmatprep.subr.bf16.mxu0 0
  %465 = vmatpush1.bf16.msra.mxu0 0
  %466 = vmatprep.subr.bf16.mxu0 0
  %467 = vmatpush1.bf16.msra.mxu0 0
  %468 = vmatprep.mubr.bf16.mxu0 0
  %469 = vmatmul.mubr.bf16.gmra.mrb[0].mxu0 %v84
  %v470 = vpop.f32.mrb[0].mxu0
  %v471 = vadd.f32 %v30, %v470
  %v472 = vpop.f32.mrb[0].mxu0
  %v473 = vadd.f32 %v30, %v472
  %v474 = vpop.f32.mrb[0].mxu0
  %v475 = vadd.f32 %v35, %v474
  %v476 = vpop.f32.mrb[0].mxu0
  %v477 = vadd.f32 %v35, %v476
  %478 = vdwg.mxu0
  %v479 = vsub.f32 0.0, %v170
  %v480 = vsub.f32 0.0, %v172
  %v481 = vsub.f32 0.0, %v213
  %v482 = vsub.f32 0.0, %v215
  %v483 = vsub.f32 0.0, %v256
  %v484 = vsub.f32 0.0, %v258
  %v485 = vsub.f32 0.0, %v299
  %v486 = vsub.f32 0.0, %v301
  %v487 = vsub.f32 0.0, %v342
  %v488 = vsub.f32 0.0, %v344
  %v489 = vsub.f32 0.0, %v385
  %v490 = vsub.f32 0.0, %v387
  %v491 = vsub.f32 0.0, %v428
  %v492 = vsub.f32 0.0, %v430
  %v493 = vsub.f32 0.0, %v471
  %v494 = vsub.f32 0.0, %v473
  %v495 = vsub.f32 0.0, %v174
  %v496 = vsub.f32 0.0, %v176
  %v497 = vsub.f32 0.0, %v217
  %v498 = vsub.f32 0.0, %v219
  %v499 = vsub.f32 0.0, %v260
  %v500 = vsub.f32 0.0, %v262
  %v501 = vsub.f32 0.0, %v303
  %v502 = vsub.f32 0.0, %v305
  %v503 = vsub.f32 0.0, %v346
  %v504 = vsub.f32 0.0, %v348
  %v505 = vsub.f32 0.0, %v389
  %v506 = vsub.f32 0.0, %v391
  %v507 = vsub.f32 0.0, %v432
  %v508 = vsub.f32 0.0, %v434
  %v509 = vsub.f32 0.0, %v475
  %v510 = vsub.f32 0.0, %v477
  %v511 = vmax.f32 %v479, -30.0
  %v512 = vmax.f32 %v480, -30.0
  %v513 = vmax.f32 %v481, -30.0
  %v514 = vmax.f32 %v482, -30.0
  %v515 = vmax.f32 %v483, -30.0
  %v516 = vmax.f32 %v484, -30.0
  %v517 = vmax.f32 %v485, -30.0
  %v518 = vmax.f32 %v486, -30.0
  %v519 = vmax.f32 %v487, -30.0
  %v520 = vmax.f32 %v488, -30.0
  %v521 = vmax.f32 %v489, -30.0
  %v522 = vmax.f32 %v490, -30.0
  %v523 = vmax.f32 %v491, -30.0
  %v524 = vmax.f32 %v492, -30.0
  %v525 = vmax.f32 %v493, -30.0
  %v526 = vmax.f32 %v494, -30.0
  %v527 = vmax.f32 %v495, -30.0
  %v528 = vmax.f32 %v496, -30.0
  %v529 = vmax.f32 %v497, -30.0
  %v530 = vmax.f32 %v498, -30.0
  %v531 = vmax.f32 %v499, -30.0
  %v532 = vmax.f32 %v500, -30.0
  %v533 = vmax.f32 %v501, -30.0
  %v534 = vmax.f32 %v502, -30.0
  %v535 = vmax.f32 %v503, -30.0
  %v536 = vmax.f32 %v504, -30.0
  %v537 = vmax.f32 %v505, -30.0
  %v538 = vmax.f32 %v506, -30.0
  %v539 = vmax.f32 %v507, -30.0
  %v540 = vmax.f32 %v508, -30.0
  %v541 = vmax.f32 %v509, -30.0
  %v542 = vmax.f32 %v510, -30.0
  %v543 = vmin.f32 %v511, 30.0
  %v544 = vmin.f32 %v512, 30.0
  %v545 = vmin.f32 %v513, 30.0
  %v546 = vmin.f32 %v514, 30.0
  %v547 = vmin.f32 %v515, 30.0
  %v548 = vmin.f32 %v516, 30.0
  %v549 = vmin.f32 %v517, 30.0
  %v550 = vmin.f32 %v518, 30.0
  %v551 = vmin.f32 %v519, 30.0
  %v552 = vmin.f32 %v520, 30.0
  %v553 = vmin.f32 %v521, 30.0
  %v554 = vmin.f32 %v522, 30.0
  %v555 = vmin.f32 %v523, 30.0
  %v556 = vmin.f32 %v524, 30.0
  %v557 = vmin.f32 %v525, 30.0
  %v558 = vmin.f32 %v526, 30.0
  %v559 = vmin.f32 %v527, 30.0
  %v560 = vmin.f32 %v528, 30.0
  %v561 = vmin.f32 %v529, 30.0
  %v562 = vmin.f32 %v530, 30.0
  %v563 = vmin.f32 %v531, 30.0
  %v564 = vmin.f32 %v532, 30.0
  %v565 = vmin.f32 %v533, 30.0
  %v566 = vmin.f32 %v534, 30.0
  %v567 = vmin.f32 %v535, 30.0
  %v568 = vmin.f32 %v536, 30.0
  %v569 = vmin.f32 %v537, 30.0
  %v570 = vmin.f32 %v538, 30.0
  %v571 = vmin.f32 %v539, 30.0
  %v572 = vmin.f32 %v540, 30.0
  %v573 = vmin.f32 %v541, 30.0
  %v574 = vmin.f32 %v542, 30.0
  %v575 = vmul.f32 %v543, 1.442695
  %v576 = vpow.pop %v575
  %v577 = vmul.f32 %v544, 1.442695
  %v578 = vpow.pop %v577
  %v579 = vmul.f32 %v545, 1.442695
  %v580 = vpow.pop %v579
  %v581 = vmul.f32 %v546, 1.442695
  %v582 = vpow.pop %v581
  %v583 = vmul.f32 %v547, 1.442695
  %v584 = vpow.pop %v583
  %v585 = vmul.f32 %v548, 1.442695
  %v586 = vpow.pop %v585
  %v587 = vmul.f32 %v549, 1.442695
  %v588 = vpow.pop %v587
  %v589 = vmul.f32 %v550, 1.442695
  %v590 = vpow.pop %v589
  %v591 = vmul.f32 %v551, 1.442695
  %v592 = vpow.pop %v591
  %v593 = vmul.f32 %v552, 1.442695
  %v594 = vpow.pop %v593
  %v595 = vmul.f32 %v553, 1.442695
  %v596 = vpow.pop %v595
  %v597 = vmul.f32 %v554, 1.442695
  %v598 = vpow.pop %v597
  %v599 = vmul.f32 %v555, 1.442695
  %v600 = vpow.pop %v599
  %v601 = vmul.f32 %v556, 1.442695
  %v602 = vpow.pop %v601
  %v603 = vmul.f32 %v557, 1.442695
  %v604 = vpow.pop %v603
  %v605 = vmul.f32 %v558, 1.442695
  %v606 = vpow.pop %v605
  %v607 = vmul.f32 %v559, 1.442695
  %v608 = vpow.pop %v607
  %v609 = vmul.f32 %v560, 1.442695
  %v610 = vpow.pop %v609
  %v611 = vmul.f32 %v561, 1.442695
  %v612 = vpow.pop %v611
  %v613 = vmul.f32 %v562, 1.442695
  %v614 = vpow.pop %v613
  %v615 = vmul.f32 %v563, 1.442695
  %v616 = vpow.pop %v615
  %v617 = vmul.f32 %v564, 1.442695
  %v618 = vpow.pop %v617
  %v619 = vmul.f32 %v565, 1.442695
  %v620 = vpow.pop %v619
  %v621 = vmul.f32 %v566, 1.442695
  %v622 = vpow.pop %v621
  %v623 = vmul.f32 %v567, 1.442695
  %v624 = vpow.pop %v623
  %v625 = vmul.f32 %v568, 1.442695
  %v626 = vpow.pop %v625
  %v627 = vmul.f32 %v569, 1.442695
  %v628 = vpow.pop %v627
  %v629 = vmul.f32 %v570, 1.442695
  %v630 = vpow.pop %v629
  %v631 = vmul.f32 %v571, 1.442695
  %v632 = vpow.pop %v631
  %v633 = vmul.f32 %v572, 1.442695
  %v634 = vpow.pop %v633
  %v635 = vmul.f32 %v573, 1.442695
  %v636 = vpow.pop %v635
  %v637 = vmul.f32 %v574, 1.442695
  %v638 = vpow.pop %v637
  %v639 = vadd.f32 %v576, 1.0
  %v640 = vadd.f32 %v578, 1.0
  %v641 = vadd.f32 %v580, 1.0
  %v642 = vadd.f32 %v582, 1.0
  %v643 = vadd.f32 %v584, 1.0
  %v644 = vadd.f32 %v586, 1.0
  %v645 = vadd.f32 %v588, 1.0
  %v646 = vadd.f32 %v590, 1.0
  %v647 = vadd.f32 %v592, 1.0
  %v648 = vadd.f32 %v594, 1.0
  %v649 = vadd.f32 %v596, 1.0
  %v650 = vadd.f32 %v598, 1.0
  %v651 = vadd.f32 %v600, 1.0
  %v652 = vadd.f32 %v602, 1.0
  %v653 = vadd.f32 %v604, 1.0
  %v654 = vadd.f32 %v606, 1.0
  %v655 = vadd.f32 %v608, 1.0
  %v656 = vadd.f32 %v610, 1.0
  %v657 = vadd.f32 %v612, 1.0
  %v658 = vadd.f32 %v614, 1.0
  %v659 = vadd.f32 %v616, 1.0
  %v660 = vadd.f32 %v618, 1.0
  %v661 = vadd.f32 %v620, 1.0
  %v662 = vadd.f32 %v622, 1.0
  %v663 = vadd.f32 %v624, 1.0
  %v664 = vadd.f32 %v626, 1.0
  %v665 = vadd.f32 %v628, 1.0
  %v666 = vadd.f32 %v630, 1.0
  %v667 = vadd.f32 %v632, 1.0
  %v668 = vadd.f32 %v634, 1.0
  %v669 = vadd.f32 %v636, 1.0
  %v670 = vadd.f32 %v638, 1.0
  %v671 = vrcp.pop %v639
  %v672 = vrcp.pop %v640
  %v673 = vrcp.pop %v641
  %v674 = vrcp.pop %v642
  %v675 = vrcp.pop %v643
  %v676 = vrcp.pop %v644
  %v677 = vrcp.pop %v645
  %v678 = vrcp.pop %v646
  %v679 = vrcp.pop %v647
  %v680 = vrcp.pop %v648
  %v681 = vrcp.pop %v649
  %v682 = vrcp.pop %v650
  %v683 = vrcp.pop %v651
  %v684 = vrcp.pop %v652
  %v685 = vrcp.pop %v653
  %v686 = vrcp.pop %v654
  %v687 = vrcp.pop %v655
  %v688 = vrcp.pop %v656
  %v689 = vrcp.pop %v657
  %v690 = vrcp.pop %v658
  %v691 = vrcp.pop %v659
  %v692 = vrcp.pop %v660
  %v693 = vrcp.pop %v661
  %v694 = vrcp.pop %v662
  %v695 = vrcp.pop %v663
  %v696 = vrcp.pop %v664
  %v697 = vrcp.pop %v665
  %v698 = vrcp.pop %v666
  %v699 = vrcp.pop %v667
  %v700 = vrcp.pop %v668
  %v701 = vrcp.pop %v669
  %v702 = vrcp.pop %v670
  %v703 = vmax.f32 %v671, 0.0
  %v704 = vmax.f32 %v672, 0.0
  %v705 = vmax.f32 %v673, 0.0
  %v706 = vmax.f32 %v674, 0.0
  %v707 = vmax.f32 %v675, 0.0
  %v708 = vmax.f32 %v676, 0.0
  %v709 = vmax.f32 %v677, 0.0
  %v710 = vmax.f32 %v678, 0.0
  %v711 = vmax.f32 %v679, 0.0
  %v712 = vmax.f32 %v680, 0.0
  %v713 = vmax.f32 %v681, 0.0
  %v714 = vmax.f32 %v682, 0.0
  %v715 = vmax.f32 %v683, 0.0
  %v716 = vmax.f32 %v684, 0.0
  %v717 = vmax.f32 %v685, 0.0
  %v718 = vmax.f32 %v686, 0.0
  %v719 = vmax.f32 %v687, 0.0
  %v720 = vmax.f32 %v688, 0.0
  %v721 = vmax.f32 %v689, 0.0
  %v722 = vmax.f32 %v690, 0.0
  %v723 = vmax.f32 %v691, 0.0
  %v724 = vmax.f32 %v692, 0.0
  %v725 = vmax.f32 %v693, 0.0
  %v726 = vmax.f32 %v694, 0.0
  %v727 = vmax.f32 %v695, 0.0
  %v728 = vmax.f32 %v696, 0.0
  %v729 = vmax.f32 %v697, 0.0
  %v730 = vmax.f32 %v698, 0.0
  %v731 = vmax.f32 %v699, 0.0
  %v732 = vmax.f32 %v700, 0.0
  %v733 = vmax.f32 %v701, 0.0
  %v734 = vmax.f32 %v702, 0.0
  %v735 = vmin.f32 %v703, 1.0
  %v736 = vmin.f32 %v704, 1.0
  %v737 = vmin.f32 %v705, 1.0
  %v738 = vmin.f32 %v706, 1.0
  %v739 = vmin.f32 %v707, 1.0
  %v740 = vmin.f32 %v708, 1.0
  %v741 = vmin.f32 %v709, 1.0
  %v742 = vmin.f32 %v710, 1.0
  %v743 = vmin.f32 %v711, 1.0
  %v744 = vmin.f32 %v712, 1.0
  %v745 = vmin.f32 %v713, 1.0
  %v746 = vmin.f32 %v714, 1.0
  %v747 = vmin.f32 %v715, 1.0
  %v748 = vmin.f32 %v716, 1.0
  %v749 = vmin.f32 %v717, 1.0
  %v750 = vmin.f32 %v718, 1.0
  %v751 = vmin.f32 %v719, 1.0
  %v752 = vmin.f32 %v720, 1.0
  %v753 = vmin.f32 %v721, 1.0
  %v754 = vmin.f32 %v722, 1.0
  %v755 = vmin.f32 %v723, 1.0
  %v756 = vmin.f32 %v724, 1.0
  %v757 = vmin.f32 %v725, 1.0
  %v758 = vmin.f32 %v726, 1.0
  %v759 = vmin.f32 %v727, 1.0
  %v760 = vmin.f32 %v728, 1.0
  %v761 = vmin.f32 %v729, 1.0
  %v762 = vmin.f32 %v730, 1.0
  %v763 = vmin.f32 %v731, 1.0
  %v764 = vmin.f32 %v732, 1.0
  %v765 = vmin.f32 %v733, 1.0
  %v766 = vmin.f32 %v734, 1.0
  %767 = vst [vmem:[%s3] sm:$0xff] %v735
  %768 = vst [vmem:[%s3 + $0x8] sm:$0xff] %v736
  %769 = vst [vmem:[%s3 + $0x10] sm:$0xff] %v737
  %770 = vst [vmem:[%s3 + $0x18] sm:$0xff] %v738
  %771 = vst [vmem:[%s3 + $0x20] sm:$0xff] %v739
  %772 = vst [vmem:[%s3 + $0x28] sm:$0xff] %v740
  %773 = vst [vmem:[%s3 + $0x30] sm:$0xff] %v741
  %774 = vst [vmem:[%s3 + $0x38] sm:$0xff] %v742
  %775 = vst [vmem:[%s3 + $0x40] sm:$0xff] %v743
  %776 = vst [vmem:[%s3 + $0x48] sm:$0xff] %v744
  %777 = vst [vmem:[%s3 + $0x50] sm:$0xff] %v745
  %778 = vst [vmem:[%s3 + $0x58] sm:$0xff] %v746
  %779 = vst [vmem:[%s3 + $0x60] sm:$0xff] %v747
  %780 = vst [vmem:[%s3 + $0x68] sm:$0xff] %v748
  %781 = vst [vmem:[%s3 + $0x70] sm:$0xff] %v749
  %782 = vst [vmem:[%s3 + $0x78] sm:$0xff] %v750
  %783 = vst [vmem:[%s3 + $0x80] sm:$0xf] %v751
  %784 = vst [vmem:[%s3 + $0x88] sm:$0xf] %v752
  %785 = vst [vmem:[%s3 + $0x90] sm:$0xf] %v753
  %786 = vst [vmem:[%s3 + $0x98] sm:$0xf] %v754
  %787 = vst [vmem:[%s3 + $0xa0] sm:$0xf] %v755
  %788 = vst [vmem:[%s3 + $0xa8] sm:$0xf] %v756
  %789 = vst [vmem:[%s3 + $0xb0] sm:$0xf] %v757
  %790 = vst [vmem:[%s3 + $0xb8] sm:$0xf] %v758
  %791 = vst [vmem:[%s3 + $0xc0] sm:$0xf] %v759
  %792 = vst [vmem:[%s3 + $0xc8] sm:$0xf] %v760
  %793 = vst [vmem:[%s3 + $0xd0] sm:$0xf] %v761
  %794 = vst [vmem:[%s3 + $0xd8] sm:$0xf] %v762
  %795 = vst [vmem:[%s3 + $0xe0] sm:$0xf] %v763
  %796 = vst [vmem:[%s3 + $0xe8] sm:$0xf] %v764
  %797 = vst [vmem:[%s3 + $0xf0] sm:$0xf] %v765
  %798 = vst [vmem:[%s3 + $0xf8] sm:$0xf] %v766
  // Predicated region
  $region14: #{decoder_forward.21} parent=0 // pred_check
    _
  $region15: #{decoder_forward.21} parent=0 // pred_check_branch
    %800 = sbr.rel (0) target = $region17
  $region16: #{decoder_forward.21} parent=0 // pred_region
    _
  $region17: #{decoder_forward.21} parent=0 // pred_fallthru
    _
  // Predicated region
  $region18: #{decoder_forward.21} parent=0 // pred_check
    _
  $region19: #{decoder_forward.21} parent=0 // pred_check_branch
    %802 = sbr.rel (0) target = $region21
  $region20: #{decoder_forward.21} parent=0 // pred_region
    _
  $region21: #{decoder_forward.21} parent=0 // pred_fallthru
    _

</llo_original>
